<compile_context>
chip_gen: v7x
topology: tpu7x:2x2x1
jax: 0.10.0
libtpu: 0.0.40
codegen_flags: <defaults>
</compile_context>

<pallas_src>
import functools

import jax
import jax.numpy as jnp
from jax.experimental import pallas as pl
from jax.experimental.pallas import tpu as pltpu  # noqa: F401  (TPU backend)


_INV_SQRT2 = 0.7071067811865476  # hoisted GELU constant


# ----------------------------- in-kernel math -------------------------------

def _gelu_exact(x):
    # PyTorch nn.GELU() default: exact erf-based GELU.
    return 0.5 * x * (1.0 + jax.lax.erf(x * _INV_SQRT2))


def _layernorm(x, gamma, beta, eps=1e-5):
    # Normalize over the last dim (PyTorch nn.LayerNorm(dim), biased variance).
    mean = jnp.mean(x, axis=-1, keepdims=True)
    centered = x - mean
    var = jnp.mean(centered * centered, axis=-1, keepdims=True)
    return centered * jax.lax.rsqrt(var + eps) * gamma + beta


# -------------------------------- kernel ------------------------------------

def _divdis_kernel(
    x_ref,        # (B, D_in)
    wp_ref,       # (D_in, heads*H)        fused input-projection weight
    bp_ref,       # (1, heads*H)           fused input-projection bias
    wb_ref,       # (heads*NB*2, H, H)     residual-block weights [w1, w2] flat
    slab_ref,     # (heads, 2 + 6*NB, H)   [gp, betap, (b1,g1,be1,b2,g2,be2)*NB]
    wf_ref,       # (heads, H, C)          final-layer weights
    bf_ref,       # (1, heads*C)           fused final-layer bias
    out_ref,      # (B, heads*C)           lane-dense output
    *,
    num_heads, num_blocks, hidden, num_classes,
):
    x = x_ref[...]

    # Fused input projection across all heads: N = num_heads * hidden.
    y_all = jnp.dot(x, wp_ref[...], preferred_element_type=jnp.float32) + bp_ref[...]

    logits = []
    # TODO(synk): for large num_heads/num_blocks switch to lax.fori_loop with
    # dynamic ref indexing (bounds vreg live ranges); at these sizes static
    # unrolling is cheaper and keeps everything visible to the LLO scheduler.
    for h in range(num_heads):
        slab_h = slab_ref[h]                               # (2 + 6*NB, H)
        y = y_all[:, h * hidden:(h + 1) * hidden]          # (B, H)

        # input_proj[h]: (Linear done above) -> LayerNorm -> GELU
        y = _gelu_exact(_layernorm(y, slab_h[0:1, :], slab_h[1:2, :]))

        # blocks[h]: num_blocks x ResidualBlock
        for nb in range(num_blocks):
            base = 2 + 6 * nb
            widx = (h * num_blocks + nb) * 2
            t = (jnp.dot(y, wb_ref[widx], preferred_element_type=jnp.float32)
                 + slab_h[base + 0:base + 1, :])
            t = _gelu_exact(_layernorm(t, slab_h[base + 1:base + 2, :],
                                       slab_h[base + 2:base + 3, :]))
            # Dropout(p) -> identity in eval mode.
            t = (jnp.dot(t, wb_ref[widx + 1], preferred_element_type=jnp.float32)
                 + slab_h[base + 3:base + 4, :])
            t = _gelu_exact(_layernorm(t, slab_h[base + 4:base + 5, :],
                                       slab_h[base + 5:base + 6, :]))
            y = y + t

        # final_layer[h]: Linear(hidden, num_classes); bias added fused below.
        logits.append(jnp.dot(y, wf_ref[h], preferred_element_type=jnp.float32))

    # Single lane-dense store: (B, heads*C).
    out = jnp.concatenate(logits, axis=-1) + bf_ref[...]
    out_ref[...] = out.astype(out_ref.dtype)


# ------------------------------- wrapper -------------------------------------

@jax.jit
def divdis_forward(x, params):
    (wp, bp, gp, betap,
     w1, b1, g1, be1,
     w2, b2, g2, be2,
     wf, bf) = params

    num_heads, d_in, hidden = wp.shape
    num_blocks = w1.shape[1]
    num_classes = wf.shape[-1]
    batch = x.shape[0]

    # ---- pack parameters (done once per call; trivially cheap / fusable) ----
    # Fused input projection: columns ordered head-major x hidden.
    wp_all = jnp.transpose(wp, (1, 0, 2)).reshape(d_in, num_heads * hidden)
    bp_all = bp[:, 0, :].reshape(1, num_heads * hidden)

    # Residual-block weights flattened: (heads*NB*2, H, H), order [w1, w2] per block.
    wb = jnp.stack([w1, w2], axis=2).reshape(num_heads * num_blocks * 2, hidden, hidden)

    # Bias / LayerNorm slab: per head rows = [gp, betap, (b1,g1,be1,b2,g2,be2)*NB].
    block_rows = jnp.concatenate([b1, g1, be1, b2, g2, be2], axis=2)   # (H, NB, 6, hid)
    block_rows = block_rows.reshape(num_heads, num_blocks * 6, hidden)
    slab = jnp.concatenate([gp, betap, block_rows], axis=1)            # (H, 2+6NB, hid)

    bf_all = bf[:, 0, :].reshape(1, num_heads * num_classes)

    kernel = functools.partial(
        _divdis_kernel,
        num_heads=num_heads,
        num_blocks=num_blocks,
        hidden=hidden,
        num_classes=num_classes,
    )

    # Single invocation, no grid: every operand lives fully in VMEM (tiny
    # footprint at these sizes -> no pipelining needed, zero grid overhead).
    out_flat = pl.pallas_call(
        kernel,
        out_shape=jax.ShapeDtypeStruct((batch, num_heads * num_classes), jnp.float32),
    )(x, wp_all, bp_all, wb, slab, wf, bf_all)

    # (B, heads*C) -> (B, heads, C) is a free row-major reshape (no transpose).
    return out_flat.reshape(batch, num_heads, num_classes)


# ----------------------- deterministic parameter init ------------------------

def make_params(key, input_dim, hidden_dim, num_blocks, num_classes, num_heads):
    keys = jax.random.split(key, 8)
    scale = 0.1

    wp = scale * jax.random.normal(keys[0], (num_heads, input_dim, hidden_dim), jnp.float32)
    bp = scale * jax.random.normal(keys[1], (num_heads, 1, hidden_dim), jnp.float32)
    gp = jnp.ones((num_heads, 1, hidden_dim), jnp.float32)
    betap = jnp.zeros((num_heads, 1, hidden_dim), jnp.float32)

    w1 = scale * jax.random.normal(keys[2], (num_heads, num_blocks, hidden_dim, hidden_dim), jnp.float32)
    b1 = scale * jax.random.normal(keys[3], (num_heads, num_blocks, 1, hidden_dim), jnp.float32)
    g1 = jnp.ones((num_heads, num_blocks, 1, hidden_dim), jnp.float32)
    be1 = jnp.zeros((num_heads, num_blocks, 1, hidden_dim), jnp.float32)

    w2 = scale * jax.random.normal(keys[4], (num_heads, num_blocks, hidden_dim, hidden_dim), jnp.float32)
    b2 = scale * jax.random.normal(keys[5], (num_heads, num_blocks, 1, hidden_dim), jnp.float32)
    g2 = jnp.ones((num_heads, num_blocks, 1, hidden_dim), jnp.float32)
    be2 = jnp.zeros((num_heads, num_blocks, 1, hidden_dim), jnp.float32)

    wf = scale * jax.random.normal(keys[6], (num_heads, hidden_dim, num_classes), jnp.float32)
    bf = scale * jax.random.normal(keys[7], (num_heads, 1, num_classes), jnp.float32)

    return (wp, bp, gp, betap, w1, b1, g1, be1, w2, b2, g2, be2, wf, bf)


# ---------------------------- pure-JAX reference ------------------------------

def ref_forward(x, params):
    (wp, bp, gp, betap, w1, b1, g1, be1, w2, b2, g2, be2, wf, bf) = params
    num_heads = wp.shape[0]
    num_blocks = w1.shape[1]
    preds = []
    for h in range(num_heads):
        y = _gelu_exact(_layernorm(x @ wp[h] + bp[h, 0], gp[h, 0], betap[h, 0]))
        for nb in range(num_blocks):
            t = _gelu_exact(_layernorm(y @ w1[h, nb] + b1[h, nb, 0], g1[h, nb, 0], be1[h, nb, 0]))
            t = _gelu_exact(_layernorm(t @ w2[h, nb] + b2[h, nb, 0], g2[h, nb, 0], be2[h, nb, 0]))
            y = y + t
        preds.append(y @ wf[h] + bf[h, 0])
    return jnp.stack(preds, axis=1)


# ---------------------------------- main --------------------------------------

if __name__ == "__main__":
    # Small synthetic shapes consistent with the module's forward.
    batch, input_dim, hidden_dim = 4, 16, 32
    num_blocks, num_classes, num_heads = 3, 3, 3

    key = jax.random.PRNGKey(0)
    kx, kp = jax.random.split(key)
    x = jax.random.normal(kx, (batch, input_dim), jnp.float32)
    params = make_params(kp, input_dim, hidden_dim, num_blocks, num_classes, num_heads)

    out = divdis_forward(x, params)
    out = jax.block_until_ready(out)

    assert out.shape == (batch, num_heads, num_classes), out.shape

    ref = ref_forward(x, params)
    assert jnp.allclose(out, ref, atol=1e-3, rtol=1e-3), float(jnp.max(jnp.abs(out - ref)))

    print("KERNEL_OK")
</pallas_src>

<mosaic_0001>
module attributes {stable_mosaic.version = 11 : i64} {
  func.func @_divdis_kernel(%arg0: memref<4x16xf32, #tpu.memory_space<vmem>>, %arg1: memref<16x96xf32, #tpu.memory_space<vmem>>, %arg2: memref<1x96xf32, #tpu.memory_space<vmem>>, %arg3: memref<18x32x32xf32, #tpu.memory_space<vmem>>, %arg4: memref<3x20x32xf32, #tpu.memory_space<vmem>>, %arg5: memref<3x32x3xf32, #tpu.memory_space<vmem>>, %arg6: memref<1x9xf32, #tpu.memory_space<vmem>>, %arg7: memref<4x9xf32, #tpu.memory_space<vmem>>) attributes {dimension_semantics = [], scalar_prefetch = 0 : i64, scratch_operands = 0 : i64, tpu.core_type = #tpu.core_type<tc>} {
    %c0 = arith.constant 0 : index
    %c0_0 = arith.constant 0 : index
    %0 = vector.load %arg0[%c0, %c0_0] : memref<4x16xf32, #tpu.memory_space<vmem>>, vector<4x16xf32>
    %c0_1 = arith.constant 0 : index
    %c0_2 = arith.constant 0 : index
    %1 = vector.load %arg1[%c0_1, %c0_2] : memref<16x96xf32, #tpu.memory_space<vmem>>, vector<16x96xf32>
    %cst = arith.constant dense<0.000000e+00> : vector<4x96xf32>
    %2 = tpu.matmul %0, %1, %cst {dimension_numbers = #tpu.dot_dimension_numbers<[1], [0], [0], [1], [0, 0, 1, 1], [], []>} : vector<4x16xf32>, vector<16x96xf32>, vector<4x96xf32> -> vector<4x96xf32>
    %c0_3 = arith.constant 0 : index
    %c0_4 = arith.constant 0 : index
    %3 = vector.load %arg2[%c0_3, %c0_4] : memref<1x96xf32, #tpu.memory_space<vmem>>, vector<1x96xf32>
    %4 = vector.broadcast %3 : vector<1x96xf32> to vector<4x96xf32>
    %5 = arith.addf %2, %4 : vector<4x96xf32>
    %c0_5 = arith.constant 0 : index
    %c0_6 = arith.constant 0 : index
    %c0_7 = arith.constant 0 : index
    %6 = vector.load %arg4[%c0_5, %c0_6, %c0_7] : memref<3x20x32xf32, #tpu.memory_space<vmem>>, vector<1x20x32xf32>
    %7 = vector.shape_cast %6 : vector<1x20x32xf32> to vector<20x32xf32>
    %8 = vector.extract_strided_slice %5 {offsets = [0, 0], sizes = [4, 32], strides = [1, 1]} : vector<4x96xf32> to vector<4x32xf32>
    %9 = vector.extract_strided_slice %7 {offsets = [0, 0], sizes = [1, 32], strides = [1, 1]} : vector<20x32xf32> to vector<1x32xf32>
    %10 = vector.extract_strided_slice %7 {offsets = [1, 0], sizes = [1, 32], strides = [1, 1]} : vector<20x32xf32> to vector<1x32xf32>
    %cst_8 = arith.constant dense<0.000000e+00> : vector<4xf32>
    %11 = vector.multi_reduction <add>, %8, %cst_8 [1] : vector<4x32xf32> to vector<4xf32>
    %12 = vector.shape_cast %11 : vector<4xf32> to vector<4x1xf32>
    %cst_9 = arith.constant 3.200000e+01 : f32
    %13 = vector.broadcast %cst_9 : f32 to vector<4x1xf32>
    %14 = arith.divf %12, %13 : vector<4x1xf32>
    %15 = vector.broadcast %14 : vector<4x1xf32> to vector<4x32xf32>
    %16 = arith.subf %8, %15 : vector<4x32xf32>
    %17 = arith.mulf %16, %16 : vector<4x32xf32>
    %cst_10 = arith.constant dense<0.000000e+00> : vector<4xf32>
    %18 = vector.multi_reduction <add>, %17, %cst_10 [1] : vector<4x32xf32> to vector<4xf32>
    %19 = vector.shape_cast %18 : vector<4xf32> to vector<4x1xf32>
    %cst_11 = arith.constant 3.200000e+01 : f32
    %20 = vector.broadcast %cst_11 : f32 to vector<4x1xf32>
    %21 = arith.divf %19, %20 : vector<4x1xf32>
    %cst_12 = arith.constant 9.99999974E-6 : f32
    %22 = vector.broadcast %cst_12 : f32 to vector<4x1xf32>
    %23 = arith.addf %21, %22 : vector<4x1xf32>
    %24 = math.rsqrt %23 : vector<4x1xf32>
    %25 = vector.broadcast %24 : vector<4x1xf32> to vector<4x32xf32>
    %26 = arith.mulf %16, %25 : vector<4x32xf32>
    %27 = vector.broadcast %9 : vector<1x32xf32> to vector<4x32xf32>
    %28 = arith.mulf %26, %27 : vector<4x32xf32>
    %29 = vector.broadcast %10 : vector<1x32xf32> to vector<4x32xf32>
    %30 = arith.addf %28, %29 : vector<4x32xf32>
    %cst_13 = arith.constant 5.000000e-01 : f32
    %31 = vector.broadcast %cst_13 : f32 to vector<4x32xf32>
    %32 = arith.mulf %31, %30 : vector<4x32xf32>
    %cst_14 = arith.constant 0.707106769 : f32
    %33 = vector.broadcast %cst_14 : f32 to vector<4x32xf32>
    %34 = arith.mulf %30, %33 : vector<4x32xf32>
    %35 = math.erf %34 : vector<4x32xf32>
    %cst_15 = arith.constant 1.000000e+00 : f32
    %36 = vector.broadcast %cst_15 : f32 to vector<4x32xf32>
    %37 = arith.addf %36, %35 : vector<4x32xf32>
    %38 = arith.mulf %32, %37 : vector<4x32xf32>
    %c0_16 = arith.constant 0 : index
    %c0_17 = arith.constant 0 : index
    %c0_18 = arith.constant 0 : index
    %39 = vector.load %arg3[%c0_16, %c0_17, %c0_18] : memref<18x32x32xf32, #tpu.memory_space<vmem>>, vector<1x32x32xf32>
    %40 = vector.shape_cast %39 : vector<1x32x32xf32> to vector<32x32xf32>
    %cst_19 = arith.constant dense<0.000000e+00> : vector<4x32xf32>
    %41 = tpu.matmul %38, %40, %cst_19 {dimension_numbers = #tpu.dot_dimension_numbers<[1], [0], [0], [1], [0, 0, 1, 1], [], []>} : vector<4x32xf32>, vector<32x32xf32>, vector<4x32xf32> -> vector<4x32xf32>
    %42 = vector.extract_strided_slice %7 {offsets = [2, 0], sizes = [1, 32], strides = [1, 1]} : vector<20x32xf32> to vector<1x32xf32>
    %43 = vector.broadcast %42 : vector<1x32xf32> to vector<4x32xf32>
    %44 = arith.addf %41, %43 : vector<4x32xf32>
    %45 = vector.extract_strided_slice %7 {offsets = [3, 0], sizes = [1, 32], strides = [1, 1]} : vector<20x32xf32> to vector<1x32xf32>
    %46 = vector.extract_strided_slice %7 {offsets = [4, 0], sizes = [1, 32], strides = [1, 1]} : vector<20x32xf32> to vector<1x32xf32>
    %cst_20 = arith.constant dense<0.000000e+00> : vector<4xf32>
    %47 = vector.multi_reduction <add>, %44, %cst_20 [1] : vector<4x32xf32> to vector<4xf32>
    %48 = vector.shape_cast %47 : vector<4xf32> to vector<4x1xf32>
    %cst_21 = arith.constant 3.200000e+01 : f32
    %49 = vector.broadcast %cst_21 : f32 to vector<4x1xf32>
    %50 = arith.divf %48, %49 : vector<4x1xf32>
    %51 = vector.broadcast %50 : vector<4x1xf32> to vector<4x32xf32>
    %52 = arith.subf %44, %51 : vector<4x32xf32>
    %53 = arith.mulf %52, %52 : vector<4x32xf32>
    %cst_22 = arith.constant dense<0.000000e+00> : vector<4xf32>
    %54 = vector.multi_reduction <add>, %53, %cst_22 [1] : vector<4x32xf32> to vector<4xf32>
    %55 = vector.shape_cast %54 : vector<4xf32> to vector<4x1xf32>
    %cst_23 = arith.constant 3.200000e+01 : f32
    %56 = vector.broadcast %cst_23 : f32 to vector<4x1xf32>
    %57 = arith.divf %55, %56 : vector<4x1xf32>
    %cst_24 = arith.constant 9.99999974E-6 : f32
    %58 = vector.broadcast %cst_24 : f32 to vector<4x1xf32>
    %59 = arith.addf %57, %58 : vector<4x1xf32>
    %60 = math.rsqrt %59 : vector<4x1xf32>
    %61 = vector.broadcast %60 : vector<4x1xf32> to vector<4x32xf32>
    %62 = arith.mulf %52, %61 : vector<4x32xf32>
    %63 = vector.broadcast %45 : vector<1x32xf32> to vector<4x32xf32>
    %64 = arith.mulf %62, %63 : vector<4x32xf32>
    %65 = vector.broadcast %46 : vector<1x32xf32> to vector<4x32xf32>
    %66 = arith.addf %64, %65 : vector<4x32xf32>
    %cst_25 = arith.constant 5.000000e-01 : f32
    %67 = vector.broadcast %cst_25 : f32 to vector<4x32xf32>
    %68 = arith.mulf %67, %66 : vector<4x32xf32>
    %cst_26 = arith.constant 0.707106769 : f32
    %69 = vector.broadcast %cst_26 : f32 to vector<4x32xf32>
    %70 = arith.mulf %66, %69 : vector<4x32xf32>
    %71 = math.erf %70 : vector<4x32xf32>
    %cst_27 = arith.constant 1.000000e+00 : f32
    %72 = vector.broadcast %cst_27 : f32 to vector<4x32xf32>
    %73 = arith.addf %72, %71 : vector<4x32xf32>
    %74 = arith.mulf %68, %73 : vector<4x32xf32>
    %c1 = arith.constant 1 : index
    %c0_28 = arith.constant 0 : index
    %c0_29 = arith.constant 0 : index
    %75 = vector.load %arg3[%c1, %c0_28, %c0_29] : memref<18x32x32xf32, #tpu.memory_space<vmem>>, vector<1x32x32xf32>
    %76 = vector.shape_cast %75 : vector<1x32x32xf32> to vector<32x32xf32>
    %cst_30 = arith.constant dense<0.000000e+00> : vector<4x32xf32>
    %77 = tpu.matmul %74, %76, %cst_30 {dimension_numbers = #tpu.dot_dimension_numbers<[1], [0], [0], [1], [0, 0, 1, 1], [], []>} : vector<4x32xf32>, vector<32x32xf32>, vector<4x32xf32> -> vector<4x32xf32>
    %78 = vector.extract_strided_slice %7 {offsets = [5, 0], sizes = [1, 32], strides = [1, 1]} : vector<20x32xf32> to vector<1x32xf32>
    %79 = vector.broadcast %78 : vector<1x32xf32> to vector<4x32xf32>
    %80 = arith.addf %77, %79 : vector<4x32xf32>
    %81 = vector.extract_strided_slice %7 {offsets = [6, 0], sizes = [1, 32], strides = [1, 1]} : vector<20x32xf32> to vector<1x32xf32>
    %82 = vector.extract_strided_slice %7 {offsets = [7, 0], sizes = [1, 32], strides = [1, 1]} : vector<20x32xf32> to vector<1x32xf32>
    %cst_31 = arith.constant dense<0.000000e+00> : vector<4xf32>
    %83 = vector.multi_reduction <add>, %80, %cst_31 [1] : vector<4x32xf32> to vector<4xf32>
    %84 = vector.shape_cast %83 : vector<4xf32> to vector<4x1xf32>
    %cst_32 = arith.constant 3.200000e+01 : f32
    %85 = vector.broadcast %cst_32 : f32 to vector<4x1xf32>
    %86 = arith.divf %84, %85 : vector<4x1xf32>
    %87 = vector.broadcast %86 : vector<4x1xf32> to vector<4x32xf32>
    %88 = arith.subf %80, %87 : vector<4x32xf32>
    %89 = arith.mulf %88, %88 : vector<4x32xf32>
    %cst_33 = arith.constant dense<0.000000e+00> : vector<4xf32>
    %90 = vector.multi_reduction <add>, %89, %cst_33 [1] : vector<4x32xf32> to vector<4xf32>
    %91 = vector.shape_cast %90 : vector<4xf32> to vector<4x1xf32>
    %cst_34 = arith.constant 3.200000e+01 : f32
    %92 = vector.broadcast %cst_34 : f32 to vector<4x1xf32>
    %93 = arith.divf %91, %92 : vector<4x1xf32>
    %cst_35 = arith.constant 9.99999974E-6 : f32
    %94 = vector.broadcast %cst_35 : f32 to vector<4x1xf32>
    %95 = arith.addf %93, %94 : vector<4x1xf32>
    %96 = math.rsqrt %95 : vector<4x1xf32>
    %97 = vector.broadcast %96 : vector<4x1xf32> to vector<4x32xf32>
    %98 = arith.mulf %88, %97 : vector<4x32xf32>
    %99 = vector.broadcast %81 : vector<1x32xf32> to vector<4x32xf32>
    %100 = arith.mulf %98, %99 : vector<4x32xf32>
    %101 = vector.broadcast %82 : vector<1x32xf32> to vector<4x32xf32>
    %102 = arith.addf %100, %101 : vector<4x32xf32>
    %cst_36 = arith.constant 5.000000e-01 : f32
    %103 = vector.broadcast %cst_36 : f32 to vector<4x32xf32>
    %104 = arith.mulf %103, %102 : vector<4x32xf32>
    %cst_37 = arith.constant 0.707106769 : f32
    %105 = vector.broadcast %cst_37 : f32 to vector<4x32xf32>
    %106 = arith.mulf %102, %105 : vector<4x32xf32>
    %107 = math.erf %106 : vector<4x32xf32>
    %cst_38 = arith.constant 1.000000e+00 : f32
    %108 = vector.broadcast %cst_38 : f32 to vector<4x32xf32>
    %109 = arith.addf %108, %107 : vector<4x32xf32>
    %110 = arith.mulf %104, %109 : vector<4x32xf32>
    %111 = arith.addf %38, %110 : vector<4x32xf32>
    %c2 = arith.constant 2 : index
    %c0_39 = arith.constant 0 : index
    %c0_40 = arith.constant 0 : index
    %112 = vector.load %arg3[%c2, %c0_39, %c0_40] : memref<18x32x32xf32, #tpu.memory_space<vmem>>, vector<1x32x32xf32>
    %113 = vector.shape_cast %112 : vector<1x32x32xf32> to vector<32x32xf32>
    %cst_41 = arith.constant dense<0.000000e+00> : vector<4x32xf32>
    %114 = tpu.matmul %111, %113, %cst_41 {dimension_numbers = #tpu.dot_dimension_numbers<[1], [0], [0], [1], [0, 0, 1, 1], [], []>} : vector<4x32xf32>, vector<32x32xf32>, vector<4x32xf32> -> vector<4x32xf32>
    %115 = vector.extract_strided_slice %7 {offsets = [8, 0], sizes = [1, 32], strides = [1, 1]} : vector<20x32xf32> to vector<1x32xf32>
    %116 = vector.broadcast %115 : vector<1x32xf32> to vector<4x32xf32>
    %117 = arith.addf %114, %116 : vector<4x32xf32>
    %118 = vector.extract_strided_slice %7 {offsets = [9, 0], sizes = [1, 32], strides = [1, 1]} : vector<20x32xf32> to vector<1x32xf32>
    %119 = vector.extract_strided_slice %7 {offsets = [10, 0], sizes = [1, 32], strides = [1, 1]} : vector<20x32xf32> to vector<1x32xf32>
    %cst_42 = arith.constant dense<0.000000e+00> : vector<4xf32>
    %120 = vector.multi_reduction <add>, %117, %cst_42 [1] : vector<4x32xf32> to vector<4xf32>
    %121 = vector.shape_cast %120 : vector<4xf32> to vector<4x1xf32>
    %cst_43 = arith.constant 3.200000e+01 : f32
    %122 = vector.broadcast %cst_43 : f32 to vector<4x1xf32>
    %123 = arith.divf %121, %122 : vector<4x1xf32>
    %124 = vector.broadcast %123 : vector<4x1xf32> to vector<4x32xf32>
    %125 = arith.subf %117, %124 : vector<4x32xf32>
    %126 = arith.mulf %125, %125 : vector<4x32xf32>
    %cst_44 = arith.constant dense<0.000000e+00> : vector<4xf32>
    %127 = vector.multi_reduction <add>, %126, %cst_44 [1] : vector<4x32xf32> to vector<4xf32>
    %128 = vector.shape_cast %127 : vector<4xf32> to vector<4x1xf32>
    %cst_45 = arith.constant 3.200000e+01 : f32
    %129 = vector.broadcast %cst_45 : f32 to vector<4x1xf32>
    %130 = arith.divf %128, %129 : vector<4x1xf32>
    %cst_46 = arith.constant 9.99999974E-6 : f32
    %131 = vector.broadcast %cst_46 : f32 to vector<4x1xf32>
    %132 = arith.addf %130, %131 : vector<4x1xf32>
    %133 = math.rsqrt %132 : vector<4x1xf32>
    %134 = vector.broadcast %133 : vector<4x1xf32> to vector<4x32xf32>
    %135 = arith.mulf %125, %134 : vector<4x32xf32>
    %136 = vector.broadcast %118 : vector<1x32xf32> to vector<4x32xf32>
    %137 = arith.mulf %135, %136 : vector<4x32xf32>
    %138 = vector.broadcast %119 : vector<1x32xf32> to vector<4x32xf32>
    %139 = arith.addf %137, %138 : vector<4x32xf32>
    %cst_47 = arith.constant 5.000000e-01 : f32
    %140 = vector.broadcast %cst_47 : f32 to vector<4x32xf32>
    %141 = arith.mulf %140, %139 : vector<4x32xf32>
    %cst_48 = arith.constant 0.707106769 : f32
    %142 = vector.broadcast %cst_48 : f32 to vector<4x32xf32>
    %143 = arith.mulf %139, %142 : vector<4x32xf32>
    %144 = math.erf %143 : vector<4x32xf32>
    %cst_49 = arith.constant 1.000000e+00 : f32
    %145 = vector.broadcast %cst_49 : f32 to vector<4x32xf32>
    %146 = arith.addf %145, %144 : vector<4x32xf32>
    %147 = arith.mulf %141, %146 : vector<4x32xf32>
    %c3 = arith.constant 3 : index
    %c0_50 = arith.constant 0 : index
    %c0_51 = arith.constant 0 : index
    %148 = vector.load %arg3[%c3, %c0_50, %c0_51] : memref<18x32x32xf32, #tpu.memory_space<vmem>>, vector<1x32x32xf32>
    %149 = vector.shape_cast %148 : vector<1x32x32xf32> to vector<32x32xf32>
    %cst_52 = arith.constant dense<0.000000e+00> : vector<4x32xf32>
    %150 = tpu.matmul %147, %149, %cst_52 {dimension_numbers = #tpu.dot_dimension_numbers<[1], [0], [0], [1], [0, 0, 1, 1], [], []>} : vector<4x32xf32>, vector<32x32xf32>, vector<4x32xf32> -> vector<4x32xf32>
    %151 = vector.extract_strided_slice %7 {offsets = [11, 0], sizes = [1, 32], strides = [1, 1]} : vector<20x32xf32> to vector<1x32xf32>
    %152 = vector.broadcast %151 : vector<1x32xf32> to vector<4x32xf32>
    %153 = arith.addf %150, %152 : vector<4x32xf32>
    %154 = vector.extract_strided_slice %7 {offsets = [12, 0], sizes = [1, 32], strides = [1, 1]} : vector<20x32xf32> to vector<1x32xf32>
    %155 = vector.extract_strided_slice %7 {offsets = [13, 0], sizes = [1, 32], strides = [1, 1]} : vector<20x32xf32> to vector<1x32xf32>
    %cst_53 = arith.constant dense<0.000000e+00> : vector<4xf32>
    %156 = vector.multi_reduction <add>, %153, %cst_53 [1] : vector<4x32xf32> to vector<4xf32>
    %157 = vector.shape_cast %156 : vector<4xf32> to vector<4x1xf32>
    %cst_54 = arith.constant 3.200000e+01 : f32
    %158 = vector.broadcast %cst_54 : f32 to vector<4x1xf32>
    %159 = arith.divf %157, %158 : vector<4x1xf32>
    %160 = vector.broadcast %159 : vector<4x1xf32> to vector<4x32xf32>
    %161 = arith.subf %153, %160 : vector<4x32xf32>
    %162 = arith.mulf %161, %161 : vector<4x32xf32>
    %cst_55 = arith.constant dense<0.000000e+00> : vector<4xf32>
    %163 = vector.multi_reduction <add>, %162, %cst_55 [1] : vector<4x32xf32> to vector<4xf32>
    %164 = vector.shape_cast %163 : vector<4xf32> to vector<4x1xf32>
    %cst_56 = arith.constant 3.200000e+01 : f32
    %165 = vector.broadcast %cst_56 : f32 to vector<4x1xf32>
    %166 = arith.divf %164, %165 : vector<4x1xf32>
    %cst_57 = arith.constant 9.99999974E-6 : f32
    %167 = vector.broadcast %cst_57 : f32 to vector<4x1xf32>
    %168 = arith.addf %166, %167 : vector<4x1xf32>
    %169 = math.rsqrt %168 : vector<4x1xf32>
    %170 = vector.broadcast %169 : vector<4x1xf32> to vector<4x32xf32>
    %171 = arith.mulf %161, %170 : vector<4x32xf32>
    %172 = vector.broadcast %154 : vector<1x32xf32> to vector<4x32xf32>
    %173 = arith.mulf %171, %172 : vector<4x32xf32>
    %174 = vector.broadcast %155 : vector<1x32xf32> to vector<4x32xf32>
    %175 = arith.addf %173, %174 : vector<4x32xf32>
    %cst_58 = arith.constant 5.000000e-01 : f32
    %176 = vector.broadcast %cst_58 : f32 to vector<4x32xf32>
    %177 = arith.mulf %176, %175 : vector<4x32xf32>
    %cst_59 = arith.constant 0.707106769 : f32
    %178 = vector.broadcast %cst_59 : f32 to vector<4x32xf32>
    %179 = arith.mulf %175, %178 : vector<4x32xf32>
    %180 = math.erf %179 : vector<4x32xf32>
    %cst_60 = arith.constant 1.000000e+00 : f32
    %181 = vector.broadcast %cst_60 : f32 to vector<4x32xf32>
    %182 = arith.addf %181, %180 : vector<4x32xf32>
    %183 = arith.mulf %177, %182 : vector<4x32xf32>
    %184 = arith.addf %111, %183 : vector<4x32xf32>
    %c4 = arith.constant 4 : index
    %c0_61 = arith.constant 0 : index
    %c0_62 = arith.constant 0 : index
    %185 = vector.load %arg3[%c4, %c0_61, %c0_62] : memref<18x32x32xf32, #tpu.memory_space<vmem>>, vector<1x32x32xf32>
    %186 = vector.shape_cast %185 : vector<1x32x32xf32> to vector<32x32xf32>
    %cst_63 = arith.constant dense<0.000000e+00> : vector<4x32xf32>
    %187 = tpu.matmul %184, %186, %cst_63 {dimension_numbers = #tpu.dot_dimension_numbers<[1], [0], [0], [1], [0, 0, 1, 1], [], []>} : vector<4x32xf32>, vector<32x32xf32>, vector<4x32xf32> -> vector<4x32xf32>
    %188 = vector.extract_strided_slice %7 {offsets = [14, 0], sizes = [1, 32], strides = [1, 1]} : vector<20x32xf32> to vector<1x32xf32>
    %189 = vector.broadcast %188 : vector<1x32xf32> to vector<4x32xf32>
    %190 = arith.addf %187, %189 : vector<4x32xf32>
    %191 = vector.extract_strided_slice %7 {offsets = [15, 0], sizes = [1, 32], strides = [1, 1]} : vector<20x32xf32> to vector<1x32xf32>
    %192 = vector.extract_strided_slice %7 {offsets = [16, 0], sizes = [1, 32], strides = [1, 1]} : vector<20x32xf32> to vector<1x32xf32>
    %cst_64 = arith.constant dense<0.000000e+00> : vector<4xf32>
    %193 = vector.multi_reduction <add>, %190, %cst_64 [1] : vector<4x32xf32> to vector<4xf32>
    %194 = vector.shape_cast %193 : vector<4xf32> to vector<4x1xf32>
    %cst_65 = arith.constant 3.200000e+01 : f32
    %195 = vector.broadcast %cst_65 : f32 to vector<4x1xf32>
    %196 = arith.divf %194, %195 : vector<4x1xf32>
    %197 = vector.broadcast %196 : vector<4x1xf32> to vector<4x32xf32>
    %198 = arith.subf %190, %197 : vector<4x32xf32>
    %199 = arith.mulf %198, %198 : vector<4x32xf32>
    %cst_66 = arith.constant dense<0.000000e+00> : vector<4xf32>
    %200 = vector.multi_reduction <add>, %199, %cst_66 [1] : vector<4x32xf32> to vector<4xf32>
    %201 = vector.shape_cast %200 : vector<4xf32> to vector<4x1xf32>
    %cst_67 = arith.constant 3.200000e+01 : f32
    %202 = vector.broadcast %cst_67 : f32 to vector<4x1xf32>
    %203 = arith.divf %201, %202 : vector<4x1xf32>
    %cst_68 = arith.constant 9.99999974E-6 : f32
    %204 = vector.broadcast %cst_68 : f32 to vector<4x1xf32>
    %205 = arith.addf %203, %204 : vector<4x1xf32>
    %206 = math.rsqrt %205 : vector<4x1xf32>
    %207 = vector.broadcast %206 : vector<4x1xf32> to vector<4x32xf32>
    %208 = arith.mulf %198, %207 : vector<4x32xf32>
    %209 = vector.broadcast %191 : vector<1x32xf32> to vector<4x32xf32>
    %210 = arith.mulf %208, %209 : vector<4x32xf32>
    %211 = vector.broadcast %192 : vector<1x32xf32> to vector<4x32xf32>
    %212 = arith.addf %210, %211 : vector<4x32xf32>
    %cst_69 = arith.constant 5.000000e-01 : f32
    %213 = vector.broadcast %cst_69 : f32 to vector<4x32xf32>
    %214 = arith.mulf %213, %212 : vector<4x32xf32>
    %cst_70 = arith.constant 0.707106769 : f32
    %215 = vector.broadcast %cst_70 : f32 to vector<4x32xf32>
    %216 = arith.mulf %212, %215 : vector<4x32xf32>
    %217 = math.erf %216 : vector<4x32xf32>
    %cst_71 = arith.constant 1.000000e+00 : f32
    %218 = vector.broadcast %cst_71 : f32 to vector<4x32xf32>
    %219 = arith.addf %218, %217 : vector<4x32xf32>
    %220 = arith.mulf %214, %219 : vector<4x32xf32>
    %c5 = arith.constant 5 : index
    %c0_72 = arith.constant 0 : index
    %c0_73 = arith.constant 0 : index
    %221 = vector.load %arg3[%c5, %c0_72, %c0_73] : memref<18x32x32xf32, #tpu.memory_space<vmem>>, vector<1x32x32xf32>
    %222 = vector.shape_cast %221 : vector<1x32x32xf32> to vector<32x32xf32>
    %cst_74 = arith.constant dense<0.000000e+00> : vector<4x32xf32>
    %223 = tpu.matmul %220, %222, %cst_74 {dimension_numbers = #tpu.dot_dimension_numbers<[1], [0], [0], [1], [0, 0, 1, 1], [], []>} : vector<4x32xf32>, vector<32x32xf32>, vector<4x32xf32> -> vector<4x32xf32>
    %224 = vector.extract_strided_slice %7 {offsets = [17, 0], sizes = [1, 32], strides = [1, 1]} : vector<20x32xf32> to vector<1x32xf32>
    %225 = vector.broadcast %224 : vector<1x32xf32> to vector<4x32xf32>
    %226 = arith.addf %223, %225 : vector<4x32xf32>
    %227 = vector.extract_strided_slice %7 {offsets = [18, 0], sizes = [1, 32], strides = [1, 1]} : vector<20x32xf32> to vector<1x32xf32>
    %228 = vector.extract_strided_slice %7 {offsets = [19, 0], sizes = [1, 32], strides = [1, 1]} : vector<20x32xf32> to vector<1x32xf32>
    %cst_75 = arith.constant dense<0.000000e+00> : vector<4xf32>
    %229 = vector.multi_reduction <add>, %226, %cst_75 [1] : vector<4x32xf32> to vector<4xf32>
    %230 = vector.shape_cast %229 : vector<4xf32> to vector<4x1xf32>
    %cst_76 = arith.constant 3.200000e+01 : f32
    %231 = vector.broadcast %cst_76 : f32 to vector<4x1xf32>
    %232 = arith.divf %230, %231 : vector<4x1xf32>
    %233 = vector.broadcast %232 : vector<4x1xf32> to vector<4x32xf32>
    %234 = arith.subf %226, %233 : vector<4x32xf32>
    %235 = arith.mulf %234, %234 : vector<4x32xf32>
    %cst_77 = arith.constant dense<0.000000e+00> : vector<4xf32>
    %236 = vector.multi_reduction <add>, %235, %cst_77 [1] : vector<4x32xf32> to vector<4xf32>
    %237 = vector.shape_cast %236 : vector<4xf32> to vector<4x1xf32>
    %cst_78 = arith.constant 3.200000e+01 : f32
    %238 = vector.broadcast %cst_78 : f32 to vector<4x1xf32>
    %239 = arith.divf %237, %238 : vector<4x1xf32>
    %cst_79 = arith.constant 9.99999974E-6 : f32
    %240 = vector.broadcast %cst_79 : f32 to vector<4x1xf32>
    %241 = arith.addf %239, %240 : vector<4x1xf32>
    %242 = math.rsqrt %241 : vector<4x1xf32>
    %243 = vector.broadcast %242 : vector<4x1xf32> to vector<4x32xf32>
    %244 = arith.mulf %234, %243 : vector<4x32xf32>
    %245 = vector.broadcast %227 : vector<1x32xf32> to vector<4x32xf32>
    %246 = arith.mulf %244, %245 : vector<4x32xf32>
    %247 = vector.broadcast %228 : vector<1x32xf32> to vector<4x32xf32>
    %248 = arith.addf %246, %247 : vector<4x32xf32>
    %cst_80 = arith.constant 5.000000e-01 : f32
    %249 = vector.broadcast %cst_80 : f32 to vector<4x32xf32>
    %250 = arith.mulf %249, %248 : vector<4x32xf32>
    %cst_81 = arith.constant 0.707106769 : f32
    %251 = vector.broadcast %cst_81 : f32 to vector<4x32xf32>
    %252 = arith.mulf %248, %251 : vector<4x32xf32>
    %253 = math.erf %252 : vector<4x32xf32>
    %cst_82 = arith.constant 1.000000e+00 : f32
    %254 = vector.broadcast %cst_82 : f32 to vector<4x32xf32>
    %255 = arith.addf %254, %253 : vector<4x32xf32>
    %256 = arith.mulf %250, %255 : vector<4x32xf32>
    %257 = arith.addf %184, %256 : vector<4x32xf32>
    %c0_83 = arith.constant 0 : index
    %c0_84 = arith.constant 0 : index
    %c0_85 = arith.constant 0 : index
    %258 = vector.load %arg5[%c0_83, %c0_84, %c0_85] : memref<3x32x3xf32, #tpu.memory_space<vmem>>, vector<1x32x3xf32>
    %259 = vector.shape_cast %258 : vector<1x32x3xf32> to vector<32x3xf32>
    %cst_86 = arith.constant dense<0.000000e+00> : vector<4x3xf32>
    %260 = tpu.matmul %257, %259, %cst_86 {dimension_numbers = #tpu.dot_dimension_numbers<[1], [0], [0], [1], [0, 0, 1, 1], [], []>} : vector<4x32xf32>, vector<32x3xf32>, vector<4x3xf32> -> vector<4x3xf32>
    %c1_87 = arith.constant 1 : index
    %c0_88 = arith.constant 0 : index
    %c0_89 = arith.constant 0 : index
    %261 = vector.load %arg4[%c1_87, %c0_88, %c0_89] : memref<3x20x32xf32, #tpu.memory_space<vmem>>, vector<1x20x32xf32>
    %262 = vector.shape_cast %261 : vector<1x20x32xf32> to vector<20x32xf32>
    %263 = vector.extract_strided_slice %5 {offsets = [0, 32], sizes = [4, 32], strides = [1, 1]} : vector<4x96xf32> to vector<4x32xf32>
    %264 = vector.extract_strided_slice %262 {offsets = [0, 0], sizes = [1, 32], strides = [1, 1]} : vector<20x32xf32> to vector<1x32xf32>
    %265 = vector.extract_strided_slice %262 {offsets = [1, 0], sizes = [1, 32], strides = [1, 1]} : vector<20x32xf32> to vector<1x32xf32>
    %cst_90 = arith.constant dense<0.000000e+00> : vector<4xf32>
    %266 = vector.multi_reduction <add>, %263, %cst_90 [1] : vector<4x32xf32> to vector<4xf32>
    %267 = vector.shape_cast %266 : vector<4xf32> to vector<4x1xf32>
    %cst_91 = arith.constant 3.200000e+01 : f32
    %268 = vector.broadcast %cst_91 : f32 to vector<4x1xf32>
    %269 = arith.divf %267, %268 : vector<4x1xf32>
    %270 = vector.broadcast %269 : vector<4x1xf32> to vector<4x32xf32>
    %271 = arith.subf %263, %270 : vector<4x32xf32>
    %272 = arith.mulf %271, %271 : vector<4x32xf32>
    %cst_92 = arith.constant dense<0.000000e+00> : vector<4xf32>
    %273 = vector.multi_reduction <add>, %272, %cst_92 [1] : vector<4x32xf32> to vector<4xf32>
    %274 = vector.shape_cast %273 : vector<4xf32> to vector<4x1xf32>
    %cst_93 = arith.constant 3.200000e+01 : f32
    %275 = vector.broadcast %cst_93 : f32 to vector<4x1xf32>
    %276 = arith.divf %274, %275 : vector<4x1xf32>
    %cst_94 = arith.constant 9.99999974E-6 : f32
    %277 = vector.broadcast %cst_94 : f32 to vector<4x1xf32>
    %278 = arith.addf %276, %277 : vector<4x1xf32>
    %279 = math.rsqrt %278 : vector<4x1xf32>
    %280 = vector.broadcast %279 : vector<4x1xf32> to vector<4x32xf32>
    %281 = arith.mulf %271, %280 : vector<4x32xf32>
    %282 = vector.broadcast %264 : vector<1x32xf32> to vector<4x32xf32>
    %283 = arith.mulf %281, %282 : vector<4x32xf32>
    %284 = vector.broadcast %265 : vector<1x32xf32> to vector<4x32xf32>
    %285 = arith.addf %283, %284 : vector<4x32xf32>
    %cst_95 = arith.constant 5.000000e-01 : f32
    %286 = vector.broadcast %cst_95 : f32 to vector<4x32xf32>
    %287 = arith.mulf %286, %285 : vector<4x32xf32>
    %cst_96 = arith.constant 0.707106769 : f32
    %288 = vector.broadcast %cst_96 : f32 to vector<4x32xf32>
    %289 = arith.mulf %285, %288 : vector<4x32xf32>
    %290 = math.erf %289 : vector<4x32xf32>
    %cst_97 = arith.constant 1.000000e+00 : f32
    %291 = vector.broadcast %cst_97 : f32 to vector<4x32xf32>
    %292 = arith.addf %291, %290 : vector<4x32xf32>
    %293 = arith.mulf %287, %292 : vector<4x32xf32>
    %c6 = arith.constant 6 : index
    %c0_98 = arith.constant 0 : index
    %c0_99 = arith.constant 0 : index
    %294 = vector.load %arg3[%c6, %c0_98, %c0_99] : memref<18x32x32xf32, #tpu.memory_space<vmem>>, vector<1x32x32xf32>
    %295 = vector.shape_cast %294 : vector<1x32x32xf32> to vector<32x32xf32>
    %cst_100 = arith.constant dense<0.000000e+00> : vector<4x32xf32>
    %296 = tpu.matmul %293, %295, %cst_100 {dimension_numbers = #tpu.dot_dimension_numbers<[1], [0], [0], [1], [0, 0, 1, 1], [], []>} : vector<4x32xf32>, vector<32x32xf32>, vector<4x32xf32> -> vector<4x32xf32>
    %297 = vector.extract_strided_slice %262 {offsets = [2, 0], sizes = [1, 32], strides = [1, 1]} : vector<20x32xf32> to vector<1x32xf32>
    %298 = vector.broadcast %297 : vector<1x32xf32> to vector<4x32xf32>
    %299 = arith.addf %296, %298 : vector<4x32xf32>
    %300 = vector.extract_strided_slice %262 {offsets = [3, 0], sizes = [1, 32], strides = [1, 1]} : vector<20x32xf32> to vector<1x32xf32>
    %301 = vector.extract_strided_slice %262 {offsets = [4, 0], sizes = [1, 32], strides = [1, 1]} : vector<20x32xf32> to vector<1x32xf32>
    %cst_101 = arith.constant dense<0.000000e+00> : vector<4xf32>
    %302 = vector.multi_reduction <add>, %299, %cst_101 [1] : vector<4x32xf32> to vector<4xf32>
    %303 = vector.shape_cast %302 : vector<4xf32> to vector<4x1xf32>
    %cst_102 = arith.constant 3.200000e+01 : f32
    %304 = vector.broadcast %cst_102 : f32 to vector<4x1xf32>
    %305 = arith.divf %303, %304 : vector<4x1xf32>
    %306 = vector.broadcast %305 : vector<4x1xf32> to vector<4x32xf32>
    %307 = arith.subf %299, %306 : vector<4x32xf32>
    %308 = arith.mulf %307, %307 : vector<4x32xf32>
    %cst_103 = arith.constant dense<0.000000e+00> : vector<4xf32>
    %309 = vector.multi_reduction <add>, %308, %cst_103 [1] : vector<4x32xf32> to vector<4xf32>
    %310 = vector.shape_cast %309 : vector<4xf32> to vector<4x1xf32>
    %cst_104 = arith.constant 3.200000e+01 : f32
    %311 = vector.broadcast %cst_104 : f32 to vector<4x1xf32>
    %312 = arith.divf %310, %311 : vector<4x1xf32>
    %cst_105 = arith.constant 9.99999974E-6 : f32
    %313 = vector.broadcast %cst_105 : f32 to vector<4x1xf32>
    %314 = arith.addf %312, %313 : vector<4x1xf32>
    %315 = math.rsqrt %314 : vector<4x1xf32>
    %316 = vector.broadcast %315 : vector<4x1xf32> to vector<4x32xf32>
    %317 = arith.mulf %307, %316 : vector<4x32xf32>
    %318 = vector.broadcast %300 : vector<1x32xf32> to vector<4x32xf32>
    %319 = arith.mulf %317, %318 : vector<4x32xf32>
    %320 = vector.broadcast %301 : vector<1x32xf32> to vector<4x32xf32>
    %321 = arith.addf %319, %320 : vector<4x32xf32>
    %cst_106 = arith.constant 5.000000e-01 : f32
    %322 = vector.broadcast %cst_106 : f32 to vector<4x32xf32>
    %323 = arith.mulf %322, %321 : vector<4x32xf32>
    %cst_107 = arith.constant 0.707106769 : f32
    %324 = vector.broadcast %cst_107 : f32 to vector<4x32xf32>
    %325 = arith.mulf %321, %324 : vector<4x32xf32>
    %326 = math.erf %325 : vector<4x32xf32>
    %cst_108 = arith.constant 1.000000e+00 : f32
    %327 = vector.broadcast %cst_108 : f32 to vector<4x32xf32>
    %328 = arith.addf %327, %326 : vector<4x32xf32>
    %329 = arith.mulf %323, %328 : vector<4x32xf32>
    %c7 = arith.constant 7 : index
    %c0_109 = arith.constant 0 : index
    %c0_110 = arith.constant 0 : index
    %330 = vector.load %arg3[%c7, %c0_109, %c0_110] : memref<18x32x32xf32, #tpu.memory_space<vmem>>, vector<1x32x32xf32>
    %331 = vector.shape_cast %330 : vector<1x32x32xf32> to vector<32x32xf32>
    %cst_111 = arith.constant dense<0.000000e+00> : vector<4x32xf32>
    %332 = tpu.matmul %329, %331, %cst_111 {dimension_numbers = #tpu.dot_dimension_numbers<[1], [0], [0], [1], [0, 0, 1, 1], [], []>} : vector<4x32xf32>, vector<32x32xf32>, vector<4x32xf32> -> vector<4x32xf32>
    %333 = vector.extract_strided_slice %262 {offsets = [5, 0], sizes = [1, 32], strides = [1, 1]} : vector<20x32xf32> to vector<1x32xf32>
    %334 = vector.broadcast %333 : vector<1x32xf32> to vector<4x32xf32>
    %335 = arith.addf %332, %334 : vector<4x32xf32>
    %336 = vector.extract_strided_slice %262 {offsets = [6, 0], sizes = [1, 32], strides = [1, 1]} : vector<20x32xf32> to vector<1x32xf32>
    %337 = vector.extract_strided_slice %262 {offsets = [7, 0], sizes = [1, 32], strides = [1, 1]} : vector<20x32xf32> to vector<1x32xf32>
    %cst_112 = arith.constant dense<0.000000e+00> : vector<4xf32>
    %338 = vector.multi_reduction <add>, %335, %cst_112 [1] : vector<4x32xf32> to vector<4xf32>
    %339 = vector.shape_cast %338 : vector<4xf32> to vector<4x1xf32>
    %cst_113 = arith.constant 3.200000e+01 : f32
    %340 = vector.broadcast %cst_113 : f32 to vector<4x1xf32>
    %341 = arith.divf %339, %340 : vector<4x1xf32>
    %342 = vector.broadcast %341 : vector<4x1xf32> to vector<4x32xf32>
    %343 = arith.subf %335, %342 : vector<4x32xf32>
    %344 = arith.mulf %343, %343 : vector<4x32xf32>
    %cst_114 = arith.constant dense<0.000000e+00> : vector<4xf32>
    %345 = vector.multi_reduction <add>, %344, %cst_114 [1] : vector<4x32xf32> to vector<4xf32>
    %346 = vector.shape_cast %345 : vector<4xf32> to vector<4x1xf32>
    %cst_115 = arith.constant 3.200000e+01 : f32
    %347 = vector.broadcast %cst_115 : f32 to vector<4x1xf32>
    %348 = arith.divf %346, %347 : vector<4x1xf32>
    %cst_116 = arith.constant 9.99999974E-6 : f32
    %349 = vector.broadcast %cst_116 : f32 to vector<4x1xf32>
    %350 = arith.addf %348, %349 : vector<4x1xf32>
    %351 = math.rsqrt %350 : vector<4x1xf32>
    %352 = vector.broadcast %351 : vector<4x1xf32> to vector<4x32xf32>
    %353 = arith.mulf %343, %352 : vector<4x32xf32>
    %354 = vector.broadcast %336 : vector<1x32xf32> to vector<4x32xf32>
    %355 = arith.mulf %353, %354 : vector<4x32xf32>
    %356 = vector.broadcast %337 : vector<1x32xf32> to vector<4x32xf32>
    %357 = arith.addf %355, %356 : vector<4x32xf32>
    %cst_117 = arith.constant 5.000000e-01 : f32
    %358 = vector.broadcast %cst_117 : f32 to vector<4x32xf32>
    %359 = arith.mulf %358, %357 : vector<4x32xf32>
    %cst_118 = arith.constant 0.707106769 : f32
    %360 = vector.broadcast %cst_118 : f32 to vector<4x32xf32>
    %361 = arith.mulf %357, %360 : vector<4x32xf32>
    %362 = math.erf %361 : vector<4x32xf32>
    %cst_119 = arith.constant 1.000000e+00 : f32
    %363 = vector.broadcast %cst_119 : f32 to vector<4x32xf32>
    %364 = arith.addf %363, %362 : vector<4x32xf32>
    %365 = arith.mulf %359, %364 : vector<4x32xf32>
    %366 = arith.addf %293, %365 : vector<4x32xf32>
    %c8 = arith.constant 8 : index
    %c0_120 = arith.constant 0 : index
    %c0_121 = arith.constant 0 : index
    %367 = vector.load %arg3[%c8, %c0_120, %c0_121] : memref<18x32x32xf32, #tpu.memory_space<vmem>>, vector<1x32x32xf32>
    %368 = vector.shape_cast %367 : vector<1x32x32xf32> to vector<32x32xf32>
    %cst_122 = arith.constant dense<0.000000e+00> : vector<4x32xf32>
    %369 = tpu.matmul %366, %368, %cst_122 {dimension_numbers = #tpu.dot_dimension_numbers<[1], [0], [0], [1], [0, 0, 1, 1], [], []>} : vector<4x32xf32>, vector<32x32xf32>, vector<4x32xf32> -> vector<4x32xf32>
    %370 = vector.extract_strided_slice %262 {offsets = [8, 0], sizes = [1, 32], strides = [1, 1]} : vector<20x32xf32> to vector<1x32xf32>
    %371 = vector.broadcast %370 : vector<1x32xf32> to vector<4x32xf32>
    %372 = arith.addf %369, %371 : vector<4x32xf32>
    %373 = vector.extract_strided_slice %262 {offsets = [9, 0], sizes = [1, 32], strides = [1, 1]} : vector<20x32xf32> to vector<1x32xf32>
    %374 = vector.extract_strided_slice %262 {offsets = [10, 0], sizes = [1, 32], strides = [1, 1]} : vector<20x32xf32> to vector<1x32xf32>
    %cst_123 = arith.constant dense<0.000000e+00> : vector<4xf32>
    %375 = vector.multi_reduction <add>, %372, %cst_123 [1] : vector<4x32xf32> to vector<4xf32>
    %376 = vector.shape_cast %375 : vector<4xf32> to vector<4x1xf32>
    %cst_124 = arith.constant 3.200000e+01 : f32
    %377 = vector.broadcast %cst_124 : f32 to vector<4x1xf32>
    %378 = arith.divf %376, %377 : vector<4x1xf32>
    %379 = vector.broadcast %378 : vector<4x1xf32> to vector<4x32xf32>
    %380 = arith.subf %372, %379 : vector<4x32xf32>
    %381 = arith.mulf %380, %380 : vector<4x32xf32>
    %cst_125 = arith.constant dense<0.000000e+00> : vector<4xf32>
    %382 = vector.multi_reduction <add>, %381, %cst_125 [1] : vector<4x32xf32> to vector<4xf32>
    %383 = vector.shape_cast %382 : vector<4xf32> to vector<4x1xf32>
    %cst_126 = arith.constant 3.200000e+01 : f32
    %384 = vector.broadcast %cst_126 : f32 to vector<4x1xf32>
    %385 = arith.divf %383, %384 : vector<4x1xf32>
    %cst_127 = arith.constant 9.99999974E-6 : f32
    %386 = vector.broadcast %cst_127 : f32 to vector<4x1xf32>
    %387 = arith.addf %385, %386 : vector<4x1xf32>
    %388 = math.rsqrt %387 : vector<4x1xf32>
    %389 = vector.broadcast %388 : vector<4x1xf32> to vector<4x32xf32>
    %390 = arith.mulf %380, %389 : vector<4x32xf32>
    %391 = vector.broadcast %373 : vector<1x32xf32> to vector<4x32xf32>
    %392 = arith.mulf %390, %391 : vector<4x32xf32>
    %393 = vector.broadcast %374 : vector<1x32xf32> to vector<4x32xf32>
    %394 = arith.addf %392, %393 : vector<4x32xf32>
    %cst_128 = arith.constant 5.000000e-01 : f32
    %395 = vector.broadcast %cst_128 : f32 to vector<4x32xf32>
    %396 = arith.mulf %395, %394 : vector<4x32xf32>
    %cst_129 = arith.constant 0.707106769 : f32
    %397 = vector.broadcast %cst_129 : f32 to vector<4x32xf32>
    %398 = arith.mulf %394, %397 : vector<4x32xf32>
    %399 = math.erf %398 : vector<4x32xf32>
    %cst_130 = arith.constant 1.000000e+00 : f32
    %400 = vector.broadcast %cst_130 : f32 to vector<4x32xf32>
    %401 = arith.addf %400, %399 : vector<4x32xf32>
    %402 = arith.mulf %396, %401 : vector<4x32xf32>
    %c9 = arith.constant 9 : index
    %c0_131 = arith.constant 0 : index
    %c0_132 = arith.constant 0 : index
    %403 = vector.load %arg3[%c9, %c0_131, %c0_132] : memref<18x32x32xf32, #tpu.memory_space<vmem>>, vector<1x32x32xf32>
    %404 = vector.shape_cast %403 : vector<1x32x32xf32> to vector<32x32xf32>
    %cst_133 = arith.constant dense<0.000000e+00> : vector<4x32xf32>
    %405 = tpu.matmul %402, %404, %cst_133 {dimension_numbers = #tpu.dot_dimension_numbers<[1], [0], [0], [1], [0, 0, 1, 1], [], []>} : vector<4x32xf32>, vector<32x32xf32>, vector<4x32xf32> -> vector<4x32xf32>
    %406 = vector.extract_strided_slice %262 {offsets = [11, 0], sizes = [1, 32], strides = [1, 1]} : vector<20x32xf32> to vector<1x32xf32>
    %407 = vector.broadcast %406 : vector<1x32xf32> to vector<4x32xf32>
    %408 = arith.addf %405, %407 : vector<4x32xf32>
    %409 = vector.extract_strided_slice %262 {offsets = [12, 0], sizes = [1, 32], strides = [1, 1]} : vector<20x32xf32> to vector<1x32xf32>
    %410 = vector.extract_strided_slice %262 {offsets = [13, 0], sizes = [1, 32], strides = [1, 1]} : vector<20x32xf32> to vector<1x32xf32>
    %cst_134 = arith.constant dense<0.000000e+00> : vector<4xf32>
    %411 = vector.multi_reduction <add>, %408, %cst_134 [1] : vector<4x32xf32> to vector<4xf32>
    %412 = vector.shape_cast %411 : vector<4xf32> to vector<4x1xf32>
    %cst_135 = arith.constant 3.200000e+01 : f32
    %413 = vector.broadcast %cst_135 : f32 to vector<4x1xf32>
    %414 = arith.divf %412, %413 : vector<4x1xf32>
    %415 = vector.broadcast %414 : vector<4x1xf32> to vector<4x32xf32>
    %416 = arith.subf %408, %415 : vector<4x32xf32>
    %417 = arith.mulf %416, %416 : vector<4x32xf32>
    %cst_136 = arith.constant dense<0.000000e+00> : vector<4xf32>
    %418 = vector.multi_reduction <add>, %417, %cst_136 [1] : vector<4x32xf32> to vector<4xf32>
    %419 = vector.shape_cast %418 : vector<4xf32> to vector<4x1xf32>
    %cst_137 = arith.constant 3.200000e+01 : f32
    %420 = vector.broadcast %cst_137 : f32 to vector<4x1xf32>
    %421 = arith.divf %419, %420 : vector<4x1xf32>
    %cst_138 = arith.constant 9.99999974E-6 : f32
    %422 = vector.broadcast %cst_138 : f32 to vector<4x1xf32>
    %423 = arith.addf %421, %422 : vector<4x1xf32>
    %424 = math.rsqrt %423 : vector<4x1xf32>
    %425 = vector.broadcast %424 : vector<4x1xf32> to vector<4x32xf32>
    %426 = arith.mulf %416, %425 : vector<4x32xf32>
    %427 = vector.broadcast %409 : vector<1x32xf32> to vector<4x32xf32>
    %428 = arith.mulf %426, %427 : vector<4x32xf32>
    %429 = vector.broadcast %410 : vector<1x32xf32> to vector<4x32xf32>
    %430 = arith.addf %428, %429 : vector<4x32xf32>
    %cst_139 = arith.constant 5.000000e-01 : f32
    %431 = vector.broadcast %cst_139 : f32 to vector<4x32xf32>
    %432 = arith.mulf %431, %430 : vector<4x32xf32>
    %cst_140 = arith.constant 0.707106769 : f32
    %433 = vector.broadcast %cst_140 : f32 to vector<4x32xf32>
    %434 = arith.mulf %430, %433 : vector<4x32xf32>
    %435 = math.erf %434 : vector<4x32xf32>
    %cst_141 = arith.constant 1.000000e+00 : f32
    %436 = vector.broadcast %cst_141 : f32 to vector<4x32xf32>
    %437 = arith.addf %436, %435 : vector<4x32xf32>
    %438 = arith.mulf %432, %437 : vector<4x32xf32>
    %439 = arith.addf %366, %438 : vector<4x32xf32>
    %c10 = arith.constant 10 : index
    %c0_142 = arith.constant 0 : index
    %c0_143 = arith.constant 0 : index
    %440 = vector.load %arg3[%c10, %c0_142, %c0_143] : memref<18x32x32xf32, #tpu.memory_space<vmem>>, vector<1x32x32xf32>
    %441 = vector.shape_cast %440 : vector<1x32x32xf32> to vector<32x32xf32>
    %cst_144 = arith.constant dense<0.000000e+00> : vector<4x32xf32>
    %442 = tpu.matmul %439, %441, %cst_144 {dimension_numbers = #tpu.dot_dimension_numbers<[1], [0], [0], [1], [0, 0, 1, 1], [], []>} : vector<4x32xf32>, vector<32x32xf32>, vector<4x32xf32> -> vector<4x32xf32>
    %443 = vector.extract_strided_slice %262 {offsets = [14, 0], sizes = [1, 32], strides = [1, 1]} : vector<20x32xf32> to vector<1x32xf32>
    %444 = vector.broadcast %443 : vector<1x32xf32> to vector<4x32xf32>
    %445 = arith.addf %442, %444 : vector<4x32xf32>
    %446 = vector.extract_strided_slice %262 {offsets = [15, 0], sizes = [1, 32], strides = [1, 1]} : vector<20x32xf32> to vector<1x32xf32>
    %447 = vector.extract_strided_slice %262 {offsets = [16, 0], sizes = [1, 32], strides = [1, 1]} : vector<20x32xf32> to vector<1x32xf32>
    %cst_145 = arith.constant dense<0.000000e+00> : vector<4xf32>
    %448 = vector.multi_reduction <add>, %445, %cst_145 [1] : vector<4x32xf32> to vector<4xf32>
    %449 = vector.shape_cast %448 : vector<4xf32> to vector<4x1xf32>
    %cst_146 = arith.constant 3.200000e+01 : f32
    %450 = vector.broadcast %cst_146 : f32 to vector<4x1xf32>
    %451 = arith.divf %449, %450 : vector<4x1xf32>
    %452 = vector.broadcast %451 : vector<4x1xf32> to vector<4x32xf32>
    %453 = arith.subf %445, %452 : vector<4x32xf32>
    %454 = arith.mulf %453, %453 : vector<4x32xf32>
    %cst_147 = arith.constant dense<0.000000e+00> : vector<4xf32>
    %455 = vector.multi_reduction <add>, %454, %cst_147 [1] : vector<4x32xf32> to vector<4xf32>
    %456 = vector.shape_cast %455 : vector<4xf32> to vector<4x1xf32>
    %cst_148 = arith.constant 3.200000e+01 : f32
    %457 = vector.broadcast %cst_148 : f32 to vector<4x1xf32>
    %458 = arith.divf %456, %457 : vector<4x1xf32>
    %cst_149 = arith.constant 9.99999974E-6 : f32
    %459 = vector.broadcast %cst_149 : f32 to vector<4x1xf32>
    %460 = arith.addf %458, %459 : vector<4x1xf32>
    %461 = math.rsqrt %460 : vector<4x1xf32>
    %462 = vector.broadcast %461 : vector<4x1xf32> to vector<4x32xf32>
    %463 = arith.mulf %453, %462 : vector<4x32xf32>
    %464 = vector.broadcast %446 : vector<1x32xf32> to vector<4x32xf32>
    %465 = arith.mulf %463, %464 : vector<4x32xf32>
    %466 = vector.broadcast %447 : vector<1x32xf32> to vector<4x32xf32>
    %467 = arith.addf %465, %466 : vector<4x32xf32>
    %cst_150 = arith.constant 5.000000e-01 : f32
    %468 = vector.broadcast %cst_150 : f32 to vector<4x32xf32>
    %469 = arith.mulf %468, %467 : vector<4x32xf32>
    %cst_151 = arith.constant 0.707106769 : f32
    %470 = vector.broadcast %cst_151 : f32 to vector<4x32xf32>
    %471 = arith.mulf %467, %470 : vector<4x32xf32>
    %472 = math.erf %471 : vector<4x32xf32>
    %cst_152 = arith.constant 1.000000e+00 : f32
    %473 = vector.broadcast %cst_152 : f32 to vector<4x32xf32>
    %474 = arith.addf %473, %472 : vector<4x32xf32>
    %475 = arith.mulf %469, %474 : vector<4x32xf32>
    %c11 = arith.constant 11 : index
    %c0_153 = arith.constant 0 : index
    %c0_154 = arith.constant 0 : index
    %476 = vector.load %arg3[%c11, %c0_153, %c0_154] : memref<18x32x32xf32, #tpu.memory_space<vmem>>, vector<1x32x32xf32>
    %477 = vector.shape_cast %476 : vector<1x32x32xf32> to vector<32x32xf32>
    %cst_155 = arith.constant dense<0.000000e+00> : vector<4x32xf32>
    %478 = tpu.matmul %475, %477, %cst_155 {dimension_numbers = #tpu.dot_dimension_numbers<[1], [0], [0], [1], [0, 0, 1, 1], [], []>} : vector<4x32xf32>, vector<32x32xf32>, vector<4x32xf32> -> vector<4x32xf32>
    %479 = vector.extract_strided_slice %262 {offsets = [17, 0], sizes = [1, 32], strides = [1, 1]} : vector<20x32xf32> to vector<1x32xf32>
    %480 = vector.broadcast %479 : vector<1x32xf32> to vector<4x32xf32>
    %481 = arith.addf %478, %480 : vector<4x32xf32>
    %482 = vector.extract_strided_slice %262 {offsets = [18, 0], sizes = [1, 32], strides = [1, 1]} : vector<20x32xf32> to vector<1x32xf32>
    %483 = vector.extract_strided_slice %262 {offsets = [19, 0], sizes = [1, 32], strides = [1, 1]} : vector<20x32xf32> to vector<1x32xf32>
    %cst_156 = arith.constant dense<0.000000e+00> : vector<4xf32>
    %484 = vector.multi_reduction <add>, %481, %cst_156 [1] : vector<4x32xf32> to vector<4xf32>
    %485 = vector.shape_cast %484 : vector<4xf32> to vector<4x1xf32>
    %cst_157 = arith.constant 3.200000e+01 : f32
    %486 = vector.broadcast %cst_157 : f32 to vector<4x1xf32>
    %487 = arith.divf %485, %486 : vector<4x1xf32>
    %488 = vector.broadcast %487 : vector<4x1xf32> to vector<4x32xf32>
    %489 = arith.subf %481, %488 : vector<4x32xf32>
    %490 = arith.mulf %489, %489 : vector<4x32xf32>
    %cst_158 = arith.constant dense<0.000000e+00> : vector<4xf32>
    %491 = vector.multi_reduction <add>, %490, %cst_158 [1] : vector<4x32xf32> to vector<4xf32>
    %492 = vector.shape_cast %491 : vector<4xf32> to vector<4x1xf32>
    %cst_159 = arith.constant 3.200000e+01 : f32
    %493 = vector.broadcast %cst_159 : f32 to vector<4x1xf32>
    %494 = arith.divf %492, %493 : vector<4x1xf32>
    %cst_160 = arith.constant 9.99999974E-6 : f32
    %495 = vector.broadcast %cst_160 : f32 to vector<4x1xf32>
    %496 = arith.addf %494, %495 : vector<4x1xf32>
    %497 = math.rsqrt %496 : vector<4x1xf32>
    %498 = vector.broadcast %497 : vector<4x1xf32> to vector<4x32xf32>
    %499 = arith.mulf %489, %498 : vector<4x32xf32>
    %500 = vector.broadcast %482 : vector<1x32xf32> to vector<4x32xf32>
    %501 = arith.mulf %499, %500 : vector<4x32xf32>
    %502 = vector.broadcast %483 : vector<1x32xf32> to vector<4x32xf32>
    %503 = arith.addf %501, %502 : vector<4x32xf32>
    %cst_161 = arith.constant 5.000000e-01 : f32
    %504 = vector.broadcast %cst_161 : f32 to vector<4x32xf32>
    %505 = arith.mulf %504, %503 : vector<4x32xf32>
    %cst_162 = arith.constant 0.707106769 : f32
    %506 = vector.broadcast %cst_162 : f32 to vector<4x32xf32>
    %507 = arith.mulf %503, %506 : vector<4x32xf32>
    %508 = math.erf %507 : vector<4x32xf32>
    %cst_163 = arith.constant 1.000000e+00 : f32
    %509 = vector.broadcast %cst_163 : f32 to vector<4x32xf32>
    %510 = arith.addf %509, %508 : vector<4x32xf32>
    %511 = arith.mulf %505, %510 : vector<4x32xf32>
    %512 = arith.addf %439, %511 : vector<4x32xf32>
    %c1_164 = arith.constant 1 : index
    %c0_165 = arith.constant 0 : index
    %c0_166 = arith.constant 0 : index
    %513 = vector.load %arg5[%c1_164, %c0_165, %c0_166] : memref<3x32x3xf32, #tpu.memory_space<vmem>>, vector<1x32x3xf32>
    %514 = vector.shape_cast %513 : vector<1x32x3xf32> to vector<32x3xf32>
    %cst_167 = arith.constant dense<0.000000e+00> : vector<4x3xf32>
    %515 = tpu.matmul %512, %514, %cst_167 {dimension_numbers = #tpu.dot_dimension_numbers<[1], [0], [0], [1], [0, 0, 1, 1], [], []>} : vector<4x32xf32>, vector<32x3xf32>, vector<4x3xf32> -> vector<4x3xf32>
    %c2_168 = arith.constant 2 : index
    %c0_169 = arith.constant 0 : index
    %c0_170 = arith.constant 0 : index
    %516 = vector.load %arg4[%c2_168, %c0_169, %c0_170] : memref<3x20x32xf32, #tpu.memory_space<vmem>>, vector<1x20x32xf32>
    %517 = vector.shape_cast %516 : vector<1x20x32xf32> to vector<20x32xf32>
    %518 = vector.extract_strided_slice %5 {offsets = [0, 64], sizes = [4, 32], strides = [1, 1]} : vector<4x96xf32> to vector<4x32xf32>
    %519 = vector.extract_strided_slice %517 {offsets = [0, 0], sizes = [1, 32], strides = [1, 1]} : vector<20x32xf32> to vector<1x32xf32>
    %520 = vector.extract_strided_slice %517 {offsets = [1, 0], sizes = [1, 32], strides = [1, 1]} : vector<20x32xf32> to vector<1x32xf32>
    %cst_171 = arith.constant dense<0.000000e+00> : vector<4xf32>
    %521 = vector.multi_reduction <add>, %518, %cst_171 [1] : vector<4x32xf32> to vector<4xf32>
    %522 = vector.shape_cast %521 : vector<4xf32> to vector<4x1xf32>
    %cst_172 = arith.constant 3.200000e+01 : f32
    %523 = vector.broadcast %cst_172 : f32 to vector<4x1xf32>
    %524 = arith.divf %522, %523 : vector<4x1xf32>
    %525 = vector.broadcast %524 : vector<4x1xf32> to vector<4x32xf32>
    %526 = arith.subf %518, %525 : vector<4x32xf32>
    %527 = arith.mulf %526, %526 : vector<4x32xf32>
    %cst_173 = arith.constant dense<0.000000e+00> : vector<4xf32>
    %528 = vector.multi_reduction <add>, %527, %cst_173 [1] : vector<4x32xf32> to vector<4xf32>
    %529 = vector.shape_cast %528 : vector<4xf32> to vector<4x1xf32>
    %cst_174 = arith.constant 3.200000e+01 : f32
    %530 = vector.broadcast %cst_174 : f32 to vector<4x1xf32>
    %531 = arith.divf %529, %530 : vector<4x1xf32>
    %cst_175 = arith.constant 9.99999974E-6 : f32
    %532 = vector.broadcast %cst_175 : f32 to vector<4x1xf32>
    %533 = arith.addf %531, %532 : vector<4x1xf32>
    %534 = math.rsqrt %533 : vector<4x1xf32>
    %535 = vector.broadcast %534 : vector<4x1xf32> to vector<4x32xf32>
    %536 = arith.mulf %526, %535 : vector<4x32xf32>
    %537 = vector.broadcast %519 : vector<1x32xf32> to vector<4x32xf32>
    %538 = arith.mulf %536, %537 : vector<4x32xf32>
    %539 = vector.broadcast %520 : vector<1x32xf32> to vector<4x32xf32>
    %540 = arith.addf %538, %539 : vector<4x32xf32>
    %cst_176 = arith.constant 5.000000e-01 : f32
    %541 = vector.broadcast %cst_176 : f32 to vector<4x32xf32>
    %542 = arith.mulf %541, %540 : vector<4x32xf32>
    %cst_177 = arith.constant 0.707106769 : f32
    %543 = vector.broadcast %cst_177 : f32 to vector<4x32xf32>
    %544 = arith.mulf %540, %543 : vector<4x32xf32>
    %545 = math.erf %544 : vector<4x32xf32>
    %cst_178 = arith.constant 1.000000e+00 : f32
    %546 = vector.broadcast %cst_178 : f32 to vector<4x32xf32>
    %547 = arith.addf %546, %545 : vector<4x32xf32>
    %548 = arith.mulf %542, %547 : vector<4x32xf32>
    %c12 = arith.constant 12 : index
    %c0_179 = arith.constant 0 : index
    %c0_180 = arith.constant 0 : index
    %549 = vector.load %arg3[%c12, %c0_179, %c0_180] : memref<18x32x32xf32, #tpu.memory_space<vmem>>, vector<1x32x32xf32>
    %550 = vector.shape_cast %549 : vector<1x32x32xf32> to vector<32x32xf32>
    %cst_181 = arith.constant dense<0.000000e+00> : vector<4x32xf32>
    %551 = tpu.matmul %548, %550, %cst_181 {dimension_numbers = #tpu.dot_dimension_numbers<[1], [0], [0], [1], [0, 0, 1, 1], [], []>} : vector<4x32xf32>, vector<32x32xf32>, vector<4x32xf32> -> vector<4x32xf32>
    %552 = vector.extract_strided_slice %517 {offsets = [2, 0], sizes = [1, 32], strides = [1, 1]} : vector<20x32xf32> to vector<1x32xf32>
    %553 = vector.broadcast %552 : vector<1x32xf32> to vector<4x32xf32>
    %554 = arith.addf %551, %553 : vector<4x32xf32>
    %555 = vector.extract_strided_slice %517 {offsets = [3, 0], sizes = [1, 32], strides = [1, 1]} : vector<20x32xf32> to vector<1x32xf32>
    %556 = vector.extract_strided_slice %517 {offsets = [4, 0], sizes = [1, 32], strides = [1, 1]} : vector<20x32xf32> to vector<1x32xf32>
    %cst_182 = arith.constant dense<0.000000e+00> : vector<4xf32>
    %557 = vector.multi_reduction <add>, %554, %cst_182 [1] : vector<4x32xf32> to vector<4xf32>
    %558 = vector.shape_cast %557 : vector<4xf32> to vector<4x1xf32>
    %cst_183 = arith.constant 3.200000e+01 : f32
    %559 = vector.broadcast %cst_183 : f32 to vector<4x1xf32>
    %560 = arith.divf %558, %559 : vector<4x1xf32>
    %561 = vector.broadcast %560 : vector<4x1xf32> to vector<4x32xf32>
    %562 = arith.subf %554, %561 : vector<4x32xf32>
    %563 = arith.mulf %562, %562 : vector<4x32xf32>
    %cst_184 = arith.constant dense<0.000000e+00> : vector<4xf32>
    %564 = vector.multi_reduction <add>, %563, %cst_184 [1] : vector<4x32xf32> to vector<4xf32>
    %565 = vector.shape_cast %564 : vector<4xf32> to vector<4x1xf32>
    %cst_185 = arith.constant 3.200000e+01 : f32
    %566 = vector.broadcast %cst_185 : f32 to vector<4x1xf32>
    %567 = arith.divf %565, %566 : vector<4x1xf32>
    %cst_186 = arith.constant 9.99999974E-6 : f32
    %568 = vector.broadcast %cst_186 : f32 to vector<4x1xf32>
    %569 = arith.addf %567, %568 : vector<4x1xf32>
    %570 = math.rsqrt %569 : vector<4x1xf32>
    %571 = vector.broadcast %570 : vector<4x1xf32> to vector<4x32xf32>
    %572 = arith.mulf %562, %571 : vector<4x32xf32>
    %573 = vector.broadcast %555 : vector<1x32xf32> to vector<4x32xf32>
    %574 = arith.mulf %572, %573 : vector<4x32xf32>
    %575 = vector.broadcast %556 : vector<1x32xf32> to vector<4x32xf32>
    %576 = arith.addf %574, %575 : vector<4x32xf32>
    %cst_187 = arith.constant 5.000000e-01 : f32
    %577 = vector.broadcast %cst_187 : f32 to vector<4x32xf32>
    %578 = arith.mulf %577, %576 : vector<4x32xf32>
    %cst_188 = arith.constant 0.707106769 : f32
    %579 = vector.broadcast %cst_188 : f32 to vector<4x32xf32>
    %580 = arith.mulf %576, %579 : vector<4x32xf32>
    %581 = math.erf %580 : vector<4x32xf32>
    %cst_189 = arith.constant 1.000000e+00 : f32
    %582 = vector.broadcast %cst_189 : f32 to vector<4x32xf32>
    %583 = arith.addf %582, %581 : vector<4x32xf32>
    %584 = arith.mulf %578, %583 : vector<4x32xf32>
    %c13 = arith.constant 13 : index
    %c0_190 = arith.constant 0 : index
    %c0_191 = arith.constant 0 : index
    %585 = vector.load %arg3[%c13, %c0_190, %c0_191] : memref<18x32x32xf32, #tpu.memory_space<vmem>>, vector<1x32x32xf32>
    %586 = vector.shape_cast %585 : vector<1x32x32xf32> to vector<32x32xf32>
    %cst_192 = arith.constant dense<0.000000e+00> : vector<4x32xf32>
    %587 = tpu.matmul %584, %586, %cst_192 {dimension_numbers = #tpu.dot_dimension_numbers<[1], [0], [0], [1], [0, 0, 1, 1], [], []>} : vector<4x32xf32>, vector<32x32xf32>, vector<4x32xf32> -> vector<4x32xf32>
    %588 = vector.extract_strided_slice %517 {offsets = [5, 0], sizes = [1, 32], strides = [1, 1]} : vector<20x32xf32> to vector<1x32xf32>
    %589 = vector.broadcast %588 : vector<1x32xf32> to vector<4x32xf32>
    %590 = arith.addf %587, %589 : vector<4x32xf32>
    %591 = vector.extract_strided_slice %517 {offsets = [6, 0], sizes = [1, 32], strides = [1, 1]} : vector<20x32xf32> to vector<1x32xf32>
    %592 = vector.extract_strided_slice %517 {offsets = [7, 0], sizes = [1, 32], strides = [1, 1]} : vector<20x32xf32> to vector<1x32xf32>
    %cst_193 = arith.constant dense<0.000000e+00> : vector<4xf32>
    %593 = vector.multi_reduction <add>, %590, %cst_193 [1] : vector<4x32xf32> to vector<4xf32>
    %594 = vector.shape_cast %593 : vector<4xf32> to vector<4x1xf32>
    %cst_194 = arith.constant 3.200000e+01 : f32
    %595 = vector.broadcast %cst_194 : f32 to vector<4x1xf32>
    %596 = arith.divf %594, %595 : vector<4x1xf32>
    %597 = vector.broadcast %596 : vector<4x1xf32> to vector<4x32xf32>
    %598 = arith.subf %590, %597 : vector<4x32xf32>
    %599 = arith.mulf %598, %598 : vector<4x32xf32>
    %cst_195 = arith.constant dense<0.000000e+00> : vector<4xf32>
    %600 = vector.multi_reduction <add>, %599, %cst_195 [1] : vector<4x32xf32> to vector<4xf32>
    %601 = vector.shape_cast %600 : vector<4xf32> to vector<4x1xf32>
    %cst_196 = arith.constant 3.200000e+01 : f32
    %602 = vector.broadcast %cst_196 : f32 to vector<4x1xf32>
    %603 = arith.divf %601, %602 : vector<4x1xf32>
    %cst_197 = arith.constant 9.99999974E-6 : f32
    %604 = vector.broadcast %cst_197 : f32 to vector<4x1xf32>
    %605 = arith.addf %603, %604 : vector<4x1xf32>
    %606 = math.rsqrt %605 : vector<4x1xf32>
    %607 = vector.broadcast %606 : vector<4x1xf32> to vector<4x32xf32>
    %608 = arith.mulf %598, %607 : vector<4x32xf32>
    %609 = vector.broadcast %591 : vector<1x32xf32> to vector<4x32xf32>
    %610 = arith.mulf %608, %609 : vector<4x32xf32>
    %611 = vector.broadcast %592 : vector<1x32xf32> to vector<4x32xf32>
    %612 = arith.addf %610, %611 : vector<4x32xf32>
    %cst_198 = arith.constant 5.000000e-01 : f32
    %613 = vector.broadcast %cst_198 : f32 to vector<4x32xf32>
    %614 = arith.mulf %613, %612 : vector<4x32xf32>
    %cst_199 = arith.constant 0.707106769 : f32
    %615 = vector.broadcast %cst_199 : f32 to vector<4x32xf32>
    %616 = arith.mulf %612, %615 : vector<4x32xf32>
    %617 = math.erf %616 : vector<4x32xf32>
    %cst_200 = arith.constant 1.000000e+00 : f32
    %618 = vector.broadcast %cst_200 : f32 to vector<4x32xf32>
    %619 = arith.addf %618, %617 : vector<4x32xf32>
    %620 = arith.mulf %614, %619 : vector<4x32xf32>
    %621 = arith.addf %548, %620 : vector<4x32xf32>
    %c14 = arith.constant 14 : index
    %c0_201 = arith.constant 0 : index
    %c0_202 = arith.constant 0 : index
    %622 = vector.load %arg3[%c14, %c0_201, %c0_202] : memref<18x32x32xf32, #tpu.memory_space<vmem>>, vector<1x32x32xf32>
    %623 = vector.shape_cast %622 : vector<1x32x32xf32> to vector<32x32xf32>
    %cst_203 = arith.constant dense<0.000000e+00> : vector<4x32xf32>
    %624 = tpu.matmul %621, %623, %cst_203 {dimension_numbers = #tpu.dot_dimension_numbers<[1], [0], [0], [1], [0, 0, 1, 1], [], []>} : vector<4x32xf32>, vector<32x32xf32>, vector<4x32xf32> -> vector<4x32xf32>
    %625 = vector.extract_strided_slice %517 {offsets = [8, 0], sizes = [1, 32], strides = [1, 1]} : vector<20x32xf32> to vector<1x32xf32>
    %626 = vector.broadcast %625 : vector<1x32xf32> to vector<4x32xf32>
    %627 = arith.addf %624, %626 : vector<4x32xf32>
    %628 = vector.extract_strided_slice %517 {offsets = [9, 0], sizes = [1, 32], strides = [1, 1]} : vector<20x32xf32> to vector<1x32xf32>
    %629 = vector.extract_strided_slice %517 {offsets = [10, 0], sizes = [1, 32], strides = [1, 1]} : vector<20x32xf32> to vector<1x32xf32>
    %cst_204 = arith.constant dense<0.000000e+00> : vector<4xf32>
    %630 = vector.multi_reduction <add>, %627, %cst_204 [1] : vector<4x32xf32> to vector<4xf32>
    %631 = vector.shape_cast %630 : vector<4xf32> to vector<4x1xf32>
    %cst_205 = arith.constant 3.200000e+01 : f32
    %632 = vector.broadcast %cst_205 : f32 to vector<4x1xf32>
    %633 = arith.divf %631, %632 : vector<4x1xf32>
    %634 = vector.broadcast %633 : vector<4x1xf32> to vector<4x32xf32>
    %635 = arith.subf %627, %634 : vector<4x32xf32>
    %636 = arith.mulf %635, %635 : vector<4x32xf32>
    %cst_206 = arith.constant dense<0.000000e+00> : vector<4xf32>
    %637 = vector.multi_reduction <add>, %636, %cst_206 [1] : vector<4x32xf32> to vector<4xf32>
    %638 = vector.shape_cast %637 : vector<4xf32> to vector<4x1xf32>
    %cst_207 = arith.constant 3.200000e+01 : f32
    %639 = vector.broadcast %cst_207 : f32 to vector<4x1xf32>
    %640 = arith.divf %638, %639 : vector<4x1xf32>
    %cst_208 = arith.constant 9.99999974E-6 : f32
    %641 = vector.broadcast %cst_208 : f32 to vector<4x1xf32>
    %642 = arith.addf %640, %641 : vector<4x1xf32>
    %643 = math.rsqrt %642 : vector<4x1xf32>
    %644 = vector.broadcast %643 : vector<4x1xf32> to vector<4x32xf32>
    %645 = arith.mulf %635, %644 : vector<4x32xf32>
    %646 = vector.broadcast %628 : vector<1x32xf32> to vector<4x32xf32>
    %647 = arith.mulf %645, %646 : vector<4x32xf32>
    %648 = vector.broadcast %629 : vector<1x32xf32> to vector<4x32xf32>
    %649 = arith.addf %647, %648 : vector<4x32xf32>
    %cst_209 = arith.constant 5.000000e-01 : f32
    %650 = vector.broadcast %cst_209 : f32 to vector<4x32xf32>
    %651 = arith.mulf %650, %649 : vector<4x32xf32>
    %cst_210 = arith.constant 0.707106769 : f32
    %652 = vector.broadcast %cst_210 : f32 to vector<4x32xf32>
    %653 = arith.mulf %649, %652 : vector<4x32xf32>
    %654 = math.erf %653 : vector<4x32xf32>
    %cst_211 = arith.constant 1.000000e+00 : f32
    %655 = vector.broadcast %cst_211 : f32 to vector<4x32xf32>
    %656 = arith.addf %655, %654 : vector<4x32xf32>
    %657 = arith.mulf %651, %656 : vector<4x32xf32>
    %c15 = arith.constant 15 : index
    %c0_212 = arith.constant 0 : index
    %c0_213 = arith.constant 0 : index
    %658 = vector.load %arg3[%c15, %c0_212, %c0_213] : memref<18x32x32xf32, #tpu.memory_space<vmem>>, vector<1x32x32xf32>
    %659 = vector.shape_cast %658 : vector<1x32x32xf32> to vector<32x32xf32>
    %cst_214 = arith.constant dense<0.000000e+00> : vector<4x32xf32>
    %660 = tpu.matmul %657, %659, %cst_214 {dimension_numbers = #tpu.dot_dimension_numbers<[1], [0], [0], [1], [0, 0, 1, 1], [], []>} : vector<4x32xf32>, vector<32x32xf32>, vector<4x32xf32> -> vector<4x32xf32>
    %661 = vector.extract_strided_slice %517 {offsets = [11, 0], sizes = [1, 32], strides = [1, 1]} : vector<20x32xf32> to vector<1x32xf32>
    %662 = vector.broadcast %661 : vector<1x32xf32> to vector<4x32xf32>
    %663 = arith.addf %660, %662 : vector<4x32xf32>
    %664 = vector.extract_strided_slice %517 {offsets = [12, 0], sizes = [1, 32], strides = [1, 1]} : vector<20x32xf32> to vector<1x32xf32>
    %665 = vector.extract_strided_slice %517 {offsets = [13, 0], sizes = [1, 32], strides = [1, 1]} : vector<20x32xf32> to vector<1x32xf32>
    %cst_215 = arith.constant dense<0.000000e+00> : vector<4xf32>
    %666 = vector.multi_reduction <add>, %663, %cst_215 [1] : vector<4x32xf32> to vector<4xf32>
    %667 = vector.shape_cast %666 : vector<4xf32> to vector<4x1xf32>
    %cst_216 = arith.constant 3.200000e+01 : f32
    %668 = vector.broadcast %cst_216 : f32 to vector<4x1xf32>
    %669 = arith.divf %667, %668 : vector<4x1xf32>
    %670 = vector.broadcast %669 : vector<4x1xf32> to vector<4x32xf32>
    %671 = arith.subf %663, %670 : vector<4x32xf32>
    %672 = arith.mulf %671, %671 : vector<4x32xf32>
    %cst_217 = arith.constant dense<0.000000e+00> : vector<4xf32>
    %673 = vector.multi_reduction <add>, %672, %cst_217 [1] : vector<4x32xf32> to vector<4xf32>
    %674 = vector.shape_cast %673 : vector<4xf32> to vector<4x1xf32>
    %cst_218 = arith.constant 3.200000e+01 : f32
    %675 = vector.broadcast %cst_218 : f32 to vector<4x1xf32>
    %676 = arith.divf %674, %675 : vector<4x1xf32>
    %cst_219 = arith.constant 9.99999974E-6 : f32
    %677 = vector.broadcast %cst_219 : f32 to vector<4x1xf32>
    %678 = arith.addf %676, %677 : vector<4x1xf32>
    %679 = math.rsqrt %678 : vector<4x1xf32>
    %680 = vector.broadcast %679 : vector<4x1xf32> to vector<4x32xf32>
    %681 = arith.mulf %671, %680 : vector<4x32xf32>
    %682 = vector.broadcast %664 : vector<1x32xf32> to vector<4x32xf32>
    %683 = arith.mulf %681, %682 : vector<4x32xf32>
    %684 = vector.broadcast %665 : vector<1x32xf32> to vector<4x32xf32>
    %685 = arith.addf %683, %684 : vector<4x32xf32>
    %cst_220 = arith.constant 5.000000e-01 : f32
    %686 = vector.broadcast %cst_220 : f32 to vector<4x32xf32>
    %687 = arith.mulf %686, %685 : vector<4x32xf32>
    %cst_221 = arith.constant 0.707106769 : f32
    %688 = vector.broadcast %cst_221 : f32 to vector<4x32xf32>
    %689 = arith.mulf %685, %688 : vector<4x32xf32>
    %690 = math.erf %689 : vector<4x32xf32>
    %cst_222 = arith.constant 1.000000e+00 : f32
    %691 = vector.broadcast %cst_222 : f32 to vector<4x32xf32>
    %692 = arith.addf %691, %690 : vector<4x32xf32>
    %693 = arith.mulf %687, %692 : vector<4x32xf32>
    %694 = arith.addf %621, %693 : vector<4x32xf32>
    %c16 = arith.constant 16 : index
    %c0_223 = arith.constant 0 : index
    %c0_224 = arith.constant 0 : index
    %695 = vector.load %arg3[%c16, %c0_223, %c0_224] : memref<18x32x32xf32, #tpu.memory_space<vmem>>, vector<1x32x32xf32>
    %696 = vector.shape_cast %695 : vector<1x32x32xf32> to vector<32x32xf32>
    %cst_225 = arith.constant dense<0.000000e+00> : vector<4x32xf32>
    %697 = tpu.matmul %694, %696, %cst_225 {dimension_numbers = #tpu.dot_dimension_numbers<[1], [0], [0], [1], [0, 0, 1, 1], [], []>} : vector<4x32xf32>, vector<32x32xf32>, vector<4x32xf32> -> vector<4x32xf32>
    %698 = vector.extract_strided_slice %517 {offsets = [14, 0], sizes = [1, 32], strides = [1, 1]} : vector<20x32xf32> to vector<1x32xf32>
    %699 = vector.broadcast %698 : vector<1x32xf32> to vector<4x32xf32>
    %700 = arith.addf %697, %699 : vector<4x32xf32>
    %701 = vector.extract_strided_slice %517 {offsets = [15, 0], sizes = [1, 32], strides = [1, 1]} : vector<20x32xf32> to vector<1x32xf32>
    %702 = vector.extract_strided_slice %517 {offsets = [16, 0], sizes = [1, 32], strides = [1, 1]} : vector<20x32xf32> to vector<1x32xf32>
    %cst_226 = arith.constant dense<0.000000e+00> : vector<4xf32>
    %703 = vector.multi_reduction <add>, %700, %cst_226 [1] : vector<4x32xf32> to vector<4xf32>
    %704 = vector.shape_cast %703 : vector<4xf32> to vector<4x1xf32>
    %cst_227 = arith.constant 3.200000e+01 : f32
    %705 = vector.broadcast %cst_227 : f32 to vector<4x1xf32>
    %706 = arith.divf %704, %705 : vector<4x1xf32>
    %707 = vector.broadcast %706 : vector<4x1xf32> to vector<4x32xf32>
    %708 = arith.subf %700, %707 : vector<4x32xf32>
    %709 = arith.mulf %708, %708 : vector<4x32xf32>
    %cst_228 = arith.constant dense<0.000000e+00> : vector<4xf32>
    %710 = vector.multi_reduction <add>, %709, %cst_228 [1] : vector<4x32xf32> to vector<4xf32>
    %711 = vector.shape_cast %710 : vector<4xf32> to vector<4x1xf32>
    %cst_229 = arith.constant 3.200000e+01 : f32
    %712 = vector.broadcast %cst_229 : f32 to vector<4x1xf32>
    %713 = arith.divf %711, %712 : vector<4x1xf32>
    %cst_230 = arith.constant 9.99999974E-6 : f32
    %714 = vector.broadcast %cst_230 : f32 to vector<4x1xf32>
    %715 = arith.addf %713, %714 : vector<4x1xf32>
    %716 = math.rsqrt %715 : vector<4x1xf32>
    %717 = vector.broadcast %716 : vector<4x1xf32> to vector<4x32xf32>
    %718 = arith.mulf %708, %717 : vector<4x32xf32>
    %719 = vector.broadcast %701 : vector<1x32xf32> to vector<4x32xf32>
    %720 = arith.mulf %718, %719 : vector<4x32xf32>
    %721 = vector.broadcast %702 : vector<1x32xf32> to vector<4x32xf32>
    %722 = arith.addf %720, %721 : vector<4x32xf32>
    %cst_231 = arith.constant 5.000000e-01 : f32
    %723 = vector.broadcast %cst_231 : f32 to vector<4x32xf32>
    %724 = arith.mulf %723, %722 : vector<4x32xf32>
    %cst_232 = arith.constant 0.707106769 : f32
    %725 = vector.broadcast %cst_232 : f32 to vector<4x32xf32>
    %726 = arith.mulf %722, %725 : vector<4x32xf32>
    %727 = math.erf %726 : vector<4x32xf32>
    %cst_233 = arith.constant 1.000000e+00 : f32
    %728 = vector.broadcast %cst_233 : f32 to vector<4x32xf32>
    %729 = arith.addf %728, %727 : vector<4x32xf32>
    %730 = arith.mulf %724, %729 : vector<4x32xf32>
    %c17 = arith.constant 17 : index
    %c0_234 = arith.constant 0 : index
    %c0_235 = arith.constant 0 : index
    %731 = vector.load %arg3[%c17, %c0_234, %c0_235] : memref<18x32x32xf32, #tpu.memory_space<vmem>>, vector<1x32x32xf32>
    %732 = vector.shape_cast %731 : vector<1x32x32xf32> to vector<32x32xf32>
    %cst_236 = arith.constant dense<0.000000e+00> : vector<4x32xf32>
    %733 = tpu.matmul %730, %732, %cst_236 {dimension_numbers = #tpu.dot_dimension_numbers<[1], [0], [0], [1], [0, 0, 1, 1], [], []>} : vector<4x32xf32>, vector<32x32xf32>, vector<4x32xf32> -> vector<4x32xf32>
    %734 = vector.extract_strided_slice %517 {offsets = [17, 0], sizes = [1, 32], strides = [1, 1]} : vector<20x32xf32> to vector<1x32xf32>
    %735 = vector.broadcast %734 : vector<1x32xf32> to vector<4x32xf32>
    %736 = arith.addf %733, %735 : vector<4x32xf32>
    %737 = vector.extract_strided_slice %517 {offsets = [18, 0], sizes = [1, 32], strides = [1, 1]} : vector<20x32xf32> to vector<1x32xf32>
    %738 = vector.extract_strided_slice %517 {offsets = [19, 0], sizes = [1, 32], strides = [1, 1]} : vector<20x32xf32> to vector<1x32xf32>
    %cst_237 = arith.constant dense<0.000000e+00> : vector<4xf32>
    %739 = vector.multi_reduction <add>, %736, %cst_237 [1] : vector<4x32xf32> to vector<4xf32>
    %740 = vector.shape_cast %739 : vector<4xf32> to vector<4x1xf32>
    %cst_238 = arith.constant 3.200000e+01 : f32
    %741 = vector.broadcast %cst_238 : f32 to vector<4x1xf32>
    %742 = arith.divf %740, %741 : vector<4x1xf32>
    %743 = vector.broadcast %742 : vector<4x1xf32> to vector<4x32xf32>
    %744 = arith.subf %736, %743 : vector<4x32xf32>
    %745 = arith.mulf %744, %744 : vector<4x32xf32>
    %cst_239 = arith.constant dense<0.000000e+00> : vector<4xf32>
    %746 = vector.multi_reduction <add>, %745, %cst_239 [1] : vector<4x32xf32> to vector<4xf32>
    %747 = vector.shape_cast %746 : vector<4xf32> to vector<4x1xf32>
    %cst_240 = arith.constant 3.200000e+01 : f32
    %748 = vector.broadcast %cst_240 : f32 to vector<4x1xf32>
    %749 = arith.divf %747, %748 : vector<4x1xf32>
    %cst_241 = arith.constant 9.99999974E-6 : f32
    %750 = vector.broadcast %cst_241 : f32 to vector<4x1xf32>
    %751 = arith.addf %749, %750 : vector<4x1xf32>
    %752 = math.rsqrt %751 : vector<4x1xf32>
    %753 = vector.broadcast %752 : vector<4x1xf32> to vector<4x32xf32>
    %754 = arith.mulf %744, %753 : vector<4x32xf32>
    %755 = vector.broadcast %737 : vector<1x32xf32> to vector<4x32xf32>
    %756 = arith.mulf %754, %755 : vector<4x32xf32>
    %757 = vector.broadcast %738 : vector<1x32xf32> to vector<4x32xf32>
    %758 = arith.addf %756, %757 : vector<4x32xf32>
    %cst_242 = arith.constant 5.000000e-01 : f32
    %759 = vector.broadcast %cst_242 : f32 to vector<4x32xf32>
    %760 = arith.mulf %759, %758 : vector<4x32xf32>
    %cst_243 = arith.constant 0.707106769 : f32
    %761 = vector.broadcast %cst_243 : f32 to vector<4x32xf32>
    %762 = arith.mulf %758, %761 : vector<4x32xf32>
    %763 = math.erf %762 : vector<4x32xf32>
    %cst_244 = arith.constant 1.000000e+00 : f32
    %764 = vector.broadcast %cst_244 : f32 to vector<4x32xf32>
    %765 = arith.addf %764, %763 : vector<4x32xf32>
    %766 = arith.mulf %760, %765 : vector<4x32xf32>
    %767 = arith.addf %694, %766 : vector<4x32xf32>
    %c2_245 = arith.constant 2 : index
    %c0_246 = arith.constant 0 : index
    %c0_247 = arith.constant 0 : index
    %768 = vector.load %arg5[%c2_245, %c0_246, %c0_247] : memref<3x32x3xf32, #tpu.memory_space<vmem>>, vector<1x32x3xf32>
    %769 = vector.shape_cast %768 : vector<1x32x3xf32> to vector<32x3xf32>
    %cst_248 = arith.constant dense<0.000000e+00> : vector<4x3xf32>
    %770 = tpu.matmul %767, %769, %cst_248 {dimension_numbers = #tpu.dot_dimension_numbers<[1], [0], [0], [1], [0, 0, 1, 1], [], []>} : vector<4x32xf32>, vector<32x3xf32>, vector<4x3xf32> -> vector<4x3xf32>
    %771 = tpu.concatenate %260, %515, %770 in 1 : vector<4x3xf32>, vector<4x3xf32>, vector<4x3xf32> -> vector<4x9xf32>
    %c0_249 = arith.constant 0 : index
    %c0_250 = arith.constant 0 : index
    %772 = vector.load %arg6[%c0_249, %c0_250] : memref<1x9xf32, #tpu.memory_space<vmem>>, vector<1x9xf32>
    %773 = vector.broadcast %772 : vector<1x9xf32> to vector<4x9xf32>
    %774 = arith.addf %771, %773 : vector<4x9xf32>
    %c0_251 = arith.constant 0 : index
    %c0_252 = arith.constant 0 : index
    %775 = vector.load %arg7[%c0_251, %c0_252] : memref<4x9xf32, #tpu.memory_space<vmem>>, vector<4x9xf32>
    tpu.vector_store %arg7[%c0_251, %c0_252], %774 {strides = array<i32>} : memref<4x9xf32, #tpu.memory_space<vmem>>, vector<4x9xf32>,
    return
  }
}

</mosaic_0001>

<llo_original>
// kernel: squeeze.2
$region0: #{squeeze.2}
  %s0 = inlined_call_operand.vmem [shape: f32[3,32], index: 0, kind: input, shape index: {}]
  %s1 = inlined_call_operand.vmem [shape: f32[1,96], index: 1, kind: output, shape index: {}]
  $region1: #{squeeze.2} parent=0
    #allocation0 [shape = 'u8[4096]{0}', space=vmem, size = 0x1000, scoped, tag = 'scoped mem for output reshape']
    #allocation1 [shape = 'u8[4096]{0}', space=vmem, size = 0x1000, scoped, tag = 'scoped mem for input reshape']
    %s3 = sshllo.u32 0, 4
    %v4 = vld [vmem:[%s0] sm:%s3]
    %5 = vst [vmem:[#allocation1] sm:%s3] %v4
    %v6 = vld [vmem:[#allocation1] sm:$0x1]
    %vm7 = vcmask 261120
    %8 = vst.msk [vmem:[#allocation0] sm:$0x1] %vm7, %v6
    %s9 = scalar_lea.vmem [#allocation1], 2
    %v10 = vld [vmem:[%s9] sm:$0x1]
    %11 = vrot.lane.b32.xlu0 %v10, 64
    %v12 = vpop.permute.xlu0 %11
    %vm13 = vcmask 785920
    %14 = vst.msk [vmem:[#allocation0] sm:$0x1] %vm13, %v12
    %s15 = scalar_lea.vmem [#allocation1], 1
    %v16 = vld [vmem:[%s15] sm:$0x1]
    %17 = vrot.lane.b32.xlu0 %v16, 32
    %v18 = vpop.permute.xlu0 %17
    %vm19 = vcmask 523520
    %20 = vst.msk [vmem:[#allocation0] sm:$0x1] %vm19, %v18
    %s22 = sshllo.u32 0, 1
    %v24 = vld [vmem:[#allocation0] sm:%s22]
    %s25 = sshllo.u32 0, 1
    %26 = vst [vmem:[%s1] sm:%s25] %v24

// kernel: squeeze.3
$region0: #{squeeze.3}
  %s0 = inlined_call_operand.vmem [shape: f32[3,3], index: 0, kind: input, shape index: {}]
  %s1 = inlined_call_operand.vmem [shape: f32[1,9], index: 1, kind: output, shape index: {}]
  $region1: #{squeeze.3} parent=0
    #allocation0 [shape = 'u8[4096]{0}', space=vmem, size = 0x1000, scoped, tag = 'scoped mem for output reshape']
    #allocation1 [shape = 'u8[4096]{0}', space=vmem, size = 0x1000, scoped, tag = 'scoped mem for input reshape']
    %s3 = sshllo.u32 0, 4
    %v4 = vld [vmem:[%s0] sm:%s3]
    %5 = vst [vmem:[#allocation1] sm:%s3] %v4
    %v6 = vld [vmem:[#allocation1] sm:$0x1]
    %vm7 = vcmask 23552
    %8 = vst.msk [vmem:[#allocation0] sm:$0x1] %vm7, %v6
    %s9 = scalar_lea.vmem [#allocation1], 2
    %v10 = vld [vmem:[%s9] sm:$0x1]
    %11 = vrot.lane.b32.xlu0 %v10, 6
    %v12 = vpop.permute.xlu0 %11
    %vm13 = vcmask 72752
    %14 = vst.msk [vmem:[#allocation0] sm:$0x1] %vm13, %v12
    %s15 = scalar_lea.vmem [#allocation1], 1
    %v16 = vld [vmem:[%s15] sm:$0x1]
    %17 = vrot.lane.b32.xlu0 %v16, 3
    %v18 = vpop.permute.xlu0 %17
    %vm19 = vcmask 48152
    %20 = vst.msk [vmem:[#allocation0] sm:$0x1] %vm19, %v18
    %s22 = sshllo.u32 0, 1
    %v24 = vld [vmem:[#allocation0] sm:%s22]
    %s25 = sshllo.u32 0, 1
    %26 = vst [vmem:[%s1] sm:%s25] %v24

// kernel: divdis_forward.1
$region0: #{divdis_forward.1}
  #allocation0 [shape = 'u32[]', space=smem, size = 0x4, offset = 0x4, fixed_abs, tag = 'smem constant byte address 0x4 - core index']
  #allocation1 [shape = 'u32[144,128]{1,0:T(1,128)}', space=vmem, size = 0x12000, scoped, tag = 'internal scratch']
  %s0 = inlined_call_operand.vmem [shape: f32[4,16], index: 0, kind: input, shape index: {}]
  %s1 = inlined_call_operand.vmem [shape: f32[16,96], index: 1, kind: input, shape index: {}]
  %s2 = inlined_call_operand.vmem [shape: f32[1,96], index: 2, kind: input, shape index: {}]
  %s3 = inlined_call_operand.vmem [shape: f32[18,32,32], index: 3, kind: input, shape index: {}]
  %s4 = inlined_call_operand.vmem [shape: f32[3,20,32], index: 4, kind: input, shape index: {}]
  %s5 = inlined_call_operand.vmem [shape: f32[3,32,3], index: 5, kind: input, shape index: {}]
  %s6 = inlined_call_operand.vmem [shape: f32[1,9], index: 6, kind: input, shape index: {}]
  %s7 = inlined_call_operand.vmem [shape: f32[4,9], index: 7, kind: output, shape index: {}]
  %s8 = sld [smem:[#allocation0]]
  $region38: #{divdis_forward.1} parent=0
    _
  %s10 = ssub.s32 1, %s8
  %s11 = scalar_select 0, %s10, %s8
  // Predicated region
  $region2: #{divdis_forward.1} parent=0 // pred_check
    _
  $region3: #{divdis_forward.1} parent=0 // pred_check_branch
    %13 = sbr.rel (0) target = $region5
  $region4: #{divdis_forward.1} parent=0 // pred_region
    _
  $region5: #{divdis_forward.1} parent=0 // pred_fallthru
    _
  // Predicated region
  $region6: #{divdis_forward.1} parent=0 // pred_check
    _
  $region7: #{divdis_forward.1} parent=0 // pred_check_branch
    %15 = sbr.rel (0) target = $region9
  $region8: #{divdis_forward.1} parent=0 // pred_region
    _
  $region9: #{divdis_forward.1} parent=0 // pred_fallthru
    _
  // Predicated region
  $region10: #{divdis_forward.1} parent=0 // pred_check
    _
  $region11: #{divdis_forward.1} parent=0 // pred_check_branch
    %17 = sbr.rel (0) target = $region13
  $region12: #{divdis_forward.1} parent=0 // pred_region
    _
  $region13: #{divdis_forward.1} parent=0 // pred_fallthru
    _
  // Predicated region
  $region14: #{divdis_forward.1} parent=0 // pred_check
    _
  $region15: #{divdis_forward.1} parent=0 // pred_check_branch
    %19 = sbr.rel (0) target = $region17
  $region16: #{divdis_forward.1} parent=0 // pred_region
    _
  $region17: #{divdis_forward.1} parent=0 // pred_fallthru
    _
  // Predicated region
  $region18: #{divdis_forward.1} parent=0 // pred_check
    _
  $region19: #{divdis_forward.1} parent=0 // pred_check_branch
    %21 = sbr.rel (0) target = $region21
  $region20: #{divdis_forward.1} parent=0 // pred_region
    _
  $region21: #{divdis_forward.1} parent=0 // pred_fallthru
    _
  // Predicated region
  $region22: #{divdis_forward.1} parent=0 // pred_check
    _
  $region23: #{divdis_forward.1} parent=0 // pred_check_branch
    %23 = sbr.rel (0) target = $region25
  $region24: #{divdis_forward.1} parent=0 // pred_region
    _
  $region25: #{divdis_forward.1} parent=0 // pred_fallthru
    _
  // Predicated region
  $region26: #{divdis_forward.1} parent=0 // pred_check
    _
  $region27: #{divdis_forward.1} parent=0 // pred_check_branch
    %25 = sbr.rel (0) target = $region29
  $region28: #{divdis_forward.1} parent=0 // pred_region
    _
  $region29: #{divdis_forward.1} parent=0 // pred_fallthru
    _
  %v26 = vld [vmem:[%s0] sm:$0xf]
  %v27 = vld [vmem:[%s1] sm:$0xff]
  %v28 = vld [vmem:[%s1 + $0x8] sm:$0xff]
  %v29 = vld [vmem:[%s2] sm:$0x1]
  %v31 = vlaneseq
  %v32 = vshrl.u32 %v31, 7
  %v33 = vsub.s32 0, %v32
  %v34 = vrot.slane %v29, %v33
  %vm36 = vcmask 130048
  %v38 = vsel %vm36, %v26, 0
  %40 = vmatprep.subr.mxu0 0.0
  %41 = vmatpush1.msra.mxu0 %v27
  %42 = vmatprep.subr.mxu0 0.0
  %43 = vmatpush1.msra.mxu0 %v28
  %44 = vmatprep.subr.mxu0 0.0
  %45 = vmatpush1.msra.mxu0 0.0
  %46 = vmatprep.subr.mxu0 0.0
  %47 = vmatpush1.msra.mxu0 0.0
  %48 = vmatprep.subr.mxu0 0.0
  %49 = vmatpush1.msra.mxu0 0.0
  %50 = vmatprep.subr.mxu0 0.0
  %51 = vmatpush1.msra.mxu0 0.0
  %52 = vmatprep.subr.mxu0 0.0
  %53 = vmatpush1.msra.mxu0 0.0
  %54 = vmatprep.subr.mxu0 0.0
  %55 = vmatpush1.msra.mxu0 0.0
  %56 = vmatprep.subr.mxu0 0.0
  %57 = vmatpush1.msra.mxu0 0.0
  %58 = vmatprep.subr.mxu0 0.0
  %59 = vmatpush1.msra.mxu0 0.0
  %60 = vmatprep.subr.mxu0 0.0
  %61 = vmatpush1.msra.mxu0 0.0
  %62 = vmatprep.subr.mxu0 0.0
  %63 = vmatpush1.msra.mxu0 0.0
  %64 = vmatprep.subr.mxu0 0.0
  %65 = vmatpush1.msra.mxu0 0.0
  %66 = vmatprep.subr.mxu0 0.0
  %67 = vmatpush1.msra.mxu0 0.0
  %68 = vmatprep.subr.mxu0 0.0
  %69 = vmatpush1.msra.mxu0 0.0
  %70 = vmatprep.subr.mxu0 0.0
  %71 = vmatpush1.msra.mxu0 0.0
  %72 = vmatprep.subr.mxu0 0.0
  %73 = vmatpush1.msra.mxu0 0.0
  %74 = vmatprep.subr.mxu0 0.0
  %75 = vmatpush1.msra.mxu0 0.0
  %76 = vmatprep.subr.mxu0 0.0
  %77 = vmatpush1.msra.mxu0 0.0
  %78 = vmatprep.subr.mxu0 0.0
  %79 = vmatpush1.msra.mxu0 0.0
  %80 = vmatprep.subr.mxu0 0.0
  %81 = vmatpush1.msra.mxu0 0.0
  %82 = vmatprep.subr.mxu0 0.0
  %83 = vmatpush1.msra.mxu0 0.0
  %84 = vmatprep.subr.mxu0 0.0
  %85 = vmatpush1.msra.mxu0 0.0
  %86 = vmatprep.subr.mxu0 0.0
  %87 = vmatpush1.msra.mxu0 0.0
  %88 = vmatprep.subr.mxu0 0.0
  %89 = vmatpush1.msra.mxu0 0.0
  %90 = vmatprep.subr.mxu0 0.0
  %91 = vmatpush1.msra.mxu0 0.0
  %92 = vmatprep.subr.mxu0 0.0
  %93 = vmatpush1.msra.mxu0 0.0
  %94 = vmatprep.subr.mxu0 0.0
  %95 = vmatpush1.msra.mxu0 0.0
  %96 = vmatprep.subr.mxu0 0.0
  %97 = vmatpush1.msra.mxu0 0.0
  %98 = vmatprep.subr.mxu0 0.0
  %99 = vmatpush1.msra.mxu0 0.0
  %100 = vmatprep.subr.mxu0 0.0
  %101 = vmatpush1.msra.mxu0 0.0
  %102 = vmatprep.subr.mxu0 0.0
  %103 = vmatpush1.msra.mxu0 0.0
  %104 = vmatprep.mubr.f32.mxu0 0.0
  %105 = vmatmul.mubr.f32.gmra.mrb[0].mxu0 %v38
  %v106 = vpop.f32.mrb[0].mxu0
  %v107 = vadd.f32 %v34, %v106
  %v108 = vpop.f32.mrb[0].mxu0
  %109 = vdwg.mxu0
  %v110 = vld [vmem:[%s4] sm:$0xff]
  %v111 = vld [vmem:[%s4 + $0x8] sm:$0xff]
  %v112 = vld [vmem:[%s4 + $0x10] sm:$0xf]
  %vm113 = vcmask 257024
  %v114 = vsel %vm113, %v107, 0.0
  %115 = vadd.xlane.f32.xlu0 %v114
  %v116 = vpop.xlane.xlu0 %115
  %v117 = vrcp.pop 32.0
  %v118 = vmul.f32 %v116, %v117
  %v119 = vsub.f32 %v107, %v118
  %v120 = vmul.f32 %v119, %v119
  %v121 = vsel %vm113, %v120, 0.0
  %122 = vadd.xlane.f32.xlu0 %v121
  %v123 = vpop.xlane.xlu0 %122
  %v124 = vmul.f32 %v123, %v117
  %v125 = vadd.f32 %v124, 1e-05
  %v126 = vrsqrt.pop %v125
  %v127 = vmul.f32 %v119, %v126
  %v128 = vlaneseq
  %v129 = vshrl.u32 %v128, 7
  %v130 = vsub.s32 0, %v129
  %v131 = vrot.slane %v110, %v130
  %v132 = vmul.f32 %v127, %v131
  %v133 = vlaneseq
  %v134 = vshrl.u32 %v133, 7
  %v135 = vsub.s32 1, %v134
  %v136 = vrot.slane %v110, %v135
  %v137 = vadd.f32 %v132, %v136
  %v138 = vmul.f32 %v137, 0.5
  %v139 = vmul.f32 %v137, 0.70710677
  %v140 = verf.f32.pop %v139
  %v141 = vadd.f32 %v140, 1.0
  %v142 = vmul.f32 %v138, %v141
  %v143 = vld [vmem:[%s3] sm:$0xff]
  %v144 = vld [vmem:[%s3 + $0x8] sm:$0xff]
  %v145 = vld [vmem:[%s3 + $0x10] sm:$0xff]
  %v146 = vld [vmem:[%s3 + $0x18] sm:$0xff]
  %v147 = vlaneseq
  %v148 = vshrl.u32 %v147, 7
  %v149 = vsub.s32 2, %v148
  %v150 = vrot.slane %v110, %v149
  %vm151 = vcmask 261120
  %v153 = vsel %vm151, %v142, 0
  %155 = vmatprep.subr.mxu0 0.0
  %156 = vmatpush1.msra.mxu0 %v143
  %157 = vmatprep.subr.mxu0 0.0
  %158 = vmatpush1.msra.mxu0 %v144
  %159 = vmatprep.subr.mxu0 0.0
  %160 = vmatpush1.msra.mxu0 %v145
  %161 = vmatprep.subr.mxu0 0.0
  %162 = vmatpush1.msra.mxu0 %v146
  %163 = vmatprep.subr.mxu0 0.0
  %164 = vmatpush1.msra.mxu0 0.0
  %165 = vmatprep.subr.mxu0 0.0
  %166 = vmatpush1.msra.mxu0 0.0
  %167 = vmatprep.subr.mxu0 0.0
  %168 = vmatpush1.msra.mxu0 0.0
  %169 = vmatprep.subr.mxu0 0.0
  %170 = vmatpush1.msra.mxu0 0.0
  %171 = vmatprep.subr.mxu0 0.0
  %172 = vmatpush1.msra.mxu0 0.0
  %173 = vmatprep.subr.mxu0 0.0
  %174 = vmatpush1.msra.mxu0 0.0
  %175 = vmatprep.subr.mxu0 0.0
  %176 = vmatpush1.msra.mxu0 0.0
  %177 = vmatprep.subr.mxu0 0.0
  %178 = vmatpush1.msra.mxu0 0.0
  %179 = vmatprep.subr.mxu0 0.0
  %180 = vmatpush1.msra.mxu0 0.0
  %181 = vmatprep.subr.mxu0 0.0
  %182 = vmatpush1.msra.mxu0 0.0
  %183 = vmatprep.subr.mxu0 0.0
  %184 = vmatpush1.msra.mxu0 0.0
  %185 = vmatprep.subr.mxu0 0.0
  %186 = vmatpush1.msra.mxu0 0.0
  %187 = vmatprep.subr.mxu0 0.0
  %188 = vmatpush1.msra.mxu0 0.0
  %189 = vmatprep.subr.mxu0 0.0
  %190 = vmatpush1.msra.mxu0 0.0
  %191 = vmatprep.subr.mxu0 0.0
  %192 = vmatpush1.msra.mxu0 0.0
  %193 = vmatprep.subr.mxu0 0.0
  %194 = vmatpush1.msra.mxu0 0.0
  %195 = vmatprep.subr.mxu0 0.0
  %196 = vmatpush1.msra.mxu0 0.0
  %197 = vmatprep.subr.mxu0 0.0
  %198 = vmatpush1.msra.mxu0 0.0
  %199 = vmatprep.subr.mxu0 0.0
  %200 = vmatpush1.msra.mxu0 0.0
  %201 = vmatprep.subr.mxu0 0.0
  %202 = vmatpush1.msra.mxu0 0.0
  %203 = vmatprep.subr.mxu0 0.0
  %204 = vmatpush1.msra.mxu0 0.0
  %205 = vmatprep.subr.mxu0 0.0
  %206 = vmatpush1.msra.mxu0 0.0
  %207 = vmatprep.subr.mxu0 0.0
  %208 = vmatpush1.msra.mxu0 0.0
  %209 = vmatprep.subr.mxu0 0.0
  %210 = vmatpush1.msra.mxu0 0.0
  %211 = vmatprep.subr.mxu0 0.0
  %212 = vmatpush1.msra.mxu0 0.0
  %213 = vmatprep.subr.mxu0 0.0
  %214 = vmatpush1.msra.mxu0 0.0
  %215 = vmatprep.subr.mxu0 0.0
  %216 = vmatpush1.msra.mxu0 0.0
  %217 = vmatprep.subr.mxu0 0.0
  %218 = vmatpush1.msra.mxu0 0.0
  %219 = vmatprep.mubr.f32.mxu0 0.0
  %220 = vmatmul.mubr.f32.gmra.mrb[0].mxu0 %v153
  %v221 = vpop.f32.mrb[0].mxu0
  %v222 = vadd.f32 %v150, %v221
  %v223 = vpop.f32.mrb[0].mxu0
  %224 = vdwg.mxu0
  %v225 = vsel %vm113, %v222, 0.0
  %226 = vadd.xlane.f32.xlu0 %v225
  %v227 = vpop.xlane.xlu0 %226
  %v228 = vmul.f32 %v227, %v117
  %v229 = vsub.f32 %v222, %v228
  %v230 = vmul.f32 %v229, %v229
  %v231 = vsel %vm113, %v230, 0.0
  %232 = vadd.xlane.f32.xlu0 %v231
  %v233 = vpop.xlane.xlu0 %232
  %v234 = vmul.f32 %v233, %v117
  %v235 = vadd.f32 %v234, 1e-05
  %v236 = vrsqrt.pop %v235
  %v237 = vmul.f32 %v229, %v236
  %v238 = vlaneseq
  %v239 = vshrl.u32 %v238, 7
  %v240 = vsub.s32 3, %v239
  %v241 = vrot.slane %v110, %v240
  %v242 = vmul.f32 %v237, %v241
  %v243 = vlaneseq
  %v244 = vshrl.u32 %v243, 7
  %v245 = vsub.s32 4, %v244
  %v246 = vrot.slane %v110, %v245
  %v247 = vadd.f32 %v242, %v246
  %v248 = vmul.f32 %v247, 0.5
  %v249 = vmul.f32 %v247, 0.70710677
  %v250 = verf.f32.pop %v249
  %v251 = vadd.f32 %v250, 1.0
  %v252 = vmul.f32 %v248, %v251
  %s253 = scalar_lea.vmem %s3, 32
  %v254 = vld [vmem:[%s253] sm:$0xff]
  %v255 = vld [vmem:[%s253 + $0x8] sm:$0xff]
  %v256 = vld [vmem:[%s253 + $0x10] sm:$0xff]
  %v257 = vld [vmem:[%s253 + $0x18] sm:$0xff]
  %v258 = vlaneseq
  %v259 = vshrl.u32 %v258, 7
  %v260 = vsub.s32 5, %v259
  %v261 = vrot.slane %v110, %v260
  %v263 = vsel %vm151, %v252, 0
  %265 = vmatprep.subr.mxu0 0.0
  %266 = vmatpush1.msra.mxu0 %v254
  %267 = vmatprep.subr.mxu0 0.0
  %268 = vmatpush1.msra.mxu0 %v255
  %269 = vmatprep.subr.mxu0 0.0
  %270 = vmatpush1.msra.mxu0 %v256
  %271 = vmatprep.subr.mxu0 0.0
  %272 = vmatpush1.msra.mxu0 %v257
  %273 = vmatprep.subr.mxu0 0.0
  %274 = vmatpush1.msra.mxu0 0.0
  %275 = vmatprep.subr.mxu0 0.0
  %276 = vmatpush1.msra.mxu0 0.0
  %277 = vmatprep.subr.mxu0 0.0
  %278 = vmatpush1.msra.mxu0 0.0
  %279 = vmatprep.subr.mxu0 0.0
  %280 = vmatpush1.msra.mxu0 0.0
  %281 = vmatprep.subr.mxu0 0.0
  %282 = vmatpush1.msra.mxu0 0.0
  %283 = vmatprep.subr.mxu0 0.0
  %284 = vmatpush1.msra.mxu0 0.0
  %285 = vmatprep.subr.mxu0 0.0
  %286 = vmatpush1.msra.mxu0 0.0
  %287 = vmatprep.subr.mxu0 0.0
  %288 = vmatpush1.msra.mxu0 0.0
  %289 = vmatprep.subr.mxu0 0.0
  %290 = vmatpush1.msra.mxu0 0.0
  %291 = vmatprep.subr.mxu0 0.0
  %292 = vmatpush1.msra.mxu0 0.0
  %293 = vmatprep.subr.mxu0 0.0
  %294 = vmatpush1.msra.mxu0 0.0
  %295 = vmatprep.subr.mxu0 0.0
  %296 = vmatpush1.msra.mxu0 0.0
  %297 = vmatprep.subr.mxu0 0.0
  %298 = vmatpush1.msra.mxu0 0.0
  %299 = vmatprep.subr.mxu0 0.0
  %300 = vmatpush1.msra.mxu0 0.0
  %301 = vmatprep.subr.mxu0 0.0
  %302 = vmatpush1.msra.mxu0 0.0
  %303 = vmatprep.subr.mxu0 0.0
  %304 = vmatpush1.msra.mxu0 0.0
  %305 = vmatprep.subr.mxu0 0.0
  %306 = vmatpush1.msra.mxu0 0.0
  %307 = vmatprep.subr.mxu0 0.0
  %308 = vmatpush1.msra.mxu0 0.0
  %309 = vmatprep.subr.mxu0 0.0
  %310 = vmatpush1.msra.mxu0 0.0
  %311 = vmatprep.subr.mxu0 0.0
  %312 = vmatpush1.msra.mxu0 0.0
  %313 = vmatprep.subr.mxu0 0.0
  %314 = vmatpush1.msra.mxu0 0.0
  %315 = vmatprep.subr.mxu0 0.0
  %316 = vmatpush1.msra.mxu0 0.0
  %317 = vmatprep.subr.mxu0 0.0
  %318 = vmatpush1.msra.mxu0 0.0
  %319 = vmatprep.subr.mxu0 0.0
  %320 = vmatpush1.msra.mxu0 0.0
  %321 = vmatprep.subr.mxu0 0.0
  %322 = vmatpush1.msra.mxu0 0.0
  %323 = vmatprep.subr.mxu0 0.0
  %324 = vmatpush1.msra.mxu0 0.0
  %325 = vmatprep.subr.mxu0 0.0
  %326 = vmatpush1.msra.mxu0 0.0
  %327 = vmatprep.subr.mxu0 0.0
  %328 = vmatpush1.msra.mxu0 0.0
  %329 = vmatprep.mubr.f32.mxu0 0.0
  %330 = vmatmul.mubr.f32.gmra.mrb[0].mxu0 %v263
  %v331 = vpop.f32.mrb[0].mxu0
  %v332 = vadd.f32 %v261, %v331
  %v333 = vpop.f32.mrb[0].mxu0
  %334 = vdwg.mxu0
  %v335 = vsel %vm113, %v332, 0.0
  %336 = vadd.xlane.f32.xlu0 %v335
  %v337 = vpop.xlane.xlu0 %336
  %v338 = vmul.f32 %v337, %v117
  %v339 = vsub.f32 %v332, %v338
  %v340 = vmul.f32 %v339, %v339
  %v341 = vsel %vm113, %v340, 0.0
  %342 = vadd.xlane.f32.xlu0 %v341
  %v343 = vpop.xlane.xlu0 %342
  %v344 = vmul.f32 %v343, %v117
  %v345 = vadd.f32 %v344, 1e-05
  %v346 = vrsqrt.pop %v345
  %v347 = vmul.f32 %v339, %v346
  %v348 = vlaneseq
  %v349 = vshrl.u32 %v348, 7
  %v350 = vsub.s32 6, %v349
  %v351 = vrot.slane %v110, %v350
  %v352 = vmul.f32 %v347, %v351
  %v353 = vlaneseq
  %v354 = vshrl.u32 %v353, 7
  %v355 = vsub.s32 7, %v354
  %v356 = vrot.slane %v110, %v355
  %v357 = vadd.f32 %v352, %v356
  %v358 = vmul.f32 %v357, 0.5
  %v359 = vmul.f32 %v357, 0.70710677
  %v360 = verf.f32.pop %v359
  %v361 = vadd.f32 %v360, 1.0
  %v362 = vmul.f32 %v358, %v361
  %v363 = vadd.f32 %v142, %v362
  %s364 = scalar_lea.vmem %s3, 64
  %v365 = vld [vmem:[%s364] sm:$0xff]
  %v366 = vld [vmem:[%s364 + $0x8] sm:$0xff]
  %v367 = vld [vmem:[%s364 + $0x10] sm:$0xff]
  %v368 = vld [vmem:[%s364 + $0x18] sm:$0xff]
  %v369 = vlaneseq
  %v370 = vshrl.u32 %v369, 7
  %v371 = vsub.s32 0, %v370
  %v372 = vrot.slane %v111, %v371
  %v374 = vsel %vm151, %v363, 0
  %376 = vmatprep.subr.mxu0 0.0
  %377 = vmatpush1.msra.mxu0 %v365
  %378 = vmatprep.subr.mxu0 0.0
  %379 = vmatpush1.msra.mxu0 %v366
  %380 = vmatprep.subr.mxu0 0.0
  %381 = vmatpush1.msra.mxu0 %v367
  %382 = vmatprep.subr.mxu0 0.0
  %383 = vmatpush1.msra.mxu0 %v368
  %384 = vmatprep.subr.mxu0 0.0
  %385 = vmatpush1.msra.mxu0 0.0
  %386 = vmatprep.subr.mxu0 0.0
  %387 = vmatpush1.msra.mxu0 0.0
  %388 = vmatprep.subr.mxu0 0.0
  %389 = vmatpush1.msra.mxu0 0.0
  %390 = vmatprep.subr.mxu0 0.0
  %391 = vmatpush1.msra.mxu0 0.0
  %392 = vmatprep.subr.mxu0 0.0
  %393 = vmatpush1.msra.mxu0 0.0
  %394 = vmatprep.subr.mxu0 0.0
  %395 = vmatpush1.msra.mxu0 0.0
  %396 = vmatprep.subr.mxu0 0.0
  %397 = vmatpush1.msra.mxu0 0.0
  %398 = vmatprep.subr.mxu0 0.0
  %399 = vmatpush1.msra.mxu0 0.0
  %400 = vmatprep.subr.mxu0 0.0
  %401 = vmatpush1.msra.mxu0 0.0
  %402 = vmatprep.subr.mxu0 0.0
  %403 = vmatpush1.msra.mxu0 0.0
  %404 = vmatprep.subr.mxu0 0.0
  %405 = vmatpush1.msra.mxu0 0.0
  %406 = vmatprep.subr.mxu0 0.0
  %407 = vmatpush1.msra.mxu0 0.0
  %408 = vmatprep.subr.mxu0 0.0
  %409 = vmatpush1.msra.mxu0 0.0
  %410 = vmatprep.subr.mxu0 0.0
  %411 = vmatpush1.msra.mxu0 0.0
  %412 = vmatprep.subr.mxu0 0.0
  %413 = vmatpush1.msra.mxu0 0.0
  %414 = vmatprep.subr.mxu0 0.0
  %415 = vmatpush1.msra.mxu0 0.0
  %416 = vmatprep.subr.mxu0 0.0
  %417 = vmatpush1.msra.mxu0 0.0
  %418 = vmatprep.subr.mxu0 0.0
  %419 = vmatpush1.msra.mxu0 0.0
  %420 = vmatprep.subr.mxu0 0.0
  %421 = vmatpush1.msra.mxu0 0.0
  %422 = vmatprep.subr.mxu0 0.0
  %423 = vmatpush1.msra.mxu0 0.0
  %424 = vmatprep.subr.mxu0 0.0
  %425 = vmatpush1.msra.mxu0 0.0
  %426 = vmatprep.subr.mxu0 0.0
  %427 = vmatpush1.msra.mxu0 0.0
  %428 = vmatprep.subr.mxu0 0.0
  %429 = vmatpush1.msra.mxu0 0.0
  %430 = vmatprep.subr.mxu0 0.0
  %431 = vmatpush1.msra.mxu0 0.0
  %432 = vmatprep.subr.mxu0 0.0
  %433 = vmatpush1.msra.mxu0 0.0
  %434 = vmatprep.subr.mxu0 0.0
  %435 = vmatpush1.msra.mxu0 0.0
  %436 = vmatprep.subr.mxu0 0.0
  %437 = vmatpush1.msra.mxu0 0.0
  %438 = vmatprep.subr.mxu0 0.0
  %439 = vmatpush1.msra.mxu0 0.0
  %440 = vmatprep.mubr.f32.mxu0 0.0
  %441 = vmatmul.mubr.f32.gmra.mrb[0].mxu0 %v374
  %v442 = vpop.f32.mrb[0].mxu0
  %v443 = vadd.f32 %v372, %v442
  %v444 = vpop.f32.mrb[0].mxu0
  %445 = vdwg.mxu0
  %v446 = vsel %vm113, %v443, 0.0
  %447 = vadd.xlane.f32.xlu0 %v446
  %v448 = vpop.xlane.xlu0 %447
  %v449 = vmul.f32 %v448, %v117
  %v450 = vsub.f32 %v443, %v449
  %v451 = vmul.f32 %v450, %v450
  %v452 = vsel %vm113, %v451, 0.0
  %453 = vadd.xlane.f32.xlu0 %v452
  %v454 = vpop.xlane.xlu0 %453
  %v455 = vmul.f32 %v454, %v117
  %v456 = vadd.f32 %v455, 1e-05
  %v457 = vrsqrt.pop %v456
  %v458 = vmul.f32 %v450, %v457
  %v459 = vlaneseq
  %v460 = vshrl.u32 %v459, 7
  %v461 = vsub.s32 1, %v460
  %v462 = vrot.slane %v111, %v461
  %v463 = vmul.f32 %v458, %v462
  %v464 = vlaneseq
  %v465 = vshrl.u32 %v464, 7
  %v466 = vsub.s32 2, %v465
  %v467 = vrot.slane %v111, %v466
  %v468 = vadd.f32 %v463, %v467
  %v469 = vmul.f32 %v468, 0.5
  %v470 = vmul.f32 %v468, 0.70710677
  %v471 = verf.f32.pop %v470
  %v472 = vadd.f32 %v471, 1.0
  %v473 = vmul.f32 %v469, %v472
  %s474 = scalar_lea.vmem %s3, 96
  %v475 = vld [vmem:[%s474] sm:$0xff]
  %v476 = vld [vmem:[%s474 + $0x8] sm:$0xff]
  %v477 = vld [vmem:[%s474 + $0x10] sm:$0xff]
  %v478 = vld [vmem:[%s474 + $0x18] sm:$0xff]
  %v479 = vlaneseq
  %v480 = vshrl.u32 %v479, 7
  %v481 = vsub.s32 3, %v480
  %v482 = vrot.slane %v111, %v481
  %v484 = vsel %vm151, %v473, 0
  %486 = vmatprep.subr.mxu0 0.0
  %487 = vmatpush1.msra.mxu0 %v475
  %488 = vmatprep.subr.mxu0 0.0
  %489 = vmatpush1.msra.mxu0 %v476
  %490 = vmatprep.subr.mxu0 0.0
  %491 = vmatpush1.msra.mxu0 %v477
  %492 = vmatprep.subr.mxu0 0.0
  %493 = vmatpush1.msra.mxu0 %v478
  %494 = vmatprep.subr.mxu0 0.0
  %495 = vmatpush1.msra.mxu0 0.0
  %496 = vmatprep.subr.mxu0 0.0
  %497 = vmatpush1.msra.mxu0 0.0
  %498 = vmatprep.subr.mxu0 0.0
  %499 = vmatpush1.msra.mxu0 0.0
  %500 = vmatprep.subr.mxu0 0.0
  %501 = vmatpush1.msra.mxu0 0.0
  %502 = vmatprep.subr.mxu0 0.0
  %503 = vmatpush1.msra.mxu0 0.0
  %504 = vmatprep.subr.mxu0 0.0
  %505 = vmatpush1.msra.mxu0 0.0
  %506 = vmatprep.subr.mxu0 0.0
  %507 = vmatpush1.msra.mxu0 0.0
  %508 = vmatprep.subr.mxu0 0.0
  %509 = vmatpush1.msra.mxu0 0.0
  %510 = vmatprep.subr.mxu0 0.0
  %511 = vmatpush1.msra.mxu0 0.0
  %512 = vmatprep.subr.mxu0 0.0
  %513 = vmatpush1.msra.mxu0 0.0
  %514 = vmatprep.subr.mxu0 0.0
  %515 = vmatpush1.msra.mxu0 0.0
  %516 = vmatprep.subr.mxu0 0.0
  %517 = vmatpush1.msra.mxu0 0.0
  %518 = vmatprep.subr.mxu0 0.0
  %519 = vmatpush1.msra.mxu0 0.0
  %520 = vmatprep.subr.mxu0 0.0
  %521 = vmatpush1.msra.mxu0 0.0
  %522 = vmatprep.subr.mxu0 0.0
  %523 = vmatpush1.msra.mxu0 0.0
  %524 = vmatprep.subr.mxu0 0.0
  %525 = vmatpush1.msra.mxu0 0.0
  %526 = vmatprep.subr.mxu0 0.0
  %527 = vmatpush1.msra.mxu0 0.0
  %528 = vmatprep.subr.mxu0 0.0
  %529 = vmatpush1.msra.mxu0 0.0
  %530 = vmatprep.subr.mxu0 0.0
  %531 = vmatpush1.msra.mxu0 0.0
  %532 = vmatprep.subr.mxu0 0.0
  %533 = vmatpush1.msra.mxu0 0.0
  %534 = vmatprep.subr.mxu0 0.0
  %535 = vmatpush1.msra.mxu0 0.0
  %536 = vmatprep.subr.mxu0 0.0
  %537 = vmatpush1.msra.mxu0 0.0
  %538 = vmatprep.subr.mxu0 0.0
  %539 = vmatpush1.msra.mxu0 0.0
  %540 = vmatprep.subr.mxu0 0.0
  %541 = vmatpush1.msra.mxu0 0.0
  %542 = vmatprep.subr.mxu0 0.0
  %543 = vmatpush1.msra.mxu0 0.0
  %544 = vmatprep.subr.mxu0 0.0
  %545 = vmatpush1.msra.mxu0 0.0
  %546 = vmatprep.subr.mxu0 0.0
  %547 = vmatpush1.msra.mxu0 0.0
  %548 = vmatprep.subr.mxu0 0.0
  %549 = vmatpush1.msra.mxu0 0.0
  %550 = vmatprep.mubr.f32.mxu0 0.0
  %551 = vmatmul.mubr.f32.gmra.mrb[0].mxu0 %v484
  %v552 = vpop.f32.mrb[0].mxu0
  %v553 = vadd.f32 %v482, %v552
  %v554 = vpop.f32.mrb[0].mxu0
  %555 = vdwg.mxu0
  %v556 = vsel %vm113, %v553, 0.0
  %557 = vadd.xlane.f32.xlu0 %v556
  %v558 = vpop.xlane.xlu0 %557
  %v559 = vmul.f32 %v558, %v117
  %v560 = vsub.f32 %v553, %v559
  %v561 = vmul.f32 %v560, %v560
  %v562 = vsel %vm113, %v561, 0.0
  %563 = vadd.xlane.f32.xlu0 %v562
  %v564 = vpop.xlane.xlu0 %563
  %v565 = vmul.f32 %v564, %v117
  %v566 = vadd.f32 %v565, 1e-05
  %v567 = vrsqrt.pop %v566
  %v568 = vmul.f32 %v560, %v567
  %v569 = vlaneseq
  %v570 = vshrl.u32 %v569, 7
  %v571 = vsub.s32 4, %v570
  %v572 = vrot.slane %v111, %v571
  %v573 = vmul.f32 %v568, %v572
  %v574 = vlaneseq
  %v575 = vshrl.u32 %v574, 7
  %v576 = vsub.s32 5, %v575
  %v577 = vrot.slane %v111, %v576
  %v578 = vadd.f32 %v573, %v577
  %v579 = vmul.f32 %v578, 0.5
  %v580 = vmul.f32 %v578, 0.70710677
  %v581 = verf.f32.pop %v580
  %v582 = vadd.f32 %v581, 1.0
  %v583 = vmul.f32 %v579, %v582
  %v584 = vadd.f32 %v363, %v583
  %s585 = scalar_lea.vmem %s3, 128
  %v586 = vld [vmem:[%s585] sm:$0xff]
  %v587 = vld [vmem:[%s585 + $0x8] sm:$0xff]
  %v588 = vld [vmem:[%s585 + $0x10] sm:$0xff]
  %v589 = vld [vmem:[%s585 + $0x18] sm:$0xff]
  %v590 = vlaneseq
  %v591 = vshrl.u32 %v590, 7
  %v592 = vsub.s32 6, %v591
  %v593 = vrot.slane %v111, %v592
  %v595 = vsel %vm151, %v584, 0
  %597 = vmatprep.subr.mxu0 0.0
  %598 = vmatpush1.msra.mxu0 %v586
  %599 = vmatprep.subr.mxu0 0.0
  %600 = vmatpush1.msra.mxu0 %v587
  %601 = vmatprep.subr.mxu0 0.0
  %602 = vmatpush1.msra.mxu0 %v588
  %603 = vmatprep.subr.mxu0 0.0
  %604 = vmatpush1.msra.mxu0 %v589
  %605 = vmatprep.subr.mxu0 0.0
  %606 = vmatpush1.msra.mxu0 0.0
  %607 = vmatprep.subr.mxu0 0.0
  %608 = vmatpush1.msra.mxu0 0.0
  %609 = vmatprep.subr.mxu0 0.0
  %610 = vmatpush1.msra.mxu0 0.0
  %611 = vmatprep.subr.mxu0 0.0
  %612 = vmatpush1.msra.mxu0 0.0
  %613 = vmatprep.subr.mxu0 0.0
  %614 = vmatpush1.msra.mxu0 0.0
  %615 = vmatprep.subr.mxu0 0.0
  %616 = vmatpush1.msra.mxu0 0.0
  %617 = vmatprep.subr.mxu0 0.0
  %618 = vmatpush1.msra.mxu0 0.0
  %619 = vmatprep.subr.mxu0 0.0
  %620 = vmatpush1.msra.mxu0 0.0
  %621 = vmatprep.subr.mxu0 0.0
  %622 = vmatpush1.msra.mxu0 0.0
  %623 = vmatprep.subr.mxu0 0.0
  %624 = vmatpush1.msra.mxu0 0.0
  %625 = vmatprep.subr.mxu0 0.0
  %626 = vmatpush1.msra.mxu0 0.0
  %627 = vmatprep.subr.mxu0 0.0
  %628 = vmatpush1.msra.mxu0 0.0
  %629 = vmatprep.subr.mxu0 0.0
  %630 = vmatpush1.msra.mxu0 0.0
  %631 = vmatprep.subr.mxu0 0.0
  %632 = vmatpush1.msra.mxu0 0.0
  %633 = vmatprep.subr.mxu0 0.0
  %634 = vmatpush1.msra.mxu0 0.0
  %635 = vmatprep.subr.mxu0 0.0
  %636 = vmatpush1.msra.mxu0 0.0
  %637 = vmatprep.subr.mxu0 0.0
  %638 = vmatpush1.msra.mxu0 0.0
  %639 = vmatprep.subr.mxu0 0.0
  %640 = vmatpush1.msra.mxu0 0.0
  %641 = vmatprep.subr.mxu0 0.0
  %642 = vmatpush1.msra.mxu0 0.0
  %643 = vmatprep.subr.mxu0 0.0
  %644 = vmatpush1.msra.mxu0 0.0
  %645 = vmatprep.subr.mxu0 0.0
  %646 = vmatpush1.msra.mxu0 0.0
  %647 = vmatprep.subr.mxu0 0.0
  %648 = vmatpush1.msra.mxu0 0.0
  %649 = vmatprep.subr.mxu0 0.0
  %650 = vmatpush1.msra.mxu0 0.0
  %651 = vmatprep.subr.mxu0 0.0
  %652 = vmatpush1.msra.mxu0 0.0
  %653 = vmatprep.subr.mxu0 0.0
  %654 = vmatpush1.msra.mxu0 0.0
  %655 = vmatprep.subr.mxu0 0.0
  %656 = vmatpush1.msra.mxu0 0.0
  %657 = vmatprep.subr.mxu0 0.0
  %658 = vmatpush1.msra.mxu0 0.0
  %659 = vmatprep.subr.mxu0 0.0
  %660 = vmatpush1.msra.mxu0 0.0
  %661 = vmatprep.mubr.f32.mxu0 0.0
  %662 = vmatmul.mubr.f32.gmra.mrb[0].mxu0 %v595
  %v663 = vpop.f32.mrb[0].mxu0
  %v664 = vadd.f32 %v593, %v663
  %v665 = vpop.f32.mrb[0].mxu0
  %666 = vdwg.mxu0
  %v667 = vsel %vm113, %v664, 0.0
  %668 = vadd.xlane.f32.xlu0 %v667
  %v669 = vpop.xlane.xlu0 %668
  %v670 = vmul.f32 %v669, %v117
  %v671 = vsub.f32 %v664, %v670
  %v672 = vmul.f32 %v671, %v671
  %v673 = vsel %vm113, %v672, 0.0
  %674 = vadd.xlane.f32.xlu0 %v673
  %v675 = vpop.xlane.xlu0 %674
  %v676 = vmul.f32 %v675, %v117
  %v677 = vadd.f32 %v676, 1e-05
  %v678 = vrsqrt.pop %v677
  %v679 = vmul.f32 %v671, %v678
  %v680 = vlaneseq
  %v681 = vshrl.u32 %v680, 7
  %v682 = vsub.s32 7, %v681
  %v683 = vrot.slane %v111, %v682
  %v684 = vmul.f32 %v679, %v683
  %v685 = vlaneseq
  %v686 = vshrl.u32 %v685, 7
  %v687 = vsub.s32 0, %v686
  %v688 = vrot.slane %v112, %v687
  %v689 = vadd.f32 %v684, %v688
  %v690 = vmul.f32 %v689, 0.5
  %v691 = vmul.f32 %v689, 0.70710677
  %v692 = verf.f32.pop %v691
  %v693 = vadd.f32 %v692, 1.0
  %v694 = vmul.f32 %v690, %v693
  %s695 = scalar_lea.vmem %s3, 160
  %v696 = vld [vmem:[%s695] sm:$0xff]
  %v697 = vld [vmem:[%s695 + $0x8] sm:$0xff]
  %v698 = vld [vmem:[%s695 + $0x10] sm:$0xff]
  %v699 = vld [vmem:[%s695 + $0x18] sm:$0xff]
  %v700 = vlaneseq
  %v701 = vshrl.u32 %v700, 7
  %v702 = vsub.s32 1, %v701
  %v703 = vrot.slane %v112, %v702
  %v705 = vsel %vm151, %v694, 0
  %707 = vmatprep.subr.mxu0 0.0
  %708 = vmatpush1.msra.mxu0 %v696
  %709 = vmatprep.subr.mxu0 0.0
  %710 = vmatpush1.msra.mxu0 %v697
  %711 = vmatprep.subr.mxu0 0.0
  %712 = vmatpush1.msra.mxu0 %v698
  %713 = vmatprep.subr.mxu0 0.0
  %714 = vmatpush1.msra.mxu0 %v699
  %715 = vmatprep.subr.mxu0 0.0
  %716 = vmatpush1.msra.mxu0 0.0
  %717 = vmatprep.subr.mxu0 0.0
  %718 = vmatpush1.msra.mxu0 0.0
  %719 = vmatprep.subr.mxu0 0.0
  %720 = vmatpush1.msra.mxu0 0.0
  %721 = vmatprep.subr.mxu0 0.0
  %722 = vmatpush1.msra.mxu0 0.0
  %723 = vmatprep.subr.mxu0 0.0
  %724 = vmatpush1.msra.mxu0 0.0
  %725 = vmatprep.subr.mxu0 0.0
  %726 = vmatpush1.msra.mxu0 0.0
  %727 = vmatprep.subr.mxu0 0.0
  %728 = vmatpush1.msra.mxu0 0.0
  %729 = vmatprep.subr.mxu0 0.0
  %730 = vmatpush1.msra.mxu0 0.0
  %731 = vmatprep.subr.mxu0 0.0
  %732 = vmatpush1.msra.mxu0 0.0
  %733 = vmatprep.subr.mxu0 0.0
  %734 = vmatpush1.msra.mxu0 0.0
  %735 = vmatprep.subr.mxu0 0.0
  %736 = vmatpush1.msra.mxu0 0.0
  %737 = vmatprep.subr.mxu0 0.0
  %738 = vmatpush1.msra.mxu0 0.0
  %739 = vmatprep.subr.mxu0 0.0
  %740 = vmatpush1.msra.mxu0 0.0
  %741 = vmatprep.subr.mxu0 0.0
  %742 = vmatpush1.msra.mxu0 0.0
  %743 = vmatprep.subr.mxu0 0.0
  %744 = vmatpush1.msra.mxu0 0.0
  %745 = vmatprep.subr.mxu0 0.0
  %746 = vmatpush1.msra.mxu0 0.0
  %747 = vmatprep.subr.mxu0 0.0
  %748 = vmatpush1.msra.mxu0 0.0
  %749 = vmatprep.subr.mxu0 0.0
  %750 = vmatpush1.msra.mxu0 0.0
  %751 = vmatprep.subr.mxu0 0.0
  %752 = vmatpush1.msra.mxu0 0.0
  %753 = vmatprep.subr.mxu0 0.0
  %754 = vmatpush1.msra.mxu0 0.0
  %755 = vmatprep.subr.mxu0 0.0
  %756 = vmatpush1.msra.mxu0 0.0
  %757 = vmatprep.subr.mxu0 0.0
  %758 = vmatpush1.msra.mxu0 0.0
  %759 = vmatprep.subr.mxu0 0.0
  %760 = vmatpush1.msra.mxu0 0.0
  %761 = vmatprep.subr.mxu0 0.0
  %762 = vmatpush1.msra.mxu0 0.0
  %763 = vmatprep.subr.mxu0 0.0
  %764 = vmatpush1.msra.mxu0 0.0
  %765 = vmatprep.subr.mxu0 0.0
  %766 = vmatpush1.msra.mxu0 0.0
  %767 = vmatprep.subr.mxu0 0.0
  %768 = vmatpush1.msra.mxu0 0.0
  %769 = vmatprep.subr.mxu0 0.0
  %770 = vmatpush1.msra.mxu0 0.0
  %771 = vmatprep.mubr.f32.mxu0 0.0
  %772 = vmatmul.mubr.f32.gmra.mrb[0].mxu0 %v705
  %v773 = vpop.f32.mrb[0].mxu0
  %v774 = vadd.f32 %v703, %v773
  %v775 = vpop.f32.mrb[0].mxu0
  %776 = vdwg.mxu0
  %v777 = vsel %vm113, %v774, 0.0
  %778 = vadd.xlane.f32.xlu0 %v777
  %v779 = vpop.xlane.xlu0 %778
  %v780 = vmul.f32 %v779, %v117
  %v781 = vsub.f32 %v774, %v780
  %v782 = vmul.f32 %v781, %v781
  %v783 = vsel %vm113, %v782, 0.0
  %784 = vadd.xlane.f32.xlu0 %v783
  %v785 = vpop.xlane.xlu0 %784
  %v786 = vmul.f32 %v785, %v117
  %v787 = vadd.f32 %v786, 1e-05
  %v788 = vrsqrt.pop %v787
  %v789 = vmul.f32 %v781, %v788
  %v790 = vlaneseq
  %v791 = vshrl.u32 %v790, 7
  %v792 = vsub.s32 2, %v791
  %v793 = vrot.slane %v112, %v792
  %v794 = vmul.f32 %v789, %v793
  %v795 = vlaneseq
  %v796 = vshrl.u32 %v795, 7
  %v797 = vsub.s32 3, %v796
  %v798 = vrot.slane %v112, %v797
  %v799 = vadd.f32 %v794, %v798
  %v800 = vmul.f32 %v799, 0.5
  %v801 = vmul.f32 %v799, 0.70710677
  %v802 = verf.f32.pop %v801
  %v803 = vadd.f32 %v802, 1.0
  %v804 = vmul.f32 %v800, %v803
  %v805 = vadd.f32 %v584, %v804
  %v806 = vld [vmem:[%s5] sm:$0xff]
  %v807 = vld [vmem:[%s5 + $0x8] sm:$0xff]
  %v808 = vld [vmem:[%s5 + $0x10] sm:$0xff]
  %v809 = vld [vmem:[%s5 + $0x18] sm:$0xff]
  %v811 = vsel %vm151, %v805, 0
  %813 = vmatprep.subr.mxu0 0.0
  %814 = vmatpush1.msra.mxu0 %v806
  %815 = vmatprep.subr.mxu0 0.0
  %816 = vmatpush1.msra.mxu0 %v807
  %817 = vmatprep.subr.mxu0 0.0
  %818 = vmatpush1.msra.mxu0 %v808
  %819 = vmatprep.subr.mxu0 0.0
  %820 = vmatpush1.msra.mxu0 %v809
  %821 = vmatprep.subr.mxu0 0.0
  %822 = vmatpush1.msra.mxu0 0.0
  %823 = vmatprep.subr.mxu0 0.0
  %824 = vmatpush1.msra.mxu0 0.0
  %825 = vmatprep.subr.mxu0 0.0
  %826 = vmatpush1.msra.mxu0 0.0
  %827 = vmatprep.subr.mxu0 0.0
  %828 = vmatpush1.msra.mxu0 0.0
  %829 = vmatprep.subr.mxu0 0.0
  %830 = vmatpush1.msra.mxu0 0.0
  %831 = vmatprep.subr.mxu0 0.0
  %832 = vmatpush1.msra.mxu0 0.0
  %833 = vmatprep.subr.mxu0 0.0
  %834 = vmatpush1.msra.mxu0 0.0
  %835 = vmatprep.subr.mxu0 0.0
  %836 = vmatpush1.msra.mxu0 0.0
  %837 = vmatprep.subr.mxu0 0.0
  %838 = vmatpush1.msra.mxu0 0.0
  %839 = vmatprep.subr.mxu0 0.0
  %840 = vmatpush1.msra.mxu0 0.0
  %841 = vmatprep.subr.mxu0 0.0
  %842 = vmatpush1.msra.mxu0 0.0
  %843 = vmatprep.subr.mxu0 0.0
  %844 = vmatpush1.msra.mxu0 0.0
  %845 = vmatprep.subr.mxu0 0.0
  %846 = vmatpush1.msra.mxu0 0.0
  %847 = vmatprep.subr.mxu0 0.0
  %848 = vmatpush1.msra.mxu0 0.0
  %849 = vmatprep.subr.mxu0 0.0
  %850 = vmatpush1.msra.mxu0 0.0
  %851 = vmatprep.subr.mxu0 0.0
  %852 = vmatpush1.msra.mxu0 0.0
  %853 = vmatprep.subr.mxu0 0.0
  %854 = vmatpush1.msra.mxu0 0.0
  %855 = vmatprep.subr.mxu0 0.0
  %856 = vmatpush1.msra.mxu0 0.0
  %857 = vmatprep.subr.mxu0 0.0
  %858 = vmatpush1.msra.mxu0 0.0
  %859 = vmatprep.subr.mxu0 0.0
  %860 = vmatpush1.msra.mxu0 0.0
  %861 = vmatprep.subr.mxu0 0.0
  %862 = vmatpush1.msra.mxu0 0.0
  %863 = vmatprep.subr.mxu0 0.0
  %864 = vmatpush1.msra.mxu0 0.0
  %865 = vmatprep.subr.mxu0 0.0
  %866 = vmatpush1.msra.mxu0 0.0
  %867 = vmatprep.subr.mxu0 0.0
  %868 = vmatpush1.msra.mxu0 0.0
  %869 = vmatprep.subr.mxu0 0.0
  %870 = vmatpush1.msra.mxu0 0.0
  %871 = vmatprep.subr.mxu0 0.0
  %872 = vmatpush1.msra.mxu0 0.0
  %873 = vmatprep.subr.mxu0 0.0
  %874 = vmatpush1.msra.mxu0 0.0
  %875 = vmatprep.subr.mxu0 0.0
  %876 = vmatpush1.msra.mxu0 0.0
  %877 = vmatprep.mubr.f32.mxu0 0.0
  %878 = vmatmul.mubr.f32.gmra.mrb[0].mxu0 %v811
  %v879 = vpop.f32.mrb[0].mxu0
  %v880 = vadd.f32 0.0, %v879
  %v881 = vpop.f32.mrb[0].mxu0
  %882 = vdwg.mxu0
  %s883 = scalar_lea.vmem %s4, 24
  %v884 = vld [vmem:[%s883] sm:$0xff]
  %v885 = vld [vmem:[%s883 + $0x8] sm:$0xff]
  %v886 = vld [vmem:[%s883 + $0x10] sm:$0xf]
  %888 = vrot.lane.b32.xlu0 %v107, 96
  %v889 = vpop.permute.xlu0 %888
  %v891 = vsel %vm113, %v889, 0.0
  %892 = vadd.xlane.f32.xlu0 %v891
  %v893 = vpop.xlane.xlu0 %892
  %v894 = vmul.f32 %v893, %v117
  %v895 = vsub.f32 %v107, %v894
  %v896 = vmul.f32 %v895, %v895
  %898 = vrot.lane.b32.xlu0 %v896, 96
  %v899 = vpop.permute.xlu0 %898
  %v901 = vsel %vm113, %v899, 0.0
  %902 = vadd.xlane.f32.xlu0 %v901
  %v903 = vpop.xlane.xlu0 %902
  %v904 = vmul.f32 %v903, %v117
  %v905 = vadd.f32 %v904, 1e-05
  %v906 = vrsqrt.pop %v905
  %v907 = vmul.f32 %v895, %v906
  %v908 = vlaneseq
  %v909 = vshrl.u32 %v908, 7
  %v910 = vsub.s32 0, %v909
  %v911 = vrot.slane %v884, %v910
  %913 = vrot.lane.b32.xlu0 %v911, 32
  %v914 = vpop.permute.xlu0 %913
  %v916 = vmul.f32 %v907, %v914
  %v917 = vlaneseq
  %v918 = vshrl.u32 %v917, 7
  %v919 = vsub.s32 1, %v918
  %v920 = vrot.slane %v884, %v919
  %922 = vrot.lane.b32.xlu0 %v920, 32
  %v923 = vpop.permute.xlu0 %922
  %v925 = vadd.f32 %v916, %v923
  %v926 = vmul.f32 %v925, 0.5
  %v927 = vmul.f32 %v925, 0.70710677
  %v928 = verf.f32.pop %v927
  %v929 = vadd.f32 %v928, 1.0
  %v930 = vmul.f32 %v926, %v929
  %s931 = scalar_lea.vmem %s3, 192
  %v932 = vld [vmem:[%s931] sm:$0xff]
  %v933 = vld [vmem:[%s931 + $0x8] sm:$0xff]
  %v934 = vld [vmem:[%s931 + $0x10] sm:$0xff]
  %v935 = vld [vmem:[%s931 + $0x18] sm:$0xff]
  %v936 = vlaneseq
  %v937 = vshrl.u32 %v936, 7
  %v938 = vsub.s32 2, %v937
  %v939 = vrot.slane %v884, %v938
  %941 = vrot.lane.b32.xlu0 %v930, 96
  %v942 = vpop.permute.xlu0 %941
  %v943 = vsel %vm151, %v942, 0
  %945 = vmatprep.subr.mxu0 0.0
  %946 = vmatpush1.msra.mxu0 %v932
  %947 = vmatprep.subr.mxu0 0.0
  %948 = vmatpush1.msra.mxu0 %v933
  %949 = vmatprep.subr.mxu0 0.0
  %950 = vmatpush1.msra.mxu0 %v934
  %951 = vmatprep.subr.mxu0 0.0
  %952 = vmatpush1.msra.mxu0 %v935
  %953 = vmatprep.subr.mxu0 0.0
  %954 = vmatpush1.msra.mxu0 0.0
  %955 = vmatprep.subr.mxu0 0.0
  %956 = vmatpush1.msra.mxu0 0.0
  %957 = vmatprep.subr.mxu0 0.0
  %958 = vmatpush1.msra.mxu0 0.0
  %959 = vmatprep.subr.mxu0 0.0
  %960 = vmatpush1.msra.mxu0 0.0
  %961 = vmatprep.subr.mxu0 0.0
  %962 = vmatpush1.msra.mxu0 0.0
  %963 = vmatprep.subr.mxu0 0.0
  %964 = vmatpush1.msra.mxu0 0.0
  %965 = vmatprep.subr.mxu0 0.0
  %966 = vmatpush1.msra.mxu0 0.0
  %967 = vmatprep.subr.mxu0 0.0
  %968 = vmatpush1.msra.mxu0 0.0
  %969 = vmatprep.subr.mxu0 0.0
  %970 = vmatpush1.msra.mxu0 0.0
  %971 = vmatprep.subr.mxu0 0.0
  %972 = vmatpush1.msra.mxu0 0.0
  %973 = vmatprep.subr.mxu0 0.0
  %974 = vmatpush1.msra.mxu0 0.0
  %975 = vmatprep.subr.mxu0 0.0
  %976 = vmatpush1.msra.mxu0 0.0
  %977 = vmatprep.subr.mxu0 0.0
  %978 = vmatpush1.msra.mxu0 0.0
  %979 = vmatprep.subr.mxu0 0.0
  %980 = vmatpush1.msra.mxu0 0.0
  %981 = vmatprep.subr.mxu0 0.0
  %982 = vmatpush1.msra.mxu0 0.0
  %983 = vmatprep.subr.mxu0 0.0
  %984 = vmatpush1.msra.mxu0 0.0
  %985 = vmatprep.subr.mxu0 0.0
  %986 = vmatpush1.msra.mxu0 0.0
  %987 = vmatprep.subr.mxu0 0.0
  %988 = vmatpush1.msra.mxu0 0.0
  %989 = vmatprep.subr.mxu0 0.0
  %990 = vmatpush1.msra.mxu0 0.0
  %991 = vmatprep.subr.mxu0 0.0
  %992 = vmatpush1.msra.mxu0 0.0
  %993 = vmatprep.subr.mxu0 0.0
  %994 = vmatpush1.msra.mxu0 0.0
  %995 = vmatprep.subr.mxu0 0.0
  %996 = vmatpush1.msra.mxu0 0.0
  %997 = vmatprep.subr.mxu0 0.0
  %998 = vmatpush1.msra.mxu0 0.0
  %999 = vmatprep.subr.mxu0 0.0
  %1000 = vmatpush1.msra.mxu0 0.0
  %1001 = vmatprep.subr.mxu0 0.0
  %1002 = vmatpush1.msra.mxu0 0.0
  %1003 = vmatprep.subr.mxu0 0.0
  %1004 = vmatpush1.msra.mxu0 0.0
  %1005 = vmatprep.subr.mxu0 0.0
  %1006 = vmatpush1.msra.mxu0 0.0
  %1007 = vmatprep.subr.mxu0 0.0
  %1008 = vmatpush1.msra.mxu0 0.0
  %1009 = vmatprep.mubr.f32.mxu0 0.0
  %1010 = vmatmul.mubr.f32.gmra.mrb[0].mxu0 %v943
  %v1011 = vpop.f32.mrb[0].mxu0
  %v1012 = vadd.f32 %v939, %v1011
  %v1013 = vpop.f32.mrb[0].mxu0
  %1014 = vdwg.mxu0
  %v1015 = vsel %vm113, %v1012, 0.0
  %1016 = vadd.xlane.f32.xlu0 %v1015
  %v1017 = vpop.xlane.xlu0 %1016
  %v1018 = vmul.f32 %v1017, %v117
  %v1019 = vsub.f32 %v1012, %v1018
  %v1020 = vmul.f32 %v1019, %v1019
  %v1021 = vsel %vm113, %v1020, 0.0
  %1022 = vadd.xlane.f32.xlu0 %v1021
  %v1023 = vpop.xlane.xlu0 %1022
  %v1024 = vmul.f32 %v1023, %v117
  %v1025 = vadd.f32 %v1024, 1e-05
  %v1026 = vrsqrt.pop %v1025
  %v1027 = vmul.f32 %v1019, %v1026
  %v1028 = vlaneseq
  %v1029 = vshrl.u32 %v1028, 7
  %v1030 = vsub.s32 3, %v1029
  %v1031 = vrot.slane %v884, %v1030
  %v1032 = vmul.f32 %v1027, %v1031
  %v1033 = vlaneseq
  %v1034 = vshrl.u32 %v1033, 7
  %v1035 = vsub.s32 4, %v1034
  %v1036 = vrot.slane %v884, %v1035
  %v1037 = vadd.f32 %v1032, %v1036
  %v1038 = vmul.f32 %v1037, 0.5
  %v1039 = vmul.f32 %v1037, 0.70710677
  %v1040 = verf.f32.pop %v1039
  %v1041 = vadd.f32 %v1040, 1.0
  %v1042 = vmul.f32 %v1038, %v1041
  %s1043 = scalar_lea.vmem %s3, 224
  %v1044 = vld [vmem:[%s1043] sm:$0xff]
  %v1045 = vld [vmem:[%s1043 + $0x8] sm:$0xff]
  %v1046 = vld [vmem:[%s1043 + $0x10] sm:$0xff]
  %v1047 = vld [vmem:[%s1043 + $0x18] sm:$0xff]
  %v1048 = vlaneseq
  %v1049 = vshrl.u32 %v1048, 7
  %v1050 = vsub.s32 5, %v1049
  %v1051 = vrot.slane %v884, %v1050
  %v1053 = vsel %vm151, %v1042, 0
  %1055 = vmatprep.subr.mxu0 0.0
  %1056 = vmatpush1.msra.mxu0 %v1044
  %1057 = vmatprep.subr.mxu0 0.0
  %1058 = vmatpush1.msra.mxu0 %v1045
  %1059 = vmatprep.subr.mxu0 0.0
  %1060 = vmatpush1.msra.mxu0 %v1046
  %1061 = vmatprep.subr.mxu0 0.0
  %1062 = vmatpush1.msra.mxu0 %v1047
  %1063 = vmatprep.subr.mxu0 0.0
  %1064 = vmatpush1.msra.mxu0 0.0
  %1065 = vmatprep.subr.mxu0 0.0
  %1066 = vmatpush1.msra.mxu0 0.0
  %1067 = vmatprep.subr.mxu0 0.0
  %1068 = vmatpush1.msra.mxu0 0.0
  %1069 = vmatprep.subr.mxu0 0.0
  %1070 = vmatpush1.msra.mxu0 0.0
  %1071 = vmatprep.subr.mxu0 0.0
  %1072 = vmatpush1.msra.mxu0 0.0
  %1073 = vmatprep.subr.mxu0 0.0
  %1074 = vmatpush1.msra.mxu0 0.0
  %1075 = vmatprep.subr.mxu0 0.0
  %1076 = vmatpush1.msra.mxu0 0.0
  %1077 = vmatprep.subr.mxu0 0.0
  %1078 = vmatpush1.msra.mxu0 0.0
  %1079 = vmatprep.subr.mxu0 0.0
  %1080 = vmatpush1.msra.mxu0 0.0
  %1081 = vmatprep.subr.mxu0 0.0
  %1082 = vmatpush1.msra.mxu0 0.0
  %1083 = vmatprep.subr.mxu0 0.0
  %1084 = vmatpush1.msra.mxu0 0.0
  %1085 = vmatprep.subr.mxu0 0.0
  %1086 = vmatpush1.msra.mxu0 0.0
  %1087 = vmatprep.subr.mxu0 0.0
  %1088 = vmatpush1.msra.mxu0 0.0
  %1089 = vmatprep.subr.mxu0 0.0
  %1090 = vmatpush1.msra.mxu0 0.0
  %1091 = vmatprep.subr.mxu0 0.0
  %1092 = vmatpush1.msra.mxu0 0.0
  %1093 = vmatprep.subr.mxu0 0.0
  %1094 = vmatpush1.msra.mxu0 0.0
  %1095 = vmatprep.subr.mxu0 0.0
  %1096 = vmatpush1.msra.mxu0 0.0
  %1097 = vmatprep.subr.mxu0 0.0
  %1098 = vmatpush1.msra.mxu0 0.0
  %1099 = vmatprep.subr.mxu0 0.0
  %1100 = vmatpush1.msra.mxu0 0.0
  %1101 = vmatprep.subr.mxu0 0.0
  %1102 = vmatpush1.msra.mxu0 0.0
  %1103 = vmatprep.subr.mxu0 0.0
  %1104 = vmatpush1.msra.mxu0 0.0
  %1105 = vmatprep.subr.mxu0 0.0
  %1106 = vmatpush1.msra.mxu0 0.0
  %1107 = vmatprep.subr.mxu0 0.0
  %1108 = vmatpush1.msra.mxu0 0.0
  %1109 = vmatprep.subr.mxu0 0.0
  %1110 = vmatpush1.msra.mxu0 0.0
  %1111 = vmatprep.subr.mxu0 0.0
  %1112 = vmatpush1.msra.mxu0 0.0
  %1113 = vmatprep.subr.mxu0 0.0
  %1114 = vmatpush1.msra.mxu0 0.0
  %1115 = vmatprep.subr.mxu0 0.0
  %1116 = vmatpush1.msra.mxu0 0.0
  %1117 = vmatprep.subr.mxu0 0.0
  %1118 = vmatpush1.msra.mxu0 0.0
  %1119 = vmatprep.mubr.f32.mxu0 0.0
  %1120 = vmatmul.mubr.f32.gmra.mrb[0].mxu0 %v1053
  %v1121 = vpop.f32.mrb[0].mxu0
  %v1122 = vadd.f32 %v1051, %v1121
  %v1123 = vpop.f32.mrb[0].mxu0
  %1124 = vdwg.mxu0
  %v1125 = vsel %vm113, %v1122, 0.0
  %1126 = vadd.xlane.f32.xlu0 %v1125
  %v1127 = vpop.xlane.xlu0 %1126
  %v1128 = vmul.f32 %v1127, %v117
  %v1129 = vsub.f32 %v1122, %v1128
  %v1130 = vmul.f32 %v1129, %v1129
  %v1131 = vsel %vm113, %v1130, 0.0
  %1132 = vadd.xlane.f32.xlu0 %v1131
  %v1133 = vpop.xlane.xlu0 %1132
  %v1134 = vmul.f32 %v1133, %v117
  %v1135 = vadd.f32 %v1134, 1e-05
  %v1136 = vrsqrt.pop %v1135
  %v1137 = vmul.f32 %v1129, %v1136
  %v1138 = vlaneseq
  %v1139 = vshrl.u32 %v1138, 7
  %v1140 = vsub.s32 6, %v1139
  %v1141 = vrot.slane %v884, %v1140
  %v1142 = vmul.f32 %v1137, %v1141
  %v1143 = vlaneseq
  %v1144 = vshrl.u32 %v1143, 7
  %v1145 = vsub.s32 7, %v1144
  %v1146 = vrot.slane %v884, %v1145
  %v1147 = vadd.f32 %v1142, %v1146
  %v1148 = vmul.f32 %v1147, 0.5
  %v1149 = vmul.f32 %v1147, 0.70710677
  %v1150 = verf.f32.pop %v1149
  %v1151 = vadd.f32 %v1150, 1.0
  %v1152 = vmul.f32 %v1148, %v1151
  %1154 = vrot.lane.b32.xlu0 %v1152, 32
  %v1155 = vpop.permute.xlu0 %1154
  %v1157 = vadd.f32 %v930, %v1155
  %s1158 = scalar_lea.vmem %s3, 256
  %v1159 = vld [vmem:[%s1158] sm:$0xff]
  %v1160 = vld [vmem:[%s1158 + $0x8] sm:$0xff]
  %v1161 = vld [vmem:[%s1158 + $0x10] sm:$0xff]
  %v1162 = vld [vmem:[%s1158 + $0x18] sm:$0xff]
  %v1163 = vlaneseq
  %v1164 = vshrl.u32 %v1163, 7
  %v1165 = vsub.s32 0, %v1164
  %v1166 = vrot.slane %v885, %v1165
  %1168 = vrot.lane.b32.xlu0 %v1157, 96
  %v1169 = vpop.permute.xlu0 %1168
  %v1170 = vsel %vm151, %v1169, 0
  %1172 = vmatprep.subr.mxu0 0.0
  %1173 = vmatpush1.msra.mxu0 %v1159
  %1174 = vmatprep.subr.mxu0 0.0
  %1175 = vmatpush1.msra.mxu0 %v1160
  %1176 = vmatprep.subr.mxu0 0.0
  %1177 = vmatpush1.msra.mxu0 %v1161
  %1178 = vmatprep.subr.mxu0 0.0
  %1179 = vmatpush1.msra.mxu0 %v1162
  %1180 = vmatprep.subr.mxu0 0.0
  %1181 = vmatpush1.msra.mxu0 0.0
  %1182 = vmatprep.subr.mxu0 0.0
  %1183 = vmatpush1.msra.mxu0 0.0
  %1184 = vmatprep.subr.mxu0 0.0
  %1185 = vmatpush1.msra.mxu0 0.0
  %1186 = vmatprep.subr.mxu0 0.0
  %1187 = vmatpush1.msra.mxu0 0.0
  %1188 = vmatprep.subr.mxu0 0.0
  %1189 = vmatpush1.msra.mxu0 0.0
  %1190 = vmatprep.subr.mxu0 0.0
  %1191 = vmatpush1.msra.mxu0 0.0
  %1192 = vmatprep.subr.mxu0 0.0
  %1193 = vmatpush1.msra.mxu0 0.0
  %1194 = vmatprep.subr.mxu0 0.0
  %1195 = vmatpush1.msra.mxu0 0.0
  %1196 = vmatprep.subr.mxu0 0.0
  %1197 = vmatpush1.msra.mxu0 0.0
  %1198 = vmatprep.subr.mxu0 0.0
  %1199 = vmatpush1.msra.mxu0 0.0
  %1200 = vmatprep.subr.mxu0 0.0
  %1201 = vmatpush1.msra.mxu0 0.0
  %1202 = vmatprep.subr.mxu0 0.0
  %1203 = vmatpush1.msra.mxu0 0.0
  %1204 = vmatprep.subr.mxu0 0.0
  %1205 = vmatpush1.msra.mxu0 0.0
  %1206 = vmatprep.subr.mxu0 0.0
  %1207 = vmatpush1.msra.mxu0 0.0
  %1208 = vmatprep.subr.mxu0 0.0
  %1209 = vmatpush1.msra.mxu0 0.0
  %1210 = vmatprep.subr.mxu0 0.0
  %1211 = vmatpush1.msra.mxu0 0.0
  %1212 = vmatprep.subr.mxu0 0.0
  %1213 = vmatpush1.msra.mxu0 0.0
  %1214 = vmatprep.subr.mxu0 0.0
  %1215 = vmatpush1.msra.mxu0 0.0
  %1216 = vmatprep.subr.mxu0 0.0
  %1217 = vmatpush1.msra.mxu0 0.0
  %1218 = vmatprep.subr.mxu0 0.0
  %1219 = vmatpush1.msra.mxu0 0.0
  %1220 = vmatprep.subr.mxu0 0.0
  %1221 = vmatpush1.msra.mxu0 0.0
  %1222 = vmatprep.subr.mxu0 0.0
  %1223 = vmatpush1.msra.mxu0 0.0
  %1224 = vmatprep.subr.mxu0 0.0
  %1225 = vmatpush1.msra.mxu0 0.0
  %1226 = vmatprep.subr.mxu0 0.0
  %1227 = vmatpush1.msra.mxu0 0.0
  %1228 = vmatprep.subr.mxu0 0.0
  %1229 = vmatpush1.msra.mxu0 0.0
  %1230 = vmatprep.subr.mxu0 0.0
  %1231 = vmatpush1.msra.mxu0 0.0
  %1232 = vmatprep.subr.mxu0 0.0
  %1233 = vmatpush1.msra.mxu0 0.0
  %1234 = vmatprep.subr.mxu0 0.0
  %1235 = vmatpush1.msra.mxu0 0.0
  %1236 = vmatprep.mubr.f32.mxu0 0.0
  %1237 = vmatmul.mubr.f32.gmra.mrb[0].mxu0 %v1170
  %v1238 = vpop.f32.mrb[0].mxu0
  %v1239 = vadd.f32 %v1166, %v1238
  %v1240 = vpop.f32.mrb[0].mxu0
  %1241 = vdwg.mxu0
  %v1242 = vsel %vm113, %v1239, 0.0
  %1243 = vadd.xlane.f32.xlu0 %v1242
  %v1244 = vpop.xlane.xlu0 %1243
  %v1245 = vmul.f32 %v1244, %v117
  %v1246 = vsub.f32 %v1239, %v1245
  %v1247 = vmul.f32 %v1246, %v1246
  %v1248 = vsel %vm113, %v1247, 0.0
  %1249 = vadd.xlane.f32.xlu0 %v1248
  %v1250 = vpop.xlane.xlu0 %1249
  %v1251 = vmul.f32 %v1250, %v117
  %v1252 = vadd.f32 %v1251, 1e-05
  %v1253 = vrsqrt.pop %v1252
  %v1254 = vmul.f32 %v1246, %v1253
  %v1255 = vlaneseq
  %v1256 = vshrl.u32 %v1255, 7
  %v1257 = vsub.s32 1, %v1256
  %v1258 = vrot.slane %v885, %v1257
  %v1259 = vmul.f32 %v1254, %v1258
  %v1260 = vlaneseq
  %v1261 = vshrl.u32 %v1260, 7
  %v1262 = vsub.s32 2, %v1261
  %v1263 = vrot.slane %v885, %v1262
  %v1264 = vadd.f32 %v1259, %v1263
  %v1265 = vmul.f32 %v1264, 0.5
  %v1266 = vmul.f32 %v1264, 0.70710677
  %v1267 = verf.f32.pop %v1266
  %v1268 = vadd.f32 %v1267, 1.0
  %v1269 = vmul.f32 %v1265, %v1268
  %s1270 = scalar_lea.vmem %s3, 288
  %v1271 = vld [vmem:[%s1270] sm:$0xff]
  %v1272 = vld [vmem:[%s1270 + $0x8] sm:$0xff]
  %v1273 = vld [vmem:[%s1270 + $0x10] sm:$0xff]
  %v1274 = vld [vmem:[%s1270 + $0x18] sm:$0xff]
  %v1275 = vlaneseq
  %v1276 = vshrl.u32 %v1275, 7
  %v1277 = vsub.s32 3, %v1276
  %v1278 = vrot.slane %v885, %v1277
  %v1280 = vsel %vm151, %v1269, 0
  %1282 = vmatprep.subr.mxu0 0.0
  %1283 = vmatpush1.msra.mxu0 %v1271
  %1284 = vmatprep.subr.mxu0 0.0
  %1285 = vmatpush1.msra.mxu0 %v1272
  %1286 = vmatprep.subr.mxu0 0.0
  %1287 = vmatpush1.msra.mxu0 %v1273
  %1288 = vmatprep.subr.mxu0 0.0
  %1289 = vmatpush1.msra.mxu0 %v1274
  %1290 = vmatprep.subr.mxu0 0.0
  %1291 = vmatpush1.msra.mxu0 0.0
  %1292 = vmatprep.subr.mxu0 0.0
  %1293 = vmatpush1.msra.mxu0 0.0
  %1294 = vmatprep.subr.mxu0 0.0
  %1295 = vmatpush1.msra.mxu0 0.0
  %1296 = vmatprep.subr.mxu0 0.0
  %1297 = vmatpush1.msra.mxu0 0.0
  %1298 = vmatprep.subr.mxu0 0.0
  %1299 = vmatpush1.msra.mxu0 0.0
  %1300 = vmatprep.subr.mxu0 0.0
  %1301 = vmatpush1.msra.mxu0 0.0
  %1302 = vmatprep.subr.mxu0 0.0
  %1303 = vmatpush1.msra.mxu0 0.0
  %1304 = vmatprep.subr.mxu0 0.0
  %1305 = vmatpush1.msra.mxu0 0.0
  %1306 = vmatprep.subr.mxu0 0.0
  %1307 = vmatpush1.msra.mxu0 0.0
  %1308 = vmatprep.subr.mxu0 0.0
  %1309 = vmatpush1.msra.mxu0 0.0
  %1310 = vmatprep.subr.mxu0 0.0
  %1311 = vmatpush1.msra.mxu0 0.0
  %1312 = vmatprep.subr.mxu0 0.0
  %1313 = vmatpush1.msra.mxu0 0.0
  %1314 = vmatprep.subr.mxu0 0.0
  %1315 = vmatpush1.msra.mxu0 0.0
  %1316 = vmatprep.subr.mxu0 0.0
  %1317 = vmatpush1.msra.mxu0 0.0
  %1318 = vmatprep.subr.mxu0 0.0
  %1319 = vmatpush1.msra.mxu0 0.0
  %1320 = vmatprep.subr.mxu0 0.0
  %1321 = vmatpush1.msra.mxu0 0.0
  %1322 = vmatprep.subr.mxu0 0.0
  %1323 = vmatpush1.msra.mxu0 0.0
  %1324 = vmatprep.subr.mxu0 0.0
  %1325 = vmatpush1.msra.mxu0 0.0
  %1326 = vmatprep.subr.mxu0 0.0
  %1327 = vmatpush1.msra.mxu0 0.0
  %1328 = vmatprep.subr.mxu0 0.0
  %1329 = vmatpush1.msra.mxu0 0.0
  %1330 = vmatprep.subr.mxu0 0.0
  %1331 = vmatpush1.msra.mxu0 0.0
  %1332 = vmatprep.subr.mxu0 0.0
  %1333 = vmatpush1.msra.mxu0 0.0
  %1334 = vmatprep.subr.mxu0 0.0
  %1335 = vmatpush1.msra.mxu0 0.0
  %1336 = vmatprep.subr.mxu0 0.0
  %1337 = vmatpush1.msra.mxu0 0.0
  %1338 = vmatprep.subr.mxu0 0.0
  %1339 = vmatpush1.msra.mxu0 0.0
  %1340 = vmatprep.subr.mxu0 0.0
  %1341 = vmatpush1.msra.mxu0 0.0
  %1342 = vmatprep.subr.mxu0 0.0
  %1343 = vmatpush1.msra.mxu0 0.0
  %1344 = vmatprep.subr.mxu0 0.0
  %1345 = vmatpush1.msra.mxu0 0.0
  %1346 = vmatprep.mubr.f32.mxu0 0.0
  %1347 = vmatmul.mubr.f32.gmra.mrb[0].mxu0 %v1280
  %v1348 = vpop.f32.mrb[0].mxu0
  %v1349 = vadd.f32 %v1278, %v1348
  %v1350 = vpop.f32.mrb[0].mxu0
  %1351 = vdwg.mxu0
  %v1352 = vsel %vm113, %v1349, 0.0
  %1353 = vadd.xlane.f32.xlu0 %v1352
  %v1354 = vpop.xlane.xlu0 %1353
  %v1355 = vmul.f32 %v1354, %v117
  %v1356 = vsub.f32 %v1349, %v1355
  %v1357 = vmul.f32 %v1356, %v1356
  %v1358 = vsel %vm113, %v1357, 0.0
  %1359 = vadd.xlane.f32.xlu0 %v1358
  %v1360 = vpop.xlane.xlu0 %1359
  %v1361 = vmul.f32 %v1360, %v117
  %v1362 = vadd.f32 %v1361, 1e-05
  %v1363 = vrsqrt.pop %v1362
  %v1364 = vmul.f32 %v1356, %v1363
  %v1365 = vlaneseq
  %v1366 = vshrl.u32 %v1365, 7
  %v1367 = vsub.s32 4, %v1366
  %v1368 = vrot.slane %v885, %v1367
  %v1369 = vmul.f32 %v1364, %v1368
  %v1370 = vlaneseq
  %v1371 = vshrl.u32 %v1370, 7
  %v1372 = vsub.s32 5, %v1371
  %v1373 = vrot.slane %v885, %v1372
  %v1374 = vadd.f32 %v1369, %v1373
  %v1375 = vmul.f32 %v1374, 0.5
  %v1376 = vmul.f32 %v1374, 0.70710677
  %v1377 = verf.f32.pop %v1376
  %v1378 = vadd.f32 %v1377, 1.0
  %v1379 = vmul.f32 %v1375, %v1378
  %1381 = vrot.lane.b32.xlu0 %v1379, 32
  %v1382 = vpop.permute.xlu0 %1381
  %v1384 = vadd.f32 %v1157, %v1382
  %s1385 = scalar_lea.vmem %s3, 320
  %v1386 = vld [vmem:[%s1385] sm:$0xff]
  %v1387 = vld [vmem:[%s1385 + $0x8] sm:$0xff]
  %v1388 = vld [vmem:[%s1385 + $0x10] sm:$0xff]
  %v1389 = vld [vmem:[%s1385 + $0x18] sm:$0xff]
  %v1390 = vlaneseq
  %v1391 = vshrl.u32 %v1390, 7
  %v1392 = vsub.s32 6, %v1391
  %v1393 = vrot.slane %v885, %v1392
  %1395 = vrot.lane.b32.xlu0 %v1384, 96
  %v1396 = vpop.permute.xlu0 %1395
  %v1397 = vsel %vm151, %v1396, 0
  %1399 = vmatprep.subr.mxu0 0.0
  %1400 = vmatpush1.msra.mxu0 %v1386
  %1401 = vmatprep.subr.mxu0 0.0
  %1402 = vmatpush1.msra.mxu0 %v1387
  %1403 = vmatprep.subr.mxu0 0.0
  %1404 = vmatpush1.msra.mxu0 %v1388
  %1405 = vmatprep.subr.mxu0 0.0
  %1406 = vmatpush1.msra.mxu0 %v1389
  %1407 = vmatprep.subr.mxu0 0.0
  %1408 = vmatpush1.msra.mxu0 0.0
  %1409 = vmatprep.subr.mxu0 0.0
  %1410 = vmatpush1.msra.mxu0 0.0
  %1411 = vmatprep.subr.mxu0 0.0
  %1412 = vmatpush1.msra.mxu0 0.0
  %1413 = vmatprep.subr.mxu0 0.0
  %1414 = vmatpush1.msra.mxu0 0.0
  %1415 = vmatprep.subr.mxu0 0.0
  %1416 = vmatpush1.msra.mxu0 0.0
  %1417 = vmatprep.subr.mxu0 0.0
  %1418 = vmatpush1.msra.mxu0 0.0
  %1419 = vmatprep.subr.mxu0 0.0
  %1420 = vmatpush1.msra.mxu0 0.0
  %1421 = vmatprep.subr.mxu0 0.0
  %1422 = vmatpush1.msra.mxu0 0.0
  %1423 = vmatprep.subr.mxu0 0.0
  %1424 = vmatpush1.msra.mxu0 0.0
  %1425 = vmatprep.subr.mxu0 0.0
  %1426 = vmatpush1.msra.mxu0 0.0
  %1427 = vmatprep.subr.mxu0 0.0
  %1428 = vmatpush1.msra.mxu0 0.0
  %1429 = vmatprep.subr.mxu0 0.0
  %1430 = vmatpush1.msra.mxu0 0.0
  %1431 = vmatprep.subr.mxu0 0.0
  %1432 = vmatpush1.msra.mxu0 0.0
  %1433 = vmatprep.subr.mxu0 0.0
  %1434 = vmatpush1.msra.mxu0 0.0
  %1435 = vmatprep.subr.mxu0 0.0
  %1436 = vmatpush1.msra.mxu0 0.0
  %1437 = vmatprep.subr.mxu0 0.0
  %1438 = vmatpush1.msra.mxu0 0.0
  %1439 = vmatprep.subr.mxu0 0.0
  %1440 = vmatpush1.msra.mxu0 0.0
  %1441 = vmatprep.subr.mxu0 0.0
  %1442 = vmatpush1.msra.mxu0 0.0
  %1443 = vmatprep.subr.mxu0 0.0
  %1444 = vmatpush1.msra.mxu0 0.0
  %1445 = vmatprep.subr.mxu0 0.0
  %1446 = vmatpush1.msra.mxu0 0.0
  %1447 = vmatprep.subr.mxu0 0.0
  %1448 = vmatpush1.msra.mxu0 0.0
  %1449 = vmatprep.subr.mxu0 0.0
  %1450 = vmatpush1.msra.mxu0 0.0
  %1451 = vmatprep.subr.mxu0 0.0
  %1452 = vmatpush1.msra.mxu0 0.0
  %1453 = vmatprep.subr.mxu0 0.0
  %1454 = vmatpush1.msra.mxu0 0.0
  %1455 = vmatprep.subr.mxu0 0.0
  %1456 = vmatpush1.msra.mxu0 0.0
  %1457 = vmatprep.subr.mxu0 0.0
  %1458 = vmatpush1.msra.mxu0 0.0
  %1459 = vmatprep.subr.mxu0 0.0
  %1460 = vmatpush1.msra.mxu0 0.0
  %1461 = vmatprep.subr.mxu0 0.0
  %1462 = vmatpush1.msra.mxu0 0.0
  %1463 = vmatprep.mubr.f32.mxu0 0.0
  %1464 = vmatmul.mubr.f32.gmra.mrb[0].mxu0 %v1397
  %v1465 = vpop.f32.mrb[0].mxu0
  %v1466 = vadd.f32 %v1393, %v1465
  %v1467 = vpop.f32.mrb[0].mxu0
  %1468 = vdwg.mxu0
  %v1469 = vsel %vm113, %v1466, 0.0
  %1470 = vadd.xlane.f32.xlu0 %v1469
  %v1471 = vpop.xlane.xlu0 %1470
  %v1472 = vmul.f32 %v1471, %v117
  %v1473 = vsub.f32 %v1466, %v1472
  %v1474 = vmul.f32 %v1473, %v1473
  %v1475 = vsel %vm113, %v1474, 0.0
  %1476 = vadd.xlane.f32.xlu0 %v1475
  %v1477 = vpop.xlane.xlu0 %1476
  %v1478 = vmul.f32 %v1477, %v117
  %v1479 = vadd.f32 %v1478, 1e-05
  %v1480 = vrsqrt.pop %v1479
  %v1481 = vmul.f32 %v1473, %v1480
  %v1482 = vlaneseq
  %v1483 = vshrl.u32 %v1482, 7
  %v1484 = vsub.s32 7, %v1483
  %v1485 = vrot.slane %v885, %v1484
  %v1486 = vmul.f32 %v1481, %v1485
  %v1487 = vlaneseq
  %v1488 = vshrl.u32 %v1487, 7
  %v1489 = vsub.s32 0, %v1488
  %v1490 = vrot.slane %v886, %v1489
  %v1491 = vadd.f32 %v1486, %v1490
  %v1492 = vmul.f32 %v1491, 0.5
  %v1493 = vmul.f32 %v1491, 0.70710677
  %v1494 = verf.f32.pop %v1493
  %v1495 = vadd.f32 %v1494, 1.0
  %v1496 = vmul.f32 %v1492, %v1495
  %s1497 = scalar_lea.vmem %s3, 352
  %v1498 = vld [vmem:[%s1497] sm:$0xff]
  %v1499 = vld [vmem:[%s1497 + $0x8] sm:$0xff]
  %v1500 = vld [vmem:[%s1497 + $0x10] sm:$0xff]
  %v1501 = vld [vmem:[%s1497 + $0x18] sm:$0xff]
  %v1502 = vlaneseq
  %v1503 = vshrl.u32 %v1502, 7
  %v1504 = vsub.s32 1, %v1503
  %v1505 = vrot.slane %v886, %v1504
  %v1507 = vsel %vm151, %v1496, 0
  %1509 = vmatprep.subr.mxu0 0.0
  %1510 = vmatpush1.msra.mxu0 %v1498
  %1511 = vmatprep.subr.mxu0 0.0
  %1512 = vmatpush1.msra.mxu0 %v1499
  %1513 = vmatprep.subr.mxu0 0.0
  %1514 = vmatpush1.msra.mxu0 %v1500
  %1515 = vmatprep.subr.mxu0 0.0
  %1516 = vmatpush1.msra.mxu0 %v1501
  %1517 = vmatprep.subr.mxu0 0.0
  %1518 = vmatpush1.msra.mxu0 0.0
  %1519 = vmatprep.subr.mxu0 0.0
  %1520 = vmatpush1.msra.mxu0 0.0
  %1521 = vmatprep.subr.mxu0 0.0
  %1522 = vmatpush1.msra.mxu0 0.0
  %1523 = vmatprep.subr.mxu0 0.0
  %1524 = vmatpush1.msra.mxu0 0.0
  %1525 = vmatprep.subr.mxu0 0.0
  %1526 = vmatpush1.msra.mxu0 0.0
  %1527 = vmatprep.subr.mxu0 0.0
  %1528 = vmatpush1.msra.mxu0 0.0
  %1529 = vmatprep.subr.mxu0 0.0
  %1530 = vmatpush1.msra.mxu0 0.0
  %1531 = vmatprep.subr.mxu0 0.0
  %1532 = vmatpush1.msra.mxu0 0.0
  %1533 = vmatprep.subr.mxu0 0.0
  %1534 = vmatpush1.msra.mxu0 0.0
  %1535 = vmatprep.subr.mxu0 0.0
  %1536 = vmatpush1.msra.mxu0 0.0
  %1537 = vmatprep.subr.mxu0 0.0
  %1538 = vmatpush1.msra.mxu0 0.0
  %1539 = vmatprep.subr.mxu0 0.0
  %1540 = vmatpush1.msra.mxu0 0.0
  %1541 = vmatprep.subr.mxu0 0.0
  %1542 = vmatpush1.msra.mxu0 0.0
  %1543 = vmatprep.subr.mxu0 0.0
  %1544 = vmatpush1.msra.mxu0 0.0
  %1545 = vmatprep.subr.mxu0 0.0
  %1546 = vmatpush1.msra.mxu0 0.0
  %1547 = vmatprep.subr.mxu0 0.0
  %1548 = vmatpush1.msra.mxu0 0.0
  %1549 = vmatprep.subr.mxu0 0.0
  %1550 = vmatpush1.msra.mxu0 0.0
  %1551 = vmatprep.subr.mxu0 0.0
  %1552 = vmatpush1.msra.mxu0 0.0
  %1553 = vmatprep.subr.mxu0 0.0
  %1554 = vmatpush1.msra.mxu0 0.0
  %1555 = vmatprep.subr.mxu0 0.0
  %1556 = vmatpush1.msra.mxu0 0.0
  %1557 = vmatprep.subr.mxu0 0.0
  %1558 = vmatpush1.msra.mxu0 0.0
  %1559 = vmatprep.subr.mxu0 0.0
  %1560 = vmatpush1.msra.mxu0 0.0
  %1561 = vmatprep.subr.mxu0 0.0
  %1562 = vmatpush1.msra.mxu0 0.0
  %1563 = vmatprep.subr.mxu0 0.0
  %1564 = vmatpush1.msra.mxu0 0.0
  %1565 = vmatprep.subr.mxu0 0.0
  %1566 = vmatpush1.msra.mxu0 0.0
  %1567 = vmatprep.subr.mxu0 0.0
  %1568 = vmatpush1.msra.mxu0 0.0
  %1569 = vmatprep.subr.mxu0 0.0
  %1570 = vmatpush1.msra.mxu0 0.0
  %1571 = vmatprep.subr.mxu0 0.0
  %1572 = vmatpush1.msra.mxu0 0.0
  %1573 = vmatprep.mubr.f32.mxu0 0.0
  %1574 = vmatmul.mubr.f32.gmra.mrb[0].mxu0 %v1507
  %v1575 = vpop.f32.mrb[0].mxu0
  %v1576 = vadd.f32 %v1505, %v1575
  %v1577 = vpop.f32.mrb[0].mxu0
  %1578 = vdwg.mxu0
  %v1579 = vsel %vm113, %v1576, 0.0
  %1580 = vadd.xlane.f32.xlu0 %v1579
  %v1581 = vpop.xlane.xlu0 %1580
  %v1582 = vmul.f32 %v1581, %v117
  %v1583 = vsub.f32 %v1576, %v1582
  %v1584 = vmul.f32 %v1583, %v1583
  %v1585 = vsel %vm113, %v1584, 0.0
  %1586 = vadd.xlane.f32.xlu0 %v1585
  %v1587 = vpop.xlane.xlu0 %1586
  %v1588 = vmul.f32 %v1587, %v117
  %v1589 = vadd.f32 %v1588, 1e-05
  %v1590 = vrsqrt.pop %v1589
  %v1591 = vmul.f32 %v1583, %v1590
  %v1592 = vlaneseq
  %v1593 = vshrl.u32 %v1592, 7
  %v1594 = vsub.s32 2, %v1593
  %v1595 = vrot.slane %v886, %v1594
  %v1596 = vmul.f32 %v1591, %v1595
  %v1597 = vlaneseq
  %v1598 = vshrl.u32 %v1597, 7
  %v1599 = vsub.s32 3, %v1598
  %v1600 = vrot.slane %v886, %v1599
  %v1601 = vadd.f32 %v1596, %v1600
  %v1602 = vmul.f32 %v1601, 0.5
  %v1603 = vmul.f32 %v1601, 0.70710677
  %v1604 = verf.f32.pop %v1603
  %v1605 = vadd.f32 %v1604, 1.0
  %v1606 = vmul.f32 %v1602, %v1605
  %1608 = vrot.lane.b32.xlu0 %v1606, 32
  %v1609 = vpop.permute.xlu0 %1608
  %v1611 = vadd.f32 %v1384, %v1609
  %s1612 = scalar_lea.vmem %s5, 32
  %v1613 = vld [vmem:[%s1612] sm:$0xff]
  %v1614 = vld [vmem:[%s1612 + $0x8] sm:$0xff]
  %v1615 = vld [vmem:[%s1612 + $0x10] sm:$0xff]
  %v1616 = vld [vmem:[%s1612 + $0x18] sm:$0xff]
  %1618 = vrot.lane.b32.xlu0 %v1611, 96
  %v1619 = vpop.permute.xlu0 %1618
  %v1620 = vsel %vm151, %v1619, 0
  %1622 = vmatprep.subr.mxu0 0.0
  %1623 = vmatpush1.msra.mxu0 %v1613
  %1624 = vmatprep.subr.mxu0 0.0
  %1625 = vmatpush1.msra.mxu0 %v1614
  %1626 = vmatprep.subr.mxu0 0.0
  %1627 = vmatpush1.msra.mxu0 %v1615
  %1628 = vmatprep.subr.mxu0 0.0
  %1629 = vmatpush1.msra.mxu0 %v1616
  %1630 = vmatprep.subr.mxu0 0.0
  %1631 = vmatpush1.msra.mxu0 0.0
  %1632 = vmatprep.subr.mxu0 0.0
  %1633 = vmatpush1.msra.mxu0 0.0
  %1634 = vmatprep.subr.mxu0 0.0
  %1635 = vmatpush1.msra.mxu0 0.0
  %1636 = vmatprep.subr.mxu0 0.0
  %1637 = vmatpush1.msra.mxu0 0.0
  %1638 = vmatprep.subr.mxu0 0.0
  %1639 = vmatpush1.msra.mxu0 0.0
  %1640 = vmatprep.subr.mxu0 0.0
  %1641 = vmatpush1.msra.mxu0 0.0
  %1642 = vmatprep.subr.mxu0 0.0
  %1643 = vmatpush1.msra.mxu0 0.0
  %1644 = vmatprep.subr.mxu0 0.0
  %1645 = vmatpush1.msra.mxu0 0.0
  %1646 = vmatprep.subr.mxu0 0.0
  %1647 = vmatpush1.msra.mxu0 0.0
  %1648 = vmatprep.subr.mxu0 0.0
  %1649 = vmatpush1.msra.mxu0 0.0
  %1650 = vmatprep.subr.mxu0 0.0
  %1651 = vmatpush1.msra.mxu0 0.0
  %1652 = vmatprep.subr.mxu0 0.0
  %1653 = vmatpush1.msra.mxu0 0.0
  %1654 = vmatprep.subr.mxu0 0.0
  %1655 = vmatpush1.msra.mxu0 0.0
  %1656 = vmatprep.subr.mxu0 0.0
  %1657 = vmatpush1.msra.mxu0 0.0
  %1658 = vmatprep.subr.mxu0 0.0
  %1659 = vmatpush1.msra.mxu0 0.0
  %1660 = vmatprep.subr.mxu0 0.0
  %1661 = vmatpush1.msra.mxu0 0.0
  %1662 = vmatprep.subr.mxu0 0.0
  %1663 = vmatpush1.msra.mxu0 0.0
  %1664 = vmatprep.subr.mxu0 0.0
  %1665 = vmatpush1.msra.mxu0 0.0
  %1666 = vmatprep.subr.mxu0 0.0
  %1667 = vmatpush1.msra.mxu0 0.0
  %1668 = vmatprep.subr.mxu0 0.0
  %1669 = vmatpush1.msra.mxu0 0.0
  %1670 = vmatprep.subr.mxu0 0.0
  %1671 = vmatpush1.msra.mxu0 0.0
  %1672 = vmatprep.subr.mxu0 0.0
  %1673 = vmatpush1.msra.mxu0 0.0
  %1674 = vmatprep.subr.mxu0 0.0
  %1675 = vmatpush1.msra.mxu0 0.0
  %1676 = vmatprep.subr.mxu0 0.0
  %1677 = vmatpush1.msra.mxu0 0.0
  %1678 = vmatprep.subr.mxu0 0.0
  %1679 = vmatpush1.msra.mxu0 0.0
  %1680 = vmatprep.subr.mxu0 0.0
  %1681 = vmatpush1.msra.mxu0 0.0
  %1682 = vmatprep.subr.mxu0 0.0
  %1683 = vmatpush1.msra.mxu0 0.0
  %1684 = vmatprep.subr.mxu0 0.0
  %1685 = vmatpush1.msra.mxu0 0.0
  %1686 = vmatprep.mubr.f32.mxu0 0.0
  %1687 = vmatmul.mubr.f32.gmra.mrb[0].mxu0 %v1620
  %v1688 = vpop.f32.mrb[0].mxu0
  %v1689 = vadd.f32 0.0, %v1688
  %v1690 = vpop.f32.mrb[0].mxu0
  %1691 = vdwg.mxu0
  %s1692 = scalar_lea.vmem %s4, 48
  %v1693 = vld [vmem:[%s1692] sm:$0xff]
  %v1694 = vld [vmem:[%s1692 + $0x8] sm:$0xff]
  %v1695 = vld [vmem:[%s1692 + $0x10] sm:$0xf]
  %1696 = vrot.lane.b32.xlu0 %v107, 64
  %v1697 = vpop.permute.xlu0 %1696
  %v1699 = vsel %vm113, %v1697, 0.0
  %1700 = vadd.xlane.f32.xlu0 %v1699
  %v1701 = vpop.xlane.xlu0 %1700
  %v1702 = vmul.f32 %v1701, %v117
  %v1703 = vsub.f32 %v107, %v1702
  %v1704 = vmul.f32 %v1703, %v1703
  %1706 = vrot.lane.b32.xlu0 %v1704, 64
  %v1707 = vpop.permute.xlu0 %1706
  %v1709 = vsel %vm113, %v1707, 0.0
  %1710 = vadd.xlane.f32.xlu0 %v1709
  %v1711 = vpop.xlane.xlu0 %1710
  %v1712 = vmul.f32 %v1711, %v117
  %v1713 = vadd.f32 %v1712, 1e-05
  %v1714 = vrsqrt.pop %v1713
  %v1715 = vmul.f32 %v1703, %v1714
  %v1716 = vlaneseq
  %v1717 = vshrl.u32 %v1716, 7
  %v1718 = vsub.s32 0, %v1717
  %v1719 = vrot.slane %v1693, %v1718
  %1721 = vrot.lane.b32.xlu0 %v1719, 64
  %v1722 = vpop.permute.xlu0 %1721
  %v1724 = vmul.f32 %v1715, %v1722
  %v1725 = vlaneseq
  %v1726 = vshrl.u32 %v1725, 7
  %v1727 = vsub.s32 1, %v1726
  %v1728 = vrot.slane %v1693, %v1727
  %1730 = vrot.lane.b32.xlu0 %v1728, 64
  %v1731 = vpop.permute.xlu0 %1730
  %v1733 = vadd.f32 %v1724, %v1731
  %v1734 = vmul.f32 %v1733, 0.5
  %v1735 = vmul.f32 %v1733, 0.70710677
  %v1736 = verf.f32.pop %v1735
  %v1737 = vadd.f32 %v1736, 1.0
  %v1738 = vmul.f32 %v1734, %v1737
  %s1739 = scalar_lea.vmem %s3, 384
  %v1740 = vld [vmem:[%s1739] sm:$0xff]
  %v1741 = vld [vmem:[%s1739 + $0x8] sm:$0xff]
  %v1742 = vld [vmem:[%s1739 + $0x10] sm:$0xff]
  %v1743 = vld [vmem:[%s1739 + $0x18] sm:$0xff]
  %v1744 = vlaneseq
  %v1745 = vshrl.u32 %v1744, 7
  %v1746 = vsub.s32 2, %v1745
  %v1747 = vrot.slane %v1693, %v1746
  %1749 = vrot.lane.b32.xlu0 %v1738, 64
  %v1750 = vpop.permute.xlu0 %1749
  %v1751 = vsel %vm151, %v1750, 0
  %1753 = vmatprep.subr.mxu0 0.0
  %1754 = vmatpush1.msra.mxu0 %v1740
  %1755 = vmatprep.subr.mxu0 0.0
  %1756 = vmatpush1.msra.mxu0 %v1741
  %1757 = vmatprep.subr.mxu0 0.0
  %1758 = vmatpush1.msra.mxu0 %v1742
  %1759 = vmatprep.subr.mxu0 0.0
  %1760 = vmatpush1.msra.mxu0 %v1743
  %1761 = vmatprep.subr.mxu0 0.0
  %1762 = vmatpush1.msra.mxu0 0.0
  %1763 = vmatprep.subr.mxu0 0.0
  %1764 = vmatpush1.msra.mxu0 0.0
  %1765 = vmatprep.subr.mxu0 0.0
  %1766 = vmatpush1.msra.mxu0 0.0
  %1767 = vmatprep.subr.mxu0 0.0
  %1768 = vmatpush1.msra.mxu0 0.0
  %1769 = vmatprep.subr.mxu0 0.0
  %1770 = vmatpush1.msra.mxu0 0.0
  %1771 = vmatprep.subr.mxu0 0.0
  %1772 = vmatpush1.msra.mxu0 0.0
  %1773 = vmatprep.subr.mxu0 0.0
  %1774 = vmatpush1.msra.mxu0 0.0
  %1775 = vmatprep.subr.mxu0 0.0
  %1776 = vmatpush1.msra.mxu0 0.0
  %1777 = vmatprep.subr.mxu0 0.0
  %1778 = vmatpush1.msra.mxu0 0.0
  %1779 = vmatprep.subr.mxu0 0.0
  %1780 = vmatpush1.msra.mxu0 0.0
  %1781 = vmatprep.subr.mxu0 0.0
  %1782 = vmatpush1.msra.mxu0 0.0
  %1783 = vmatprep.subr.mxu0 0.0
  %1784 = vmatpush1.msra.mxu0 0.0
  %1785 = vmatprep.subr.mxu0 0.0
  %1786 = vmatpush1.msra.mxu0 0.0
  %1787 = vmatprep.subr.mxu0 0.0
  %1788 = vmatpush1.msra.mxu0 0.0
  %1789 = vmatprep.subr.mxu0 0.0
  %1790 = vmatpush1.msra.mxu0 0.0
  %1791 = vmatprep.subr.mxu0 0.0
  %1792 = vmatpush1.msra.mxu0 0.0
  %1793 = vmatprep.subr.mxu0 0.0
  %1794 = vmatpush1.msra.mxu0 0.0
  %1795 = vmatprep.subr.mxu0 0.0
  %1796 = vmatpush1.msra.mxu0 0.0
  %1797 = vmatprep.subr.mxu0 0.0
  %1798 = vmatpush1.msra.mxu0 0.0
  %1799 = vmatprep.subr.mxu0 0.0
  %1800 = vmatpush1.msra.mxu0 0.0
  %1801 = vmatprep.subr.mxu0 0.0
  %1802 = vmatpush1.msra.mxu0 0.0
  %1803 = vmatprep.subr.mxu0 0.0
  %1804 = vmatpush1.msra.mxu0 0.0
  %1805 = vmatprep.subr.mxu0 0.0
  %1806 = vmatpush1.msra.mxu0 0.0
  %1807 = vmatprep.subr.mxu0 0.0
  %1808 = vmatpush1.msra.mxu0 0.0
  %1809 = vmatprep.subr.mxu0 0.0
  %1810 = vmatpush1.msra.mxu0 0.0
  %1811 = vmatprep.subr.mxu0 0.0
  %1812 = vmatpush1.msra.mxu0 0.0
  %1813 = vmatprep.subr.mxu0 0.0
  %1814 = vmatpush1.msra.mxu0 0.0
  %1815 = vmatprep.subr.mxu0 0.0
  %1816 = vmatpush1.msra.mxu0 0.0
  %1817 = vmatprep.mubr.f32.mxu0 0.0
  %1818 = vmatmul.mubr.f32.gmra.mrb[0].mxu0 %v1751
  %v1819 = vpop.f32.mrb[0].mxu0
  %v1820 = vadd.f32 %v1747, %v1819
  %v1821 = vpop.f32.mrb[0].mxu0
  %1822 = vdwg.mxu0
  %v1823 = vsel %vm113, %v1820, 0.0
  %1824 = vadd.xlane.f32.xlu0 %v1823
  %v1825 = vpop.xlane.xlu0 %1824
  %v1826 = vmul.f32 %v1825, %v117
  %v1827 = vsub.f32 %v1820, %v1826
  %v1828 = vmul.f32 %v1827, %v1827
  %v1829 = vsel %vm113, %v1828, 0.0
  %1830 = vadd.xlane.f32.xlu0 %v1829
  %v1831 = vpop.xlane.xlu0 %1830
  %v1832 = vmul.f32 %v1831, %v117
  %v1833 = vadd.f32 %v1832, 1e-05
  %v1834 = vrsqrt.pop %v1833
  %v1835 = vmul.f32 %v1827, %v1834
  %v1836 = vlaneseq
  %v1837 = vshrl.u32 %v1836, 7
  %v1838 = vsub.s32 3, %v1837
  %v1839 = vrot.slane %v1693, %v1838
  %v1840 = vmul.f32 %v1835, %v1839
  %v1841 = vlaneseq
  %v1842 = vshrl.u32 %v1841, 7
  %v1843 = vsub.s32 4, %v1842
  %v1844 = vrot.slane %v1693, %v1843
  %v1845 = vadd.f32 %v1840, %v1844
  %v1846 = vmul.f32 %v1845, 0.5
  %v1847 = vmul.f32 %v1845, 0.70710677
  %v1848 = verf.f32.pop %v1847
  %v1849 = vadd.f32 %v1848, 1.0
  %v1850 = vmul.f32 %v1846, %v1849
  %s1851 = scalar_lea.vmem %s3, 416
  %v1852 = vld [vmem:[%s1851] sm:$0xff]
  %v1853 = vld [vmem:[%s1851 + $0x8] sm:$0xff]
  %v1854 = vld [vmem:[%s1851 + $0x10] sm:$0xff]
  %v1855 = vld [vmem:[%s1851 + $0x18] sm:$0xff]
  %v1856 = vlaneseq
  %v1857 = vshrl.u32 %v1856, 7
  %v1858 = vsub.s32 5, %v1857
  %v1859 = vrot.slane %v1693, %v1858
  %v1861 = vsel %vm151, %v1850, 0
  %1863 = vmatprep.subr.mxu0 0.0
  %1864 = vmatpush1.msra.mxu0 %v1852
  %1865 = vmatprep.subr.mxu0 0.0
  %1866 = vmatpush1.msra.mxu0 %v1853
  %1867 = vmatprep.subr.mxu0 0.0
  %1868 = vmatpush1.msra.mxu0 %v1854
  %1869 = vmatprep.subr.mxu0 0.0
  %1870 = vmatpush1.msra.mxu0 %v1855
  %1871 = vmatprep.subr.mxu0 0.0
  %1872 = vmatpush1.msra.mxu0 0.0
  %1873 = vmatprep.subr.mxu0 0.0
  %1874 = vmatpush1.msra.mxu0 0.0
  %1875 = vmatprep.subr.mxu0 0.0
  %1876 = vmatpush1.msra.mxu0 0.0
  %1877 = vmatprep.subr.mxu0 0.0
  %1878 = vmatpush1.msra.mxu0 0.0
  %1879 = vmatprep.subr.mxu0 0.0
  %1880 = vmatpush1.msra.mxu0 0.0
  %1881 = vmatprep.subr.mxu0 0.0
  %1882 = vmatpush1.msra.mxu0 0.0
  %1883 = vmatprep.subr.mxu0 0.0
  %1884 = vmatpush1.msra.mxu0 0.0
  %1885 = vmatprep.subr.mxu0 0.0
  %1886 = vmatpush1.msra.mxu0 0.0
  %1887 = vmatprep.subr.mxu0 0.0
  %1888 = vmatpush1.msra.mxu0 0.0
  %1889 = vmatprep.subr.mxu0 0.0
  %1890 = vmatpush1.msra.mxu0 0.0
  %1891 = vmatprep.subr.mxu0 0.0
  %1892 = vmatpush1.msra.mxu0 0.0
  %1893 = vmatprep.subr.mxu0 0.0
  %1894 = vmatpush1.msra.mxu0 0.0
  %1895 = vmatprep.subr.mxu0 0.0
  %1896 = vmatpush1.msra.mxu0 0.0
  %1897 = vmatprep.subr.mxu0 0.0
  %1898 = vmatpush1.msra.mxu0 0.0
  %1899 = vmatprep.subr.mxu0 0.0
  %1900 = vmatpush1.msra.mxu0 0.0
  %1901 = vmatprep.subr.mxu0 0.0
  %1902 = vmatpush1.msra.mxu0 0.0
  %1903 = vmatprep.subr.mxu0 0.0
  %1904 = vmatpush1.msra.mxu0 0.0
  %1905 = vmatprep.subr.mxu0 0.0
  %1906 = vmatpush1.msra.mxu0 0.0
  %1907 = vmatprep.subr.mxu0 0.0
  %1908 = vmatpush1.msra.mxu0 0.0
  %1909 = vmatprep.subr.mxu0 0.0
  %1910 = vmatpush1.msra.mxu0 0.0
  %1911 = vmatprep.subr.mxu0 0.0
  %1912 = vmatpush1.msra.mxu0 0.0
  %1913 = vmatprep.subr.mxu0 0.0
  %1914 = vmatpush1.msra.mxu0 0.0
  %1915 = vmatprep.subr.mxu0 0.0
  %1916 = vmatpush1.msra.mxu0 0.0
  %1917 = vmatprep.subr.mxu0 0.0
  %1918 = vmatpush1.msra.mxu0 0.0
  %1919 = vmatprep.subr.mxu0 0.0
  %1920 = vmatpush1.msra.mxu0 0.0
  %1921 = vmatprep.subr.mxu0 0.0
  %1922 = vmatpush1.msra.mxu0 0.0
  %1923 = vmatprep.subr.mxu0 0.0
  %1924 = vmatpush1.msra.mxu0 0.0
  %1925 = vmatprep.subr.mxu0 0.0
  %1926 = vmatpush1.msra.mxu0 0.0
  %1927 = vmatprep.mubr.f32.mxu0 0.0
  %1928 = vmatmul.mubr.f32.gmra.mrb[0].mxu0 %v1861
  %v1929 = vpop.f32.mrb[0].mxu0
  %v1930 = vadd.f32 %v1859, %v1929
  %v1931 = vpop.f32.mrb[0].mxu0
  %1932 = vdwg.mxu0
  %v1933 = vsel %vm113, %v1930, 0.0
  %1934 = vadd.xlane.f32.xlu0 %v1933
  %v1935 = vpop.xlane.xlu0 %1934
  %v1936 = vmul.f32 %v1935, %v117
  %v1937 = vsub.f32 %v1930, %v1936
  %v1938 = vmul.f32 %v1937, %v1937
  %v1939 = vsel %vm113, %v1938, 0.0
  %1940 = vadd.xlane.f32.xlu0 %v1939
  %v1941 = vpop.xlane.xlu0 %1940
  %v1942 = vmul.f32 %v1941, %v117
  %v1943 = vadd.f32 %v1942, 1e-05
  %v1944 = vrsqrt.pop %v1943
  %v1945 = vmul.f32 %v1937, %v1944
  %v1946 = vlaneseq
  %v1947 = vshrl.u32 %v1946, 7
  %v1948 = vsub.s32 6, %v1947
  %v1949 = vrot.slane %v1693, %v1948
  %v1950 = vmul.f32 %v1945, %v1949
  %v1951 = vlaneseq
  %v1952 = vshrl.u32 %v1951, 7
  %v1953 = vsub.s32 7, %v1952
  %v1954 = vrot.slane %v1693, %v1953
  %v1955 = vadd.f32 %v1950, %v1954
  %v1956 = vmul.f32 %v1955, 0.5
  %v1957 = vmul.f32 %v1955, 0.70710677
  %v1958 = verf.f32.pop %v1957
  %v1959 = vadd.f32 %v1958, 1.0
  %v1960 = vmul.f32 %v1956, %v1959
  %1962 = vrot.lane.b32.xlu0 %v1960, 64
  %v1963 = vpop.permute.xlu0 %1962
  %v1965 = vadd.f32 %v1738, %v1963
  %s1966 = scalar_lea.vmem %s3, 448
  %v1967 = vld [vmem:[%s1966] sm:$0xff]
  %v1968 = vld [vmem:[%s1966 + $0x8] sm:$0xff]
  %v1969 = vld [vmem:[%s1966 + $0x10] sm:$0xff]
  %v1970 = vld [vmem:[%s1966 + $0x18] sm:$0xff]
  %v1971 = vlaneseq
  %v1972 = vshrl.u32 %v1971, 7
  %v1973 = vsub.s32 0, %v1972
  %v1974 = vrot.slane %v1694, %v1973
  %1976 = vrot.lane.b32.xlu0 %v1965, 64
  %v1977 = vpop.permute.xlu0 %1976
  %v1978 = vsel %vm151, %v1977, 0
  %1980 = vmatprep.subr.mxu0 0.0
  %1981 = vmatpush1.msra.mxu0 %v1967
  %1982 = vmatprep.subr.mxu0 0.0
  %1983 = vmatpush1.msra.mxu0 %v1968
  %1984 = vmatprep.subr.mxu0 0.0
  %1985 = vmatpush1.msra.mxu0 %v1969
  %1986 = vmatprep.subr.mxu0 0.0
  %1987 = vmatpush1.msra.mxu0 %v1970
  %1988 = vmatprep.subr.mxu0 0.0
  %1989 = vmatpush1.msra.mxu0 0.0
  %1990 = vmatprep.subr.mxu0 0.0
  %1991 = vmatpush1.msra.mxu0 0.0
  %1992 = vmatprep.subr.mxu0 0.0
  %1993 = vmatpush1.msra.mxu0 0.0
  %1994 = vmatprep.subr.mxu0 0.0
  %1995 = vmatpush1.msra.mxu0 0.0
  %1996 = vmatprep.subr.mxu0 0.0
  %1997 = vmatpush1.msra.mxu0 0.0
  %1998 = vmatprep.subr.mxu0 0.0
  %1999 = vmatpush1.msra.mxu0 0.0
  %2000 = vmatprep.subr.mxu0 0.0
  %2001 = vmatpush1.msra.mxu0 0.0
  %2002 = vmatprep.subr.mxu0 0.0
  %2003 = vmatpush1.msra.mxu0 0.0
  %2004 = vmatprep.subr.mxu0 0.0
  %2005 = vmatpush1.msra.mxu0 0.0
  %2006 = vmatprep.subr.mxu0 0.0
  %2007 = vmatpush1.msra.mxu0 0.0
  %2008 = vmatprep.subr.mxu0 0.0
  %2009 = vmatpush1.msra.mxu0 0.0
  %2010 = vmatprep.subr.mxu0 0.0
  %2011 = vmatpush1.msra.mxu0 0.0
  %2012 = vmatprep.subr.mxu0 0.0
  %2013 = vmatpush1.msra.mxu0 0.0
  %2014 = vmatprep.subr.mxu0 0.0
  %2015 = vmatpush1.msra.mxu0 0.0
  %2016 = vmatprep.subr.mxu0 0.0
  %2017 = vmatpush1.msra.mxu0 0.0
  %2018 = vmatprep.subr.mxu0 0.0
  %2019 = vmatpush1.msra.mxu0 0.0
  %2020 = vmatprep.subr.mxu0 0.0
  %2021 = vmatpush1.msra.mxu0 0.0
  %2022 = vmatprep.subr.mxu0 0.0
  %2023 = vmatpush1.msra.mxu0 0.0
  %2024 = vmatprep.subr.mxu0 0.0
  %2025 = vmatpush1.msra.mxu0 0.0
  %2026 = vmatprep.subr.mxu0 0.0
  %2027 = vmatpush1.msra.mxu0 0.0
  %2028 = vmatprep.subr.mxu0 0.0
  %2029 = vmatpush1.msra.mxu0 0.0
  %2030 = vmatprep.subr.mxu0 0.0
  %2031 = vmatpush1.msra.mxu0 0.0
  %2032 = vmatprep.subr.mxu0 0.0
  %2033 = vmatpush1.msra.mxu0 0.0
  %2034 = vmatprep.subr.mxu0 0.0
  %2035 = vmatpush1.msra.mxu0 0.0
  %2036 = vmatprep.subr.mxu0 0.0
  %2037 = vmatpush1.msra.mxu0 0.0
  %2038 = vmatprep.subr.mxu0 0.0
  %2039 = vmatpush1.msra.mxu0 0.0
  %2040 = vmatprep.subr.mxu0 0.0
  %2041 = vmatpush1.msra.mxu0 0.0
  %2042 = vmatprep.subr.mxu0 0.0
  %2043 = vmatpush1.msra.mxu0 0.0
  %2044 = vmatprep.mubr.f32.mxu0 0.0
  %2045 = vmatmul.mubr.f32.gmra.mrb[0].mxu0 %v1978
  %v2046 = vpop.f32.mrb[0].mxu0
  %v2047 = vadd.f32 %v1974, %v2046
  %v2048 = vpop.f32.mrb[0].mxu0
  %2049 = vdwg.mxu0
  %v2050 = vsel %vm113, %v2047, 0.0
  %2051 = vadd.xlane.f32.xlu0 %v2050
  %v2052 = vpop.xlane.xlu0 %2051
  %v2053 = vmul.f32 %v2052, %v117
  %v2054 = vsub.f32 %v2047, %v2053
  %v2055 = vmul.f32 %v2054, %v2054
  %v2056 = vsel %vm113, %v2055, 0.0
  %2057 = vadd.xlane.f32.xlu0 %v2056
  %v2058 = vpop.xlane.xlu0 %2057
  %v2059 = vmul.f32 %v2058, %v117
  %v2060 = vadd.f32 %v2059, 1e-05
  %v2061 = vrsqrt.pop %v2060
  %v2062 = vmul.f32 %v2054, %v2061
  %v2063 = vlaneseq
  %v2064 = vshrl.u32 %v2063, 7
  %v2065 = vsub.s32 1, %v2064
  %v2066 = vrot.slane %v1694, %v2065
  %v2067 = vmul.f32 %v2062, %v2066
  %v2068 = vlaneseq
  %v2069 = vshrl.u32 %v2068, 7
  %v2070 = vsub.s32 2, %v2069
  %v2071 = vrot.slane %v1694, %v2070
  %v2072 = vadd.f32 %v2067, %v2071
  %v2073 = vmul.f32 %v2072, 0.5
  %v2074 = vmul.f32 %v2072, 0.70710677
  %v2075 = verf.f32.pop %v2074
  %v2076 = vadd.f32 %v2075, 1.0
  %v2077 = vmul.f32 %v2073, %v2076
  %s2078 = scalar_lea.vmem %s3, 480
  %v2079 = vld [vmem:[%s2078] sm:$0xff]
  %v2080 = vld [vmem:[%s2078 + $0x8] sm:$0xff]
  %v2081 = vld [vmem:[%s2078 + $0x10] sm:$0xff]
  %v2082 = vld [vmem:[%s2078 + $0x18] sm:$0xff]
  %v2083 = vlaneseq
  %v2084 = vshrl.u32 %v2083, 7
  %v2085 = vsub.s32 3, %v2084
  %v2086 = vrot.slane %v1694, %v2085
  %v2088 = vsel %vm151, %v2077, 0
  %2090 = vmatprep.subr.mxu0 0.0
  %2091 = vmatpush1.msra.mxu0 %v2079
  %2092 = vmatprep.subr.mxu0 0.0
  %2093 = vmatpush1.msra.mxu0 %v2080
  %2094 = vmatprep.subr.mxu0 0.0
  %2095 = vmatpush1.msra.mxu0 %v2081
  %2096 = vmatprep.subr.mxu0 0.0
  %2097 = vmatpush1.msra.mxu0 %v2082
  %2098 = vmatprep.subr.mxu0 0.0
  %2099 = vmatpush1.msra.mxu0 0.0
  %2100 = vmatprep.subr.mxu0 0.0
  %2101 = vmatpush1.msra.mxu0 0.0
  %2102 = vmatprep.subr.mxu0 0.0
  %2103 = vmatpush1.msra.mxu0 0.0
  %2104 = vmatprep.subr.mxu0 0.0
  %2105 = vmatpush1.msra.mxu0 0.0
  %2106 = vmatprep.subr.mxu0 0.0
  %2107 = vmatpush1.msra.mxu0 0.0
  %2108 = vmatprep.subr.mxu0 0.0
  %2109 = vmatpush1.msra.mxu0 0.0
  %2110 = vmatprep.subr.mxu0 0.0
  %2111 = vmatpush1.msra.mxu0 0.0
  %2112 = vmatprep.subr.mxu0 0.0
  %2113 = vmatpush1.msra.mxu0 0.0
  %2114 = vmatprep.subr.mxu0 0.0
  %2115 = vmatpush1.msra.mxu0 0.0
  %2116 = vmatprep.subr.mxu0 0.0
  %2117 = vmatpush1.msra.mxu0 0.0
  %2118 = vmatprep.subr.mxu0 0.0
  %2119 = vmatpush1.msra.mxu0 0.0
  %2120 = vmatprep.subr.mxu0 0.0
  %2121 = vmatpush1.msra.mxu0 0.0
  %2122 = vmatprep.subr.mxu0 0.0
  %2123 = vmatpush1.msra.mxu0 0.0
  %2124 = vmatprep.subr.mxu0 0.0
  %2125 = vmatpush1.msra.mxu0 0.0
  %2126 = vmatprep.subr.mxu0 0.0
  %2127 = vmatpush1.msra.mxu0 0.0
  %2128 = vmatprep.subr.mxu0 0.0
  %2129 = vmatpush1.msra.mxu0 0.0
  %2130 = vmatprep.subr.mxu0 0.0
  %2131 = vmatpush1.msra.mxu0 0.0
  %2132 = vmatprep.subr.mxu0 0.0
  %2133 = vmatpush1.msra.mxu0 0.0
  %2134 = vmatprep.subr.mxu0 0.0
  %2135 = vmatpush1.msra.mxu0 0.0
  %2136 = vmatprep.subr.mxu0 0.0
  %2137 = vmatpush1.msra.mxu0 0.0
  %2138 = vmatprep.subr.mxu0 0.0
  %2139 = vmatpush1.msra.mxu0 0.0
  %2140 = vmatprep.subr.mxu0 0.0
  %2141 = vmatpush1.msra.mxu0 0.0
  %2142 = vmatprep.subr.mxu0 0.0
  %2143 = vmatpush1.msra.mxu0 0.0
  %2144 = vmatprep.subr.mxu0 0.0
  %2145 = vmatpush1.msra.mxu0 0.0
  %2146 = vmatprep.subr.mxu0 0.0
  %2147 = vmatpush1.msra.mxu0 0.0
  %2148 = vmatprep.subr.mxu0 0.0
  %2149 = vmatpush1.msra.mxu0 0.0
  %2150 = vmatprep.subr.mxu0 0.0
  %2151 = vmatpush1.msra.mxu0 0.0
  %2152 = vmatprep.subr.mxu0 0.0
  %2153 = vmatpush1.msra.mxu0 0.0
  %2154 = vmatprep.mubr.f32.mxu0 0.0
  %2155 = vmatmul.mubr.f32.gmra.mrb[0].mxu0 %v2088
  %v2156 = vpop.f32.mrb[0].mxu0
  %v2157 = vadd.f32 %v2086, %v2156
  %v2158 = vpop.f32.mrb[0].mxu0
  %2159 = vdwg.mxu0
  %v2160 = vsel %vm113, %v2157, 0.0
  %2161 = vadd.xlane.f32.xlu0 %v2160
  %v2162 = vpop.xlane.xlu0 %2161
  %v2163 = vmul.f32 %v2162, %v117
  %v2164 = vsub.f32 %v2157, %v2163
  %v2165 = vmul.f32 %v2164, %v2164
  %v2166 = vsel %vm113, %v2165, 0.0
  %2167 = vadd.xlane.f32.xlu0 %v2166
  %v2168 = vpop.xlane.xlu0 %2167
  %v2169 = vmul.f32 %v2168, %v117
  %v2170 = vadd.f32 %v2169, 1e-05
  %v2171 = vrsqrt.pop %v2170
  %v2172 = vmul.f32 %v2164, %v2171
  %v2173 = vlaneseq
  %v2174 = vshrl.u32 %v2173, 7
  %v2175 = vsub.s32 4, %v2174
  %v2176 = vrot.slane %v1694, %v2175
  %v2177 = vmul.f32 %v2172, %v2176
  %v2178 = vlaneseq
  %v2179 = vshrl.u32 %v2178, 7
  %v2180 = vsub.s32 5, %v2179
  %v2181 = vrot.slane %v1694, %v2180
  %v2182 = vadd.f32 %v2177, %v2181
  %v2183 = vmul.f32 %v2182, 0.5
  %v2184 = vmul.f32 %v2182, 0.70710677
  %v2185 = verf.f32.pop %v2184
  %v2186 = vadd.f32 %v2185, 1.0
  %v2187 = vmul.f32 %v2183, %v2186
  %2189 = vrot.lane.b32.xlu0 %v2187, 64
  %v2190 = vpop.permute.xlu0 %2189
  %v2192 = vadd.f32 %v1965, %v2190
  %s2193 = scalar_lea.vmem %s3, 512
  %v2194 = vld [vmem:[%s2193] sm:$0xff]
  %v2195 = vld [vmem:[%s2193 + $0x8] sm:$0xff]
  %v2196 = vld [vmem:[%s2193 + $0x10] sm:$0xff]
  %v2197 = vld [vmem:[%s2193 + $0x18] sm:$0xff]
  %v2198 = vlaneseq
  %v2199 = vshrl.u32 %v2198, 7
  %v2200 = vsub.s32 6, %v2199
  %v2201 = vrot.slane %v1694, %v2200
  %2203 = vrot.lane.b32.xlu0 %v2192, 64
  %v2204 = vpop.permute.xlu0 %2203
  %v2205 = vsel %vm151, %v2204, 0
  %2207 = vmatprep.subr.mxu0 0.0
  %2208 = vmatpush1.msra.mxu0 %v2194
  %2209 = vmatprep.subr.mxu0 0.0
  %2210 = vmatpush1.msra.mxu0 %v2195
  %2211 = vmatprep.subr.mxu0 0.0
  %2212 = vmatpush1.msra.mxu0 %v2196
  %2213 = vmatprep.subr.mxu0 0.0
  %2214 = vmatpush1.msra.mxu0 %v2197
  %2215 = vmatprep.subr.mxu0 0.0
  %2216 = vmatpush1.msra.mxu0 0.0
  %2217 = vmatprep.subr.mxu0 0.0
  %2218 = vmatpush1.msra.mxu0 0.0
  %2219 = vmatprep.subr.mxu0 0.0
  %2220 = vmatpush1.msra.mxu0 0.0
  %2221 = vmatprep.subr.mxu0 0.0
  %2222 = vmatpush1.msra.mxu0 0.0
  %2223 = vmatprep.subr.mxu0 0.0
  %2224 = vmatpush1.msra.mxu0 0.0
  %2225 = vmatprep.subr.mxu0 0.0
  %2226 = vmatpush1.msra.mxu0 0.0
  %2227 = vmatprep.subr.mxu0 0.0
  %2228 = vmatpush1.msra.mxu0 0.0
  %2229 = vmatprep.subr.mxu0 0.0
  %2230 = vmatpush1.msra.mxu0 0.0
  %2231 = vmatprep.subr.mxu0 0.0
  %2232 = vmatpush1.msra.mxu0 0.0
  %2233 = vmatprep.subr.mxu0 0.0
  %2234 = vmatpush1.msra.mxu0 0.0
  %2235 = vmatprep.subr.mxu0 0.0
  %2236 = vmatpush1.msra.mxu0 0.0
  %2237 = vmatprep.subr.mxu0 0.0
  %2238 = vmatpush1.msra.mxu0 0.0
  %2239 = vmatprep.subr.mxu0 0.0
  %2240 = vmatpush1.msra.mxu0 0.0
  %2241 = vmatprep.subr.mxu0 0.0
  %2242 = vmatpush1.msra.mxu0 0.0
  %2243 = vmatprep.subr.mxu0 0.0
  %2244 = vmatpush1.msra.mxu0 0.0
  %2245 = vmatprep.subr.mxu0 0.0
  %2246 = vmatpush1.msra.mxu0 0.0
  %2247 = vmatprep.subr.mxu0 0.0
  %2248 = vmatpush1.msra.mxu0 0.0
  %2249 = vmatprep.subr.mxu0 0.0
  %2250 = vmatpush1.msra.mxu0 0.0
  %2251 = vmatprep.subr.mxu0 0.0
  %2252 = vmatpush1.msra.mxu0 0.0
  %2253 = vmatprep.subr.mxu0 0.0
  %2254 = vmatpush1.msra.mxu0 0.0
  %2255 = vmatprep.subr.mxu0 0.0
  %2256 = vmatpush1.msra.mxu0 0.0
  %2257 = vmatprep.subr.mxu0 0.0
  %2258 = vmatpush1.msra.mxu0 0.0
  %2259 = vmatprep.subr.mxu0 0.0
  %2260 = vmatpush1.msra.mxu0 0.0
  %2261 = vmatprep.subr.mxu0 0.0
  %2262 = vmatpush1.msra.mxu0 0.0
  %2263 = vmatprep.subr.mxu0 0.0
  %2264 = vmatpush1.msra.mxu0 0.0
  %2265 = vmatprep.subr.mxu0 0.0
  %2266 = vmatpush1.msra.mxu0 0.0
  %2267 = vmatprep.subr.mxu0 0.0
  %2268 = vmatpush1.msra.mxu0 0.0
  %2269 = vmatprep.subr.mxu0 0.0
  %2270 = vmatpush1.msra.mxu0 0.0
  %2271 = vmatprep.mubr.f32.mxu0 0.0
  %2272 = vmatmul.mubr.f32.gmra.mrb[0].mxu0 %v2205
  %v2273 = vpop.f32.mrb[0].mxu0
  %v2274 = vadd.f32 %v2201, %v2273
  %v2275 = vpop.f32.mrb[0].mxu0
  %2276 = vdwg.mxu0
  %v2277 = vsel %vm113, %v2274, 0.0
  %2278 = vadd.xlane.f32.xlu0 %v2277
  %v2279 = vpop.xlane.xlu0 %2278
  %v2280 = vmul.f32 %v2279, %v117
  %v2281 = vsub.f32 %v2274, %v2280
  %v2282 = vmul.f32 %v2281, %v2281
  %v2283 = vsel %vm113, %v2282, 0.0
  %2284 = vadd.xlane.f32.xlu0 %v2283
  %v2285 = vpop.xlane.xlu0 %2284
  %v2286 = vmul.f32 %v2285, %v117
  %v2287 = vadd.f32 %v2286, 1e-05
  %v2288 = vrsqrt.pop %v2287
  %v2289 = vmul.f32 %v2281, %v2288
  %v2290 = vlaneseq
  %v2291 = vshrl.u32 %v2290, 7
  %v2292 = vsub.s32 7, %v2291
  %v2293 = vrot.slane %v1694, %v2292
  %v2294 = vmul.f32 %v2289, %v2293
  %v2295 = vlaneseq
  %v2296 = vshrl.u32 %v2295, 7
  %v2297 = vsub.s32 0, %v2296
  %v2298 = vrot.slane %v1695, %v2297
  %v2299 = vadd.f32 %v2294, %v2298
  %v2300 = vmul.f32 %v2299, 0.5
  %v2301 = vmul.f32 %v2299, 0.70710677
  %v2302 = verf.f32.pop %v2301
  %v2303 = vadd.f32 %v2302, 1.0
  %v2304 = vmul.f32 %v2300, %v2303
  %s2305 = scalar_lea.vmem %s3, 544
  %v2306 = vld [vmem:[%s2305] sm:$0xff]
  %v2307 = vld [vmem:[%s2305 + $0x8] sm:$0xff]
  %v2308 = vld [vmem:[%s2305 + $0x10] sm:$0xff]
  %v2309 = vld [vmem:[%s2305 + $0x18] sm:$0xff]
  %v2310 = vlaneseq
  %v2311 = vshrl.u32 %v2310, 7
  %v2312 = vsub.s32 1, %v2311
  %v2313 = vrot.slane %v1695, %v2312
  %v2315 = vsel %vm151, %v2304, 0
  %2317 = vmatprep.subr.mxu0 0.0
  %2318 = vmatpush1.msra.mxu0 %v2306
  %2319 = vmatprep.subr.mxu0 0.0
  %2320 = vmatpush1.msra.mxu0 %v2307
  %2321 = vmatprep.subr.mxu0 0.0
  %2322 = vmatpush1.msra.mxu0 %v2308
  %2323 = vmatprep.subr.mxu0 0.0
  %2324 = vmatpush1.msra.mxu0 %v2309
  %2325 = vmatprep.subr.mxu0 0.0
  %2326 = vmatpush1.msra.mxu0 0.0
  %2327 = vmatprep.subr.mxu0 0.0
  %2328 = vmatpush1.msra.mxu0 0.0
  %2329 = vmatprep.subr.mxu0 0.0
  %2330 = vmatpush1.msra.mxu0 0.0
  %2331 = vmatprep.subr.mxu0 0.0
  %2332 = vmatpush1.msra.mxu0 0.0
  %2333 = vmatprep.subr.mxu0 0.0
  %2334 = vmatpush1.msra.mxu0 0.0
  %2335 = vmatprep.subr.mxu0 0.0
  %2336 = vmatpush1.msra.mxu0 0.0
  %2337 = vmatprep.subr.mxu0 0.0
  %2338 = vmatpush1.msra.mxu0 0.0
  %2339 = vmatprep.subr.mxu0 0.0
  %2340 = vmatpush1.msra.mxu0 0.0
  %2341 = vmatprep.subr.mxu0 0.0
  %2342 = vmatpush1.msra.mxu0 0.0
  %2343 = vmatprep.subr.mxu0 0.0
  %2344 = vmatpush1.msra.mxu0 0.0
  %2345 = vmatprep.subr.mxu0 0.0
  %2346 = vmatpush1.msra.mxu0 0.0
  %2347 = vmatprep.subr.mxu0 0.0
  %2348 = vmatpush1.msra.mxu0 0.0
  %2349 = vmatprep.subr.mxu0 0.0
  %2350 = vmatpush1.msra.mxu0 0.0
  %2351 = vmatprep.subr.mxu0 0.0
  %2352 = vmatpush1.msra.mxu0 0.0
  %2353 = vmatprep.subr.mxu0 0.0
  %2354 = vmatpush1.msra.mxu0 0.0
  %2355 = vmatprep.subr.mxu0 0.0
  %2356 = vmatpush1.msra.mxu0 0.0
  %2357 = vmatprep.subr.mxu0 0.0
  %2358 = vmatpush1.msra.mxu0 0.0
  %2359 = vmatprep.subr.mxu0 0.0
  %2360 = vmatpush1.msra.mxu0 0.0
  %2361 = vmatprep.subr.mxu0 0.0
  %2362 = vmatpush1.msra.mxu0 0.0
  %2363 = vmatprep.subr.mxu0 0.0
  %2364 = vmatpush1.msra.mxu0 0.0
  %2365 = vmatprep.subr.mxu0 0.0
  %2366 = vmatpush1.msra.mxu0 0.0
  %2367 = vmatprep.subr.mxu0 0.0
  %2368 = vmatpush1.msra.mxu0 0.0
  %2369 = vmatprep.subr.mxu0 0.0
  %2370 = vmatpush1.msra.mxu0 0.0
  %2371 = vmatprep.subr.mxu0 0.0
  %2372 = vmatpush1.msra.mxu0 0.0
  %2373 = vmatprep.subr.mxu0 0.0
  %2374 = vmatpush1.msra.mxu0 0.0
  %2375 = vmatprep.subr.mxu0 0.0
  %2376 = vmatpush1.msra.mxu0 0.0
  %2377 = vmatprep.subr.mxu0 0.0
  %2378 = vmatpush1.msra.mxu0 0.0
  %2379 = vmatprep.subr.mxu0 0.0
  %2380 = vmatpush1.msra.mxu0 0.0
  %2381 = vmatprep.mubr.f32.mxu0 0.0
  %2382 = vmatmul.mubr.f32.gmra.mrb[0].mxu0 %v2315
  %v2383 = vpop.f32.mrb[0].mxu0
  %v2384 = vadd.f32 %v2313, %v2383
  %v2385 = vpop.f32.mrb[0].mxu0
  %2386 = vdwg.mxu0
  %v2387 = vsel %vm113, %v2384, 0.0
  %2388 = vadd.xlane.f32.xlu0 %v2387
  %v2389 = vpop.xlane.xlu0 %2388
  %v2390 = vmul.f32 %v2389, %v117
  %v2391 = vsub.f32 %v2384, %v2390
  %v2392 = vmul.f32 %v2391, %v2391
  %v2393 = vsel %vm113, %v2392, 0.0
  %2394 = vadd.xlane.f32.xlu0 %v2393
  %v2395 = vpop.xlane.xlu0 %2394
  %v2396 = vmul.f32 %v2395, %v117
  %v2397 = vadd.f32 %v2396, 1e-05
  %v2398 = vrsqrt.pop %v2397
  %v2399 = vmul.f32 %v2391, %v2398
  %v2400 = vlaneseq
  %v2401 = vshrl.u32 %v2400, 7
  %v2402 = vsub.s32 2, %v2401
  %v2403 = vrot.slane %v1695, %v2402
  %v2404 = vmul.f32 %v2399, %v2403
  %v2405 = vlaneseq
  %v2406 = vshrl.u32 %v2405, 7
  %v2407 = vsub.s32 3, %v2406
  %v2408 = vrot.slane %v1695, %v2407
  %v2409 = vadd.f32 %v2404, %v2408
  %v2410 = vmul.f32 %v2409, 0.5
  %v2411 = vmul.f32 %v2409, 0.70710677
  %v2412 = verf.f32.pop %v2411
  %v2413 = vadd.f32 %v2412, 1.0
  %v2414 = vmul.f32 %v2410, %v2413
  %2416 = vrot.lane.b32.xlu0 %v2414, 64
  %v2417 = vpop.permute.xlu0 %2416
  %v2419 = vadd.f32 %v2192, %v2417
  %s2420 = scalar_lea.vmem %s5, 64
  %v2421 = vld [vmem:[%s2420] sm:$0xff]
  %v2422 = vld [vmem:[%s2420 + $0x8] sm:$0xff]
  %v2423 = vld [vmem:[%s2420 + $0x10] sm:$0xff]
  %v2424 = vld [vmem:[%s2420 + $0x18] sm:$0xff]
  %2426 = vrot.lane.b32.xlu0 %v2419, 64
  %v2427 = vpop.permute.xlu0 %2426
  %v2428 = vsel %vm151, %v2427, 0
  %2430 = vmatprep.subr.mxu0 0.0
  %2431 = vmatpush1.msra.mxu0 %v2421
  %2432 = vmatprep.subr.mxu0 0.0
  %2433 = vmatpush1.msra.mxu0 %v2422
  %2434 = vmatprep.subr.mxu0 0.0
  %2435 = vmatpush1.msra.mxu0 %v2423
  %2436 = vmatprep.subr.mxu0 0.0
  %2437 = vmatpush1.msra.mxu0 %v2424
  %2438 = vmatprep.subr.mxu0 0.0
  %2439 = vmatpush1.msra.mxu0 0.0
  %2440 = vmatprep.subr.mxu0 0.0
  %2441 = vmatpush1.msra.mxu0 0.0
  %2442 = vmatprep.subr.mxu0 0.0
  %2443 = vmatpush1.msra.mxu0 0.0
  %2444 = vmatprep.subr.mxu0 0.0
  %2445 = vmatpush1.msra.mxu0 0.0
  %2446 = vmatprep.subr.mxu0 0.0
  %2447 = vmatpush1.msra.mxu0 0.0
  %2448 = vmatprep.subr.mxu0 0.0
  %2449 = vmatpush1.msra.mxu0 0.0
  %2450 = vmatprep.subr.mxu0 0.0
  %2451 = vmatpush1.msra.mxu0 0.0
  %2452 = vmatprep.subr.mxu0 0.0
  %2453 = vmatpush1.msra.mxu0 0.0
  %2454 = vmatprep.subr.mxu0 0.0
  %2455 = vmatpush1.msra.mxu0 0.0
  %2456 = vmatprep.subr.mxu0 0.0
  %2457 = vmatpush1.msra.mxu0 0.0
  %2458 = vmatprep.subr.mxu0 0.0
  %2459 = vmatpush1.msra.mxu0 0.0
  %2460 = vmatprep.subr.mxu0 0.0
  %2461 = vmatpush1.msra.mxu0 0.0
  %2462 = vmatprep.subr.mxu0 0.0
  %2463 = vmatpush1.msra.mxu0 0.0
  %2464 = vmatprep.subr.mxu0 0.0
  %2465 = vmatpush1.msra.mxu0 0.0
  %2466 = vmatprep.subr.mxu0 0.0
  %2467 = vmatpush1.msra.mxu0 0.0
  %2468 = vmatprep.subr.mxu0 0.0
  %2469 = vmatpush1.msra.mxu0 0.0
  %2470 = vmatprep.subr.mxu0 0.0
  %2471 = vmatpush1.msra.mxu0 0.0
  %2472 = vmatprep.subr.mxu0 0.0
  %2473 = vmatpush1.msra.mxu0 0.0
  %2474 = vmatprep.subr.mxu0 0.0
  %2475 = vmatpush1.msra.mxu0 0.0
  %2476 = vmatprep.subr.mxu0 0.0
  %2477 = vmatpush1.msra.mxu0 0.0
  %2478 = vmatprep.subr.mxu0 0.0
  %2479 = vmatpush1.msra.mxu0 0.0
  %2480 = vmatprep.subr.mxu0 0.0
  %2481 = vmatpush1.msra.mxu0 0.0
  %2482 = vmatprep.subr.mxu0 0.0
  %2483 = vmatpush1.msra.mxu0 0.0
  %2484 = vmatprep.subr.mxu0 0.0
  %2485 = vmatpush1.msra.mxu0 0.0
  %2486 = vmatprep.subr.mxu0 0.0
  %2487 = vmatpush1.msra.mxu0 0.0
  %2488 = vmatprep.subr.mxu0 0.0
  %2489 = vmatpush1.msra.mxu0 0.0
  %2490 = vmatprep.subr.mxu0 0.0
  %2491 = vmatpush1.msra.mxu0 0.0
  %2492 = vmatprep.subr.mxu0 0.0
  %2493 = vmatpush1.msra.mxu0 0.0
  %2494 = vmatprep.mubr.f32.mxu0 0.0
  %2495 = vmatmul.mubr.f32.gmra.mrb[0].mxu0 %v2428
  %v2496 = vpop.f32.mrb[0].mxu0
  %v2497 = vadd.f32 0.0, %v2496
  %v2498 = vpop.f32.mrb[0].mxu0
  %2499 = vdwg.mxu0
  %2501 = vrot.lane.b32.xlu0 %v1689, 3
  %v2502 = vpop.permute.xlu0 %2501
  %2505 = vrot.lane.b32.xlu0 %v2497, 6
  %v2506 = vpop.permute.xlu0 %2505
  %vm2508 = vcmask 23552
  %v2509 = vsel %vm2508, %v880, %v2502
  %vm2510 = vcmask 48128
  %v2511 = vsel %vm2510, %v2509, %v2506
  %v2512 = vld [vmem:[%s6] sm:$0x1]
  %v2514 = vlaneseq
  %v2515 = vshrl.u32 %v2514, 7
  %v2516 = vsub.s32 0, %v2515
  %v2517 = vrot.slane %v2512, %v2516
  %v2519 = vadd.f32 %v2511, %v2517
  %vm2520 = vcmask 68608
  %2521 = vst.msk [vmem:[%s7] sm:$0xf] %vm2520, %v2519
  // Predicated region
  $region30: #{divdis_forward.1} parent=0 // pred_check
    _
  $region31: #{divdis_forward.1} parent=0 // pred_check_branch
    %2523 = sbr.rel (0) target = $region33
  $region32: #{divdis_forward.1} parent=0 // pred_region
    _
  $region33: #{divdis_forward.1} parent=0 // pred_fallthru
    _
  // Predicated region
  $region34: #{divdis_forward.1} parent=0 // pred_check
    _
  $region35: #{divdis_forward.1} parent=0 // pred_check_branch
    %2525 = sbr.rel (0) target = $region37
  $region36: #{divdis_forward.1} parent=0 // pred_region
    _
  $region37: #{divdis_forward.1} parent=0 // pred_fallthru
    _

</llo_original>
